<compile_context>
chip_gen: v7x
topology: tpu7x:2x2x1
jax: 0.10.0
libtpu: 0.0.40
codegen_flags: <defaults>
</compile_context>

<pallas_src>
from math import exp

import numpy as np
import jax
import jax.numpy as jnp
from jax.experimental import pallas as pl
from jax.experimental.pallas import tpu as pltpu

WINDOW_SIZE = 11
_C1 = 0.01 ** 2
_C2 = 0.03 ** 2


def _gaussian_taps(window_size: int, sigma: float = 1.5):
    """Normalized 1-D Gaussian taps, identical to the PyTorch gaussian()."""
    g = np.array(
        [exp(-((x - window_size // 2) ** 2) / (2.0 * sigma ** 2)) for x in range(window_size)],
        dtype=np.float32,
    )
    g = g / g.sum()
    return [float(v) for v in g]


def _make_ssim_kernel(g_taps, H: int, W: int):
    ws = len(g_taps)

    def kernel(i1_ref, i2_ref, out_ref):
        # i1_ref / i2_ref : VMEM (1, C, Hp, Wp) zero-padded slices of one image
        # out_ref         : VMEM (1, 1, 1)      per-image sum of the ssim map
        p1 = i1_ref[0]  # (C, Hp, Wp)
        p2 = i2_ref[0]

        # Products hoisted out of the tap loops (zero padding commutes with them).
        maps = (p1, p2, p1 * p1, p2 * p2, p1 * p2)

        def hpass(x):  # (C, Hp, Wp) -> (C, Hp, W): 11 taps along width
            acc = g_taps[0] * x[:, :, 0:W]
            for k in range(1, ws):
                acc = acc + g_taps[k] * x[:, :, k:k + W]
            return acc

        def vpass(x):  # (C, Hp, W) -> (C, H, W): 11 taps along height
            acc = g_taps[0] * x[:, 0:H, :]
            for k in range(1, ws):
                acc = acc + g_taps[k] * x[:, k:k + H, :]
            return acc

        mu1, mu2, e11, e22, e12 = [vpass(hpass(m)) for m in maps]

        mu1_sq = mu1 * mu1
        mu2_sq = mu2 * mu2
        mu1_mu2 = mu1 * mu2
        sigma1_sq = e11 - mu1_sq
        sigma2_sq = e22 - mu2_sq
        sigma12 = e12 - mu1_mu2

        smap = ((2.0 * mu1_mu2 + _C1) * (2.0 * sigma12 + _C2)) / (
            (mu1_sq + mu2_sq + _C1) * (sigma1_sq + sigma2_sq + _C2)
        )

        out_ref[...] = jnp.sum(smap, keepdims=True)  # (1, 1, 1)

    return kernel


def ssim(img1, img2, window_size: int = WINDOW_SIZE, size_average: bool = True):
    """SSIM(img1, img2), matching the PyTorch SSIM module's forward()."""
    assert img1.shape == img2.shape and img1.ndim == 4
    N, C, H, W = img1.shape
    pad = window_size // 2
    Hp, Wp = H + 2 * pad, W + 2 * pad

    g_taps = _gaussian_taps(window_size)

    # TODO(synk): for very large images, drop these padded HBM copies (DMA the
    # unpadded interior into a zero-filled VMEM scratch in-kernel) and add an
    # H-tile grid axis with a (window_size-1)-row halo so per-step buffers fit
    # v7x's 64 MiB VMEM.  At small/medium sizes the single padded copy is cheap.
    i1p = jnp.pad(img1.astype(jnp.float32), ((0, 0), (0, 0), (pad, pad), (pad, pad)))
    i2p = jnp.pad(img2.astype(jnp.float32), ((0, 0), (0, 0), (pad, pad), (pad, pad)))

    per_image_sum = pl.pallas_call(
        _make_ssim_kernel(g_taps, H, W),
        out_shape=jax.ShapeDtypeStruct((N, 1, 1), jnp.float32),
        grid_spec=pltpu.PrefetchScalarGridSpec(
            num_scalar_prefetch=0,
            grid=(N,),
            in_specs=[
                pl.BlockSpec((1, C, Hp, Wp), lambda n: (n, 0, 0, 0)),  # img1 (padded)
                pl.BlockSpec((1, C, Hp, Wp), lambda n: (n, 0, 0, 0)),  # img2 (padded)
            ],
            out_specs=pl.BlockSpec((1, 1, 1), lambda n: (n, 0, 0)),    # per-image sums
        ),
        compiler_params=pltpu.CompilerParams(
            dimension_semantics=("parallel",),  # no cross-step state -> megacore OK
        ),
    )(i1p, i2p)

    sums = per_image_sum.reshape(N)
    denom_per_image = jnp.float32(C * H * W)
    if size_average:
        # ssim_map.mean()
        return jnp.sum(sums) / (jnp.float32(N) * denom_per_image)
    else:
        # ssim_map.mean(1).mean(1).mean(1)  (mean over C, H, W per image)
        return sums / denom_per_image


def _ssim_reference(img1, img2, window_size=WINDOW_SIZE, size_average=True):
    """Pure-JAX reference: direct 121-tap depthwise conv, mirrors the PyTorch code."""
    N, C, H, W = img1.shape
    pad = window_size // 2
    g = np.asarray(_gaussian_taps(window_size), dtype=np.float32)
    w2d = np.outer(g, g)

    def conv(x):
        xp = jnp.pad(x.astype(jnp.float32), ((0, 0), (0, 0), (pad, pad), (pad, pad)))
        acc = jnp.zeros((N, C, H, W), jnp.float32)
        for kh in range(window_size):
            for kw in range(window_size):
                acc = acc + float(w2d[kh, kw]) * xp[:, :, kh:kh + H, kw:kw + W]
        return acc

    mu1 = conv(img1)
    mu2 = conv(img2)
    mu1_sq, mu2_sq, mu1_mu2 = mu1 * mu1, mu2 * mu2, mu1 * mu2
    s1 = conv(img1 * img1) - mu1_sq
    s2 = conv(img2 * img2) - mu2_sq
    s12 = conv(img1 * img2) - mu1_mu2
    smap = ((2 * mu1_mu2 + _C1) * (2 * s12 + _C2)) / ((mu1_sq + mu2_sq + _C1) * (s1 + s2 + _C2))
    if size_average:
        return smap.mean()
    return smap.mean(axis=(1, 2, 3))


if __name__ == "__main__":
    key = jax.random.PRNGKey(0)
    k1, k2 = jax.random.split(key)
    # Module defaults: channel = 3, window_size = 11, size_average = True.
    img1 = jax.random.uniform(k1, (2, 3, 16, 16), dtype=jnp.float32)
    img2 = jax.random.uniform(k2, (2, 3, 16, 16), dtype=jnp.float32)

    out = jax.block_until_ready(ssim(img1, img2))                       # scalar
    out_per_image = jax.block_until_ready(ssim(img1, img2, size_average=False))

    assert out.shape == () and bool(jnp.isfinite(out))
    assert out_per_image.shape == (2,) and bool(jnp.all(jnp.isfinite(out_per_image)))

    ref = jax.block_until_ready(_ssim_reference(img1, img2))
    ref_per_image = jax.block_until_ready(_ssim_reference(img1, img2, size_average=False))
    assert abs(float(out) - float(ref)) < 1e-4
    assert float(jnp.max(jnp.abs(out_per_image - ref_per_image))) < 1e-4

    print("KERNEL_OK")
</pallas_src>

<mosaic_0001>
module attributes {stable_mosaic.version = 11 : i64} {
  func.func @kernel(%arg0: i32, %arg1: memref<1x3x26x26xf32, #tpu.memory_space<vmem>>, %arg2: memref<1x3x26x26xf32, #tpu.memory_space<vmem>>, %arg3: memref<1x1x1xf32, #tpu.memory_space<vmem>>) attributes {dimension_semantics = [#tpu.dimension_semantics<parallel>], iteration_bounds = array<i64: 2>, scalar_prefetch = 0 : i64, scratch_operands = 0 : i64, tpu.core_type = #tpu.core_type<tc>, window_params = [{transform_indices = @transform_0, window_bounds = array<i64: 1, 3, 26, 26>}, {transform_indices = @transform_1, window_bounds = array<i64: 1, 3, 26, 26>}, {transform_indices = @transform_2, window_bounds = array<i64: 1, 1, 1>}]} {
    %c0 = arith.constant 0 : index
    %c0_0 = arith.constant 0 : index
    %c0_1 = arith.constant 0 : index
    %c0_2 = arith.constant 0 : index
    %0 = vector.load %arg1[%c0, %c0_0, %c0_1, %c0_2] : memref<1x3x26x26xf32, #tpu.memory_space<vmem>>, vector<1x3x26x26xf32>
    %1 = vector.shape_cast %0 : vector<1x3x26x26xf32> to vector<3x26x26xf32>
    %c0_3 = arith.constant 0 : index
    %c0_4 = arith.constant 0 : index
    %c0_5 = arith.constant 0 : index
    %c0_6 = arith.constant 0 : index
    %2 = vector.load %arg2[%c0_3, %c0_4, %c0_5, %c0_6] : memref<1x3x26x26xf32, #tpu.memory_space<vmem>>, vector<1x3x26x26xf32>
    %3 = vector.shape_cast %2 : vector<1x3x26x26xf32> to vector<3x26x26xf32>
    %4 = arith.mulf %1, %1 : vector<3x26x26xf32>
    %5 = arith.mulf %3, %3 : vector<3x26x26xf32>
    %6 = arith.mulf %1, %3 : vector<3x26x26xf32>
    %7 = vector.extract_strided_slice %1 {offsets = [0, 0, 0], sizes = [3, 26, 16], strides = [1, 1, 1]} : vector<3x26x26xf32> to vector<3x26x16xf32>
    %cst = arith.constant 0.00102838024 : f32
    %8 = vector.broadcast %cst : f32 to vector<3x26x16xf32>
    %9 = arith.mulf %8, %7 : vector<3x26x16xf32>
    %10 = vector.extract_strided_slice %1 {offsets = [0, 0, 1], sizes = [3, 26, 16], strides = [1, 1, 1]} : vector<3x26x26xf32> to vector<3x26x16xf32>
    %cst_7 = arith.constant 0.00759875868 : f32
    %11 = vector.broadcast %cst_7 : f32 to vector<3x26x16xf32>
    %12 = arith.mulf %11, %10 : vector<3x26x16xf32>
    %13 = arith.addf %9, %12 : vector<3x26x16xf32>
    %14 = vector.extract_strided_slice %1 {offsets = [0, 0, 2], sizes = [3, 26, 16], strides = [1, 1, 1]} : vector<3x26x26xf32> to vector<3x26x16xf32>
    %cst_8 = arith.constant 0.0360007733 : f32
    %15 = vector.broadcast %cst_8 : f32 to vector<3x26x16xf32>
    %16 = arith.mulf %15, %14 : vector<3x26x16xf32>
    %17 = arith.addf %13, %16 : vector<3x26x16xf32>
    %18 = vector.extract_strided_slice %1 {offsets = [0, 0, 3], sizes = [3, 26, 16], strides = [1, 1, 1]} : vector<3x26x26xf32> to vector<3x26x16xf32>
    %cst_9 = arith.constant 0.109360695 : f32
    %19 = vector.broadcast %cst_9 : f32 to vector<3x26x16xf32>
    %20 = arith.mulf %19, %18 : vector<3x26x16xf32>
    %21 = arith.addf %17, %20 : vector<3x26x16xf32>
    %22 = vector.extract_strided_slice %1 {offsets = [0, 0, 4], sizes = [3, 26, 16], strides = [1, 1, 1]} : vector<3x26x26xf32> to vector<3x26x16xf32>
    %cst_10 = arith.constant 0.213005543 : f32
    %23 = vector.broadcast %cst_10 : f32 to vector<3x26x16xf32>
    %24 = arith.mulf %23, %22 : vector<3x26x16xf32>
    %25 = arith.addf %21, %24 : vector<3x26x16xf32>
    %26 = vector.extract_strided_slice %1 {offsets = [0, 0, 5], sizes = [3, 26, 16], strides = [1, 1, 1]} : vector<3x26x26xf32> to vector<3x26x16xf32>
    %cst_11 = arith.constant 0.266011745 : f32
    %27 = vector.broadcast %cst_11 : f32 to vector<3x26x16xf32>
    %28 = arith.mulf %27, %26 : vector<3x26x16xf32>
    %29 = arith.addf %25, %28 : vector<3x26x16xf32>
    %30 = vector.extract_strided_slice %1 {offsets = [0, 0, 6], sizes = [3, 26, 16], strides = [1, 1, 1]} : vector<3x26x26xf32> to vector<3x26x16xf32>
    %cst_12 = arith.constant 0.213005543 : f32
    %31 = vector.broadcast %cst_12 : f32 to vector<3x26x16xf32>
    %32 = arith.mulf %31, %30 : vector<3x26x16xf32>
    %33 = arith.addf %29, %32 : vector<3x26x16xf32>
    %34 = vector.extract_strided_slice %1 {offsets = [0, 0, 7], sizes = [3, 26, 16], strides = [1, 1, 1]} : vector<3x26x26xf32> to vector<3x26x16xf32>
    %cst_13 = arith.constant 0.109360695 : f32
    %35 = vector.broadcast %cst_13 : f32 to vector<3x26x16xf32>
    %36 = arith.mulf %35, %34 : vector<3x26x16xf32>
    %37 = arith.addf %33, %36 : vector<3x26x16xf32>
    %38 = vector.extract_strided_slice %1 {offsets = [0, 0, 8], sizes = [3, 26, 16], strides = [1, 1, 1]} : vector<3x26x26xf32> to vector<3x26x16xf32>
    %cst_14 = arith.constant 0.0360007733 : f32
    %39 = vector.broadcast %cst_14 : f32 to vector<3x26x16xf32>
    %40 = arith.mulf %39, %38 : vector<3x26x16xf32>
    %41 = arith.addf %37, %40 : vector<3x26x16xf32>
    %42 = vector.extract_strided_slice %1 {offsets = [0, 0, 9], sizes = [3, 26, 16], strides = [1, 1, 1]} : vector<3x26x26xf32> to vector<3x26x16xf32>
    %cst_15 = arith.constant 0.00759875868 : f32
    %43 = vector.broadcast %cst_15 : f32 to vector<3x26x16xf32>
    %44 = arith.mulf %43, %42 : vector<3x26x16xf32>
    %45 = arith.addf %41, %44 : vector<3x26x16xf32>
    %46 = vector.extract_strided_slice %1 {offsets = [0, 0, 10], sizes = [3, 26, 16], strides = [1, 1, 1]} : vector<3x26x26xf32> to vector<3x26x16xf32>
    %cst_16 = arith.constant 0.00102838024 : f32
    %47 = vector.broadcast %cst_16 : f32 to vector<3x26x16xf32>
    %48 = arith.mulf %47, %46 : vector<3x26x16xf32>
    %49 = arith.addf %45, %48 : vector<3x26x16xf32>
    %50 = vector.extract_strided_slice %49 {offsets = [0, 0, 0], sizes = [3, 16, 16], strides = [1, 1, 1]} : vector<3x26x16xf32> to vector<3x16x16xf32>
    %cst_17 = arith.constant 0.00102838024 : f32
    %51 = vector.broadcast %cst_17 : f32 to vector<3x16x16xf32>
    %52 = arith.mulf %51, %50 : vector<3x16x16xf32>
    %53 = vector.extract_strided_slice %49 {offsets = [0, 1, 0], sizes = [3, 16, 16], strides = [1, 1, 1]} : vector<3x26x16xf32> to vector<3x16x16xf32>
    %cst_18 = arith.constant 0.00759875868 : f32
    %54 = vector.broadcast %cst_18 : f32 to vector<3x16x16xf32>
    %55 = arith.mulf %54, %53 : vector<3x16x16xf32>
    %56 = arith.addf %52, %55 : vector<3x16x16xf32>
    %57 = vector.extract_strided_slice %49 {offsets = [0, 2, 0], sizes = [3, 16, 16], strides = [1, 1, 1]} : vector<3x26x16xf32> to vector<3x16x16xf32>
    %cst_19 = arith.constant 0.0360007733 : f32
    %58 = vector.broadcast %cst_19 : f32 to vector<3x16x16xf32>
    %59 = arith.mulf %58, %57 : vector<3x16x16xf32>
    %60 = arith.addf %56, %59 : vector<3x16x16xf32>
    %61 = vector.extract_strided_slice %49 {offsets = [0, 3, 0], sizes = [3, 16, 16], strides = [1, 1, 1]} : vector<3x26x16xf32> to vector<3x16x16xf32>
    %cst_20 = arith.constant 0.109360695 : f32
    %62 = vector.broadcast %cst_20 : f32 to vector<3x16x16xf32>
    %63 = arith.mulf %62, %61 : vector<3x16x16xf32>
    %64 = arith.addf %60, %63 : vector<3x16x16xf32>
    %65 = vector.extract_strided_slice %49 {offsets = [0, 4, 0], sizes = [3, 16, 16], strides = [1, 1, 1]} : vector<3x26x16xf32> to vector<3x16x16xf32>
    %cst_21 = arith.constant 0.213005543 : f32
    %66 = vector.broadcast %cst_21 : f32 to vector<3x16x16xf32>
    %67 = arith.mulf %66, %65 : vector<3x16x16xf32>
    %68 = arith.addf %64, %67 : vector<3x16x16xf32>
    %69 = vector.extract_strided_slice %49 {offsets = [0, 5, 0], sizes = [3, 16, 16], strides = [1, 1, 1]} : vector<3x26x16xf32> to vector<3x16x16xf32>
    %cst_22 = arith.constant 0.266011745 : f32
    %70 = vector.broadcast %cst_22 : f32 to vector<3x16x16xf32>
    %71 = arith.mulf %70, %69 : vector<3x16x16xf32>
    %72 = arith.addf %68, %71 : vector<3x16x16xf32>
    %73 = vector.extract_strided_slice %49 {offsets = [0, 6, 0], sizes = [3, 16, 16], strides = [1, 1, 1]} : vector<3x26x16xf32> to vector<3x16x16xf32>
    %cst_23 = arith.constant 0.213005543 : f32
    %74 = vector.broadcast %cst_23 : f32 to vector<3x16x16xf32>
    %75 = arith.mulf %74, %73 : vector<3x16x16xf32>
    %76 = arith.addf %72, %75 : vector<3x16x16xf32>
    %77 = vector.extract_strided_slice %49 {offsets = [0, 7, 0], sizes = [3, 16, 16], strides = [1, 1, 1]} : vector<3x26x16xf32> to vector<3x16x16xf32>
    %cst_24 = arith.constant 0.109360695 : f32
    %78 = vector.broadcast %cst_24 : f32 to vector<3x16x16xf32>
    %79 = arith.mulf %78, %77 : vector<3x16x16xf32>
    %80 = arith.addf %76, %79 : vector<3x16x16xf32>
    %81 = vector.extract_strided_slice %49 {offsets = [0, 8, 0], sizes = [3, 16, 16], strides = [1, 1, 1]} : vector<3x26x16xf32> to vector<3x16x16xf32>
    %cst_25 = arith.constant 0.0360007733 : f32
    %82 = vector.broadcast %cst_25 : f32 to vector<3x16x16xf32>
    %83 = arith.mulf %82, %81 : vector<3x16x16xf32>
    %84 = arith.addf %80, %83 : vector<3x16x16xf32>
    %85 = vector.extract_strided_slice %49 {offsets = [0, 9, 0], sizes = [3, 16, 16], strides = [1, 1, 1]} : vector<3x26x16xf32> to vector<3x16x16xf32>
    %cst_26 = arith.constant 0.00759875868 : f32
    %86 = vector.broadcast %cst_26 : f32 to vector<3x16x16xf32>
    %87 = arith.mulf %86, %85 : vector<3x16x16xf32>
    %88 = arith.addf %84, %87 : vector<3x16x16xf32>
    %89 = vector.extract_strided_slice %49 {offsets = [0, 10, 0], sizes = [3, 16, 16], strides = [1, 1, 1]} : vector<3x26x16xf32> to vector<3x16x16xf32>
    %cst_27 = arith.constant 0.00102838024 : f32
    %90 = vector.broadcast %cst_27 : f32 to vector<3x16x16xf32>
    %91 = arith.mulf %90, %89 : vector<3x16x16xf32>
    %92 = arith.addf %88, %91 : vector<3x16x16xf32>
    %93 = vector.extract_strided_slice %3 {offsets = [0, 0, 0], sizes = [3, 26, 16], strides = [1, 1, 1]} : vector<3x26x26xf32> to vector<3x26x16xf32>
    %cst_28 = arith.constant 0.00102838024 : f32
    %94 = vector.broadcast %cst_28 : f32 to vector<3x26x16xf32>
    %95 = arith.mulf %94, %93 : vector<3x26x16xf32>
    %96 = vector.extract_strided_slice %3 {offsets = [0, 0, 1], sizes = [3, 26, 16], strides = [1, 1, 1]} : vector<3x26x26xf32> to vector<3x26x16xf32>
    %cst_29 = arith.constant 0.00759875868 : f32
    %97 = vector.broadcast %cst_29 : f32 to vector<3x26x16xf32>
    %98 = arith.mulf %97, %96 : vector<3x26x16xf32>
    %99 = arith.addf %95, %98 : vector<3x26x16xf32>
    %100 = vector.extract_strided_slice %3 {offsets = [0, 0, 2], sizes = [3, 26, 16], strides = [1, 1, 1]} : vector<3x26x26xf32> to vector<3x26x16xf32>
    %cst_30 = arith.constant 0.0360007733 : f32
    %101 = vector.broadcast %cst_30 : f32 to vector<3x26x16xf32>
    %102 = arith.mulf %101, %100 : vector<3x26x16xf32>
    %103 = arith.addf %99, %102 : vector<3x26x16xf32>
    %104 = vector.extract_strided_slice %3 {offsets = [0, 0, 3], sizes = [3, 26, 16], strides = [1, 1, 1]} : vector<3x26x26xf32> to vector<3x26x16xf32>
    %cst_31 = arith.constant 0.109360695 : f32
    %105 = vector.broadcast %cst_31 : f32 to vector<3x26x16xf32>
    %106 = arith.mulf %105, %104 : vector<3x26x16xf32>
    %107 = arith.addf %103, %106 : vector<3x26x16xf32>
    %108 = vector.extract_strided_slice %3 {offsets = [0, 0, 4], sizes = [3, 26, 16], strides = [1, 1, 1]} : vector<3x26x26xf32> to vector<3x26x16xf32>
    %cst_32 = arith.constant 0.213005543 : f32
    %109 = vector.broadcast %cst_32 : f32 to vector<3x26x16xf32>
    %110 = arith.mulf %109, %108 : vector<3x26x16xf32>
    %111 = arith.addf %107, %110 : vector<3x26x16xf32>
    %112 = vector.extract_strided_slice %3 {offsets = [0, 0, 5], sizes = [3, 26, 16], strides = [1, 1, 1]} : vector<3x26x26xf32> to vector<3x26x16xf32>
    %cst_33 = arith.constant 0.266011745 : f32
    %113 = vector.broadcast %cst_33 : f32 to vector<3x26x16xf32>
    %114 = arith.mulf %113, %112 : vector<3x26x16xf32>
    %115 = arith.addf %111, %114 : vector<3x26x16xf32>
    %116 = vector.extract_strided_slice %3 {offsets = [0, 0, 6], sizes = [3, 26, 16], strides = [1, 1, 1]} : vector<3x26x26xf32> to vector<3x26x16xf32>
    %cst_34 = arith.constant 0.213005543 : f32
    %117 = vector.broadcast %cst_34 : f32 to vector<3x26x16xf32>
    %118 = arith.mulf %117, %116 : vector<3x26x16xf32>
    %119 = arith.addf %115, %118 : vector<3x26x16xf32>
    %120 = vector.extract_strided_slice %3 {offsets = [0, 0, 7], sizes = [3, 26, 16], strides = [1, 1, 1]} : vector<3x26x26xf32> to vector<3x26x16xf32>
    %cst_35 = arith.constant 0.109360695 : f32
    %121 = vector.broadcast %cst_35 : f32 to vector<3x26x16xf32>
    %122 = arith.mulf %121, %120 : vector<3x26x16xf32>
    %123 = arith.addf %119, %122 : vector<3x26x16xf32>
    %124 = vector.extract_strided_slice %3 {offsets = [0, 0, 8], sizes = [3, 26, 16], strides = [1, 1, 1]} : vector<3x26x26xf32> to vector<3x26x16xf32>
    %cst_36 = arith.constant 0.0360007733 : f32
    %125 = vector.broadcast %cst_36 : f32 to vector<3x26x16xf32>
    %126 = arith.mulf %125, %124 : vector<3x26x16xf32>
    %127 = arith.addf %123, %126 : vector<3x26x16xf32>
    %128 = vector.extract_strided_slice %3 {offsets = [0, 0, 9], sizes = [3, 26, 16], strides = [1, 1, 1]} : vector<3x26x26xf32> to vector<3x26x16xf32>
    %cst_37 = arith.constant 0.00759875868 : f32
    %129 = vector.broadcast %cst_37 : f32 to vector<3x26x16xf32>
    %130 = arith.mulf %129, %128 : vector<3x26x16xf32>
    %131 = arith.addf %127, %130 : vector<3x26x16xf32>
    %132 = vector.extract_strided_slice %3 {offsets = [0, 0, 10], sizes = [3, 26, 16], strides = [1, 1, 1]} : vector<3x26x26xf32> to vector<3x26x16xf32>
    %cst_38 = arith.constant 0.00102838024 : f32
    %133 = vector.broadcast %cst_38 : f32 to vector<3x26x16xf32>
    %134 = arith.mulf %133, %132 : vector<3x26x16xf32>
    %135 = arith.addf %131, %134 : vector<3x26x16xf32>
    %136 = vector.extract_strided_slice %135 {offsets = [0, 0, 0], sizes = [3, 16, 16], strides = [1, 1, 1]} : vector<3x26x16xf32> to vector<3x16x16xf32>
    %cst_39 = arith.constant 0.00102838024 : f32
    %137 = vector.broadcast %cst_39 : f32 to vector<3x16x16xf32>
    %138 = arith.mulf %137, %136 : vector<3x16x16xf32>
    %139 = vector.extract_strided_slice %135 {offsets = [0, 1, 0], sizes = [3, 16, 16], strides = [1, 1, 1]} : vector<3x26x16xf32> to vector<3x16x16xf32>
    %cst_40 = arith.constant 0.00759875868 : f32
    %140 = vector.broadcast %cst_40 : f32 to vector<3x16x16xf32>
    %141 = arith.mulf %140, %139 : vector<3x16x16xf32>
    %142 = arith.addf %138, %141 : vector<3x16x16xf32>
    %143 = vector.extract_strided_slice %135 {offsets = [0, 2, 0], sizes = [3, 16, 16], strides = [1, 1, 1]} : vector<3x26x16xf32> to vector<3x16x16xf32>
    %cst_41 = arith.constant 0.0360007733 : f32
    %144 = vector.broadcast %cst_41 : f32 to vector<3x16x16xf32>
    %145 = arith.mulf %144, %143 : vector<3x16x16xf32>
    %146 = arith.addf %142, %145 : vector<3x16x16xf32>
    %147 = vector.extract_strided_slice %135 {offsets = [0, 3, 0], sizes = [3, 16, 16], strides = [1, 1, 1]} : vector<3x26x16xf32> to vector<3x16x16xf32>
    %cst_42 = arith.constant 0.109360695 : f32
    %148 = vector.broadcast %cst_42 : f32 to vector<3x16x16xf32>
    %149 = arith.mulf %148, %147 : vector<3x16x16xf32>
    %150 = arith.addf %146, %149 : vector<3x16x16xf32>
    %151 = vector.extract_strided_slice %135 {offsets = [0, 4, 0], sizes = [3, 16, 16], strides = [1, 1, 1]} : vector<3x26x16xf32> to vector<3x16x16xf32>
    %cst_43 = arith.constant 0.213005543 : f32
    %152 = vector.broadcast %cst_43 : f32 to vector<3x16x16xf32>
    %153 = arith.mulf %152, %151 : vector<3x16x16xf32>
    %154 = arith.addf %150, %153 : vector<3x16x16xf32>
    %155 = vector.extract_strided_slice %135 {offsets = [0, 5, 0], sizes = [3, 16, 16], strides = [1, 1, 1]} : vector<3x26x16xf32> to vector<3x16x16xf32>
    %cst_44 = arith.constant 0.266011745 : f32
    %156 = vector.broadcast %cst_44 : f32 to vector<3x16x16xf32>
    %157 = arith.mulf %156, %155 : vector<3x16x16xf32>
    %158 = arith.addf %154, %157 : vector<3x16x16xf32>
    %159 = vector.extract_strided_slice %135 {offsets = [0, 6, 0], sizes = [3, 16, 16], strides = [1, 1, 1]} : vector<3x26x16xf32> to vector<3x16x16xf32>
    %cst_45 = arith.constant 0.213005543 : f32
    %160 = vector.broadcast %cst_45 : f32 to vector<3x16x16xf32>
    %161 = arith.mulf %160, %159 : vector<3x16x16xf32>
    %162 = arith.addf %158, %161 : vector<3x16x16xf32>
    %163 = vector.extract_strided_slice %135 {offsets = [0, 7, 0], sizes = [3, 16, 16], strides = [1, 1, 1]} : vector<3x26x16xf32> to vector<3x16x16xf32>
    %cst_46 = arith.constant 0.109360695 : f32
    %164 = vector.broadcast %cst_46 : f32 to vector<3x16x16xf32>
    %165 = arith.mulf %164, %163 : vector<3x16x16xf32>
    %166 = arith.addf %162, %165 : vector<3x16x16xf32>
    %167 = vector.extract_strided_slice %135 {offsets = [0, 8, 0], sizes = [3, 16, 16], strides = [1, 1, 1]} : vector<3x26x16xf32> to vector<3x16x16xf32>
    %cst_47 = arith.constant 0.0360007733 : f32
    %168 = vector.broadcast %cst_47 : f32 to vector<3x16x16xf32>
    %169 = arith.mulf %168, %167 : vector<3x16x16xf32>
    %170 = arith.addf %166, %169 : vector<3x16x16xf32>
    %171 = vector.extract_strided_slice %135 {offsets = [0, 9, 0], sizes = [3, 16, 16], strides = [1, 1, 1]} : vector<3x26x16xf32> to vector<3x16x16xf32>
    %cst_48 = arith.constant 0.00759875868 : f32
    %172 = vector.broadcast %cst_48 : f32 to vector<3x16x16xf32>
    %173 = arith.mulf %172, %171 : vector<3x16x16xf32>
    %174 = arith.addf %170, %173 : vector<3x16x16xf32>
    %175 = vector.extract_strided_slice %135 {offsets = [0, 10, 0], sizes = [3, 16, 16], strides = [1, 1, 1]} : vector<3x26x16xf32> to vector<3x16x16xf32>
    %cst_49 = arith.constant 0.00102838024 : f32
    %176 = vector.broadcast %cst_49 : f32 to vector<3x16x16xf32>
    %177 = arith.mulf %176, %175 : vector<3x16x16xf32>
    %178 = arith.addf %174, %177 : vector<3x16x16xf32>
    %179 = vector.extract_strided_slice %4 {offsets = [0, 0, 0], sizes = [3, 26, 16], strides = [1, 1, 1]} : vector<3x26x26xf32> to vector<3x26x16xf32>
    %cst_50 = arith.constant 0.00102838024 : f32
    %180 = vector.broadcast %cst_50 : f32 to vector<3x26x16xf32>
    %181 = arith.mulf %180, %179 : vector<3x26x16xf32>
    %182 = vector.extract_strided_slice %4 {offsets = [0, 0, 1], sizes = [3, 26, 16], strides = [1, 1, 1]} : vector<3x26x26xf32> to vector<3x26x16xf32>
    %cst_51 = arith.constant 0.00759875868 : f32
    %183 = vector.broadcast %cst_51 : f32 to vector<3x26x16xf32>
    %184 = arith.mulf %183, %182 : vector<3x26x16xf32>
    %185 = arith.addf %181, %184 : vector<3x26x16xf32>
    %186 = vector.extract_strided_slice %4 {offsets = [0, 0, 2], sizes = [3, 26, 16], strides = [1, 1, 1]} : vector<3x26x26xf32> to vector<3x26x16xf32>
    %cst_52 = arith.constant 0.0360007733 : f32
    %187 = vector.broadcast %cst_52 : f32 to vector<3x26x16xf32>
    %188 = arith.mulf %187, %186 : vector<3x26x16xf32>
    %189 = arith.addf %185, %188 : vector<3x26x16xf32>
    %190 = vector.extract_strided_slice %4 {offsets = [0, 0, 3], sizes = [3, 26, 16], strides = [1, 1, 1]} : vector<3x26x26xf32> to vector<3x26x16xf32>
    %cst_53 = arith.constant 0.109360695 : f32
    %191 = vector.broadcast %cst_53 : f32 to vector<3x26x16xf32>
    %192 = arith.mulf %191, %190 : vector<3x26x16xf32>
    %193 = arith.addf %189, %192 : vector<3x26x16xf32>
    %194 = vector.extract_strided_slice %4 {offsets = [0, 0, 4], sizes = [3, 26, 16], strides = [1, 1, 1]} : vector<3x26x26xf32> to vector<3x26x16xf32>
    %cst_54 = arith.constant 0.213005543 : f32
    %195 = vector.broadcast %cst_54 : f32 to vector<3x26x16xf32>
    %196 = arith.mulf %195, %194 : vector<3x26x16xf32>
    %197 = arith.addf %193, %196 : vector<3x26x16xf32>
    %198 = vector.extract_strided_slice %4 {offsets = [0, 0, 5], sizes = [3, 26, 16], strides = [1, 1, 1]} : vector<3x26x26xf32> to vector<3x26x16xf32>
    %cst_55 = arith.constant 0.266011745 : f32
    %199 = vector.broadcast %cst_55 : f32 to vector<3x26x16xf32>
    %200 = arith.mulf %199, %198 : vector<3x26x16xf32>
    %201 = arith.addf %197, %200 : vector<3x26x16xf32>
    %202 = vector.extract_strided_slice %4 {offsets = [0, 0, 6], sizes = [3, 26, 16], strides = [1, 1, 1]} : vector<3x26x26xf32> to vector<3x26x16xf32>
    %cst_56 = arith.constant 0.213005543 : f32
    %203 = vector.broadcast %cst_56 : f32 to vector<3x26x16xf32>
    %204 = arith.mulf %203, %202 : vector<3x26x16xf32>
    %205 = arith.addf %201, %204 : vector<3x26x16xf32>
    %206 = vector.extract_strided_slice %4 {offsets = [0, 0, 7], sizes = [3, 26, 16], strides = [1, 1, 1]} : vector<3x26x26xf32> to vector<3x26x16xf32>
    %cst_57 = arith.constant 0.109360695 : f32
    %207 = vector.broadcast %cst_57 : f32 to vector<3x26x16xf32>
    %208 = arith.mulf %207, %206 : vector<3x26x16xf32>
    %209 = arith.addf %205, %208 : vector<3x26x16xf32>
    %210 = vector.extract_strided_slice %4 {offsets = [0, 0, 8], sizes = [3, 26, 16], strides = [1, 1, 1]} : vector<3x26x26xf32> to vector<3x26x16xf32>
    %cst_58 = arith.constant 0.0360007733 : f32
    %211 = vector.broadcast %cst_58 : f32 to vector<3x26x16xf32>
    %212 = arith.mulf %211, %210 : vector<3x26x16xf32>
    %213 = arith.addf %209, %212 : vector<3x26x16xf32>
    %214 = vector.extract_strided_slice %4 {offsets = [0, 0, 9], sizes = [3, 26, 16], strides = [1, 1, 1]} : vector<3x26x26xf32> to vector<3x26x16xf32>
    %cst_59 = arith.constant 0.00759875868 : f32
    %215 = vector.broadcast %cst_59 : f32 to vector<3x26x16xf32>
    %216 = arith.mulf %215, %214 : vector<3x26x16xf32>
    %217 = arith.addf %213, %216 : vector<3x26x16xf32>
    %218 = vector.extract_strided_slice %4 {offsets = [0, 0, 10], sizes = [3, 26, 16], strides = [1, 1, 1]} : vector<3x26x26xf32> to vector<3x26x16xf32>
    %cst_60 = arith.constant 0.00102838024 : f32
    %219 = vector.broadcast %cst_60 : f32 to vector<3x26x16xf32>
    %220 = arith.mulf %219, %218 : vector<3x26x16xf32>
    %221 = arith.addf %217, %220 : vector<3x26x16xf32>
    %222 = vector.extract_strided_slice %221 {offsets = [0, 0, 0], sizes = [3, 16, 16], strides = [1, 1, 1]} : vector<3x26x16xf32> to vector<3x16x16xf32>
    %cst_61 = arith.constant 0.00102838024 : f32
    %223 = vector.broadcast %cst_61 : f32 to vector<3x16x16xf32>
    %224 = arith.mulf %223, %222 : vector<3x16x16xf32>
    %225 = vector.extract_strided_slice %221 {offsets = [0, 1, 0], sizes = [3, 16, 16], strides = [1, 1, 1]} : vector<3x26x16xf32> to vector<3x16x16xf32>
    %cst_62 = arith.constant 0.00759875868 : f32
    %226 = vector.broadcast %cst_62 : f32 to vector<3x16x16xf32>
    %227 = arith.mulf %226, %225 : vector<3x16x16xf32>
    %228 = arith.addf %224, %227 : vector<3x16x16xf32>
    %229 = vector.extract_strided_slice %221 {offsets = [0, 2, 0], sizes = [3, 16, 16], strides = [1, 1, 1]} : vector<3x26x16xf32> to vector<3x16x16xf32>
    %cst_63 = arith.constant 0.0360007733 : f32
    %230 = vector.broadcast %cst_63 : f32 to vector<3x16x16xf32>
    %231 = arith.mulf %230, %229 : vector<3x16x16xf32>
    %232 = arith.addf %228, %231 : vector<3x16x16xf32>
    %233 = vector.extract_strided_slice %221 {offsets = [0, 3, 0], sizes = [3, 16, 16], strides = [1, 1, 1]} : vector<3x26x16xf32> to vector<3x16x16xf32>
    %cst_64 = arith.constant 0.109360695 : f32
    %234 = vector.broadcast %cst_64 : f32 to vector<3x16x16xf32>
    %235 = arith.mulf %234, %233 : vector<3x16x16xf32>
    %236 = arith.addf %232, %235 : vector<3x16x16xf32>
    %237 = vector.extract_strided_slice %221 {offsets = [0, 4, 0], sizes = [3, 16, 16], strides = [1, 1, 1]} : vector<3x26x16xf32> to vector<3x16x16xf32>
    %cst_65 = arith.constant 0.213005543 : f32
    %238 = vector.broadcast %cst_65 : f32 to vector<3x16x16xf32>
    %239 = arith.mulf %238, %237 : vector<3x16x16xf32>
    %240 = arith.addf %236, %239 : vector<3x16x16xf32>
    %241 = vector.extract_strided_slice %221 {offsets = [0, 5, 0], sizes = [3, 16, 16], strides = [1, 1, 1]} : vector<3x26x16xf32> to vector<3x16x16xf32>
    %cst_66 = arith.constant 0.266011745 : f32
    %242 = vector.broadcast %cst_66 : f32 to vector<3x16x16xf32>
    %243 = arith.mulf %242, %241 : vector<3x16x16xf32>
    %244 = arith.addf %240, %243 : vector<3x16x16xf32>
    %245 = vector.extract_strided_slice %221 {offsets = [0, 6, 0], sizes = [3, 16, 16], strides = [1, 1, 1]} : vector<3x26x16xf32> to vector<3x16x16xf32>
    %cst_67 = arith.constant 0.213005543 : f32
    %246 = vector.broadcast %cst_67 : f32 to vector<3x16x16xf32>
    %247 = arith.mulf %246, %245 : vector<3x16x16xf32>
    %248 = arith.addf %244, %247 : vector<3x16x16xf32>
    %249 = vector.extract_strided_slice %221 {offsets = [0, 7, 0], sizes = [3, 16, 16], strides = [1, 1, 1]} : vector<3x26x16xf32> to vector<3x16x16xf32>
    %cst_68 = arith.constant 0.109360695 : f32
    %250 = vector.broadcast %cst_68 : f32 to vector<3x16x16xf32>
    %251 = arith.mulf %250, %249 : vector<3x16x16xf32>
    %252 = arith.addf %248, %251 : vector<3x16x16xf32>
    %253 = vector.extract_strided_slice %221 {offsets = [0, 8, 0], sizes = [3, 16, 16], strides = [1, 1, 1]} : vector<3x26x16xf32> to vector<3x16x16xf32>
    %cst_69 = arith.constant 0.0360007733 : f32
    %254 = vector.broadcast %cst_69 : f32 to vector<3x16x16xf32>
    %255 = arith.mulf %254, %253 : vector<3x16x16xf32>
    %256 = arith.addf %252, %255 : vector<3x16x16xf32>
    %257 = vector.extract_strided_slice %221 {offsets = [0, 9, 0], sizes = [3, 16, 16], strides = [1, 1, 1]} : vector<3x26x16xf32> to vector<3x16x16xf32>
    %cst_70 = arith.constant 0.00759875868 : f32
    %258 = vector.broadcast %cst_70 : f32 to vector<3x16x16xf32>
    %259 = arith.mulf %258, %257 : vector<3x16x16xf32>
    %260 = arith.addf %256, %259 : vector<3x16x16xf32>
    %261 = vector.extract_strided_slice %221 {offsets = [0, 10, 0], sizes = [3, 16, 16], strides = [1, 1, 1]} : vector<3x26x16xf32> to vector<3x16x16xf32>
    %cst_71 = arith.constant 0.00102838024 : f32
    %262 = vector.broadcast %cst_71 : f32 to vector<3x16x16xf32>
    %263 = arith.mulf %262, %261 : vector<3x16x16xf32>
    %264 = arith.addf %260, %263 : vector<3x16x16xf32>
    %265 = vector.extract_strided_slice %5 {offsets = [0, 0, 0], sizes = [3, 26, 16], strides = [1, 1, 1]} : vector<3x26x26xf32> to vector<3x26x16xf32>
    %cst_72 = arith.constant 0.00102838024 : f32
    %266 = vector.broadcast %cst_72 : f32 to vector<3x26x16xf32>
    %267 = arith.mulf %266, %265 : vector<3x26x16xf32>
    %268 = vector.extract_strided_slice %5 {offsets = [0, 0, 1], sizes = [3, 26, 16], strides = [1, 1, 1]} : vector<3x26x26xf32> to vector<3x26x16xf32>
    %cst_73 = arith.constant 0.00759875868 : f32
    %269 = vector.broadcast %cst_73 : f32 to vector<3x26x16xf32>
    %270 = arith.mulf %269, %268 : vector<3x26x16xf32>
    %271 = arith.addf %267, %270 : vector<3x26x16xf32>
    %272 = vector.extract_strided_slice %5 {offsets = [0, 0, 2], sizes = [3, 26, 16], strides = [1, 1, 1]} : vector<3x26x26xf32> to vector<3x26x16xf32>
    %cst_74 = arith.constant 0.0360007733 : f32
    %273 = vector.broadcast %cst_74 : f32 to vector<3x26x16xf32>
    %274 = arith.mulf %273, %272 : vector<3x26x16xf32>
    %275 = arith.addf %271, %274 : vector<3x26x16xf32>
    %276 = vector.extract_strided_slice %5 {offsets = [0, 0, 3], sizes = [3, 26, 16], strides = [1, 1, 1]} : vector<3x26x26xf32> to vector<3x26x16xf32>
    %cst_75 = arith.constant 0.109360695 : f32
    %277 = vector.broadcast %cst_75 : f32 to vector<3x26x16xf32>
    %278 = arith.mulf %277, %276 : vector<3x26x16xf32>
    %279 = arith.addf %275, %278 : vector<3x26x16xf32>
    %280 = vector.extract_strided_slice %5 {offsets = [0, 0, 4], sizes = [3, 26, 16], strides = [1, 1, 1]} : vector<3x26x26xf32> to vector<3x26x16xf32>
    %cst_76 = arith.constant 0.213005543 : f32
    %281 = vector.broadcast %cst_76 : f32 to vector<3x26x16xf32>
    %282 = arith.mulf %281, %280 : vector<3x26x16xf32>
    %283 = arith.addf %279, %282 : vector<3x26x16xf32>
    %284 = vector.extract_strided_slice %5 {offsets = [0, 0, 5], sizes = [3, 26, 16], strides = [1, 1, 1]} : vector<3x26x26xf32> to vector<3x26x16xf32>
    %cst_77 = arith.constant 0.266011745 : f32
    %285 = vector.broadcast %cst_77 : f32 to vector<3x26x16xf32>
    %286 = arith.mulf %285, %284 : vector<3x26x16xf32>
    %287 = arith.addf %283, %286 : vector<3x26x16xf32>
    %288 = vector.extract_strided_slice %5 {offsets = [0, 0, 6], sizes = [3, 26, 16], strides = [1, 1, 1]} : vector<3x26x26xf32> to vector<3x26x16xf32>
    %cst_78 = arith.constant 0.213005543 : f32
    %289 = vector.broadcast %cst_78 : f32 to vector<3x26x16xf32>
    %290 = arith.mulf %289, %288 : vector<3x26x16xf32>
    %291 = arith.addf %287, %290 : vector<3x26x16xf32>
    %292 = vector.extract_strided_slice %5 {offsets = [0, 0, 7], sizes = [3, 26, 16], strides = [1, 1, 1]} : vector<3x26x26xf32> to vector<3x26x16xf32>
    %cst_79 = arith.constant 0.109360695 : f32
    %293 = vector.broadcast %cst_79 : f32 to vector<3x26x16xf32>
    %294 = arith.mulf %293, %292 : vector<3x26x16xf32>
    %295 = arith.addf %291, %294 : vector<3x26x16xf32>
    %296 = vector.extract_strided_slice %5 {offsets = [0, 0, 8], sizes = [3, 26, 16], strides = [1, 1, 1]} : vector<3x26x26xf32> to vector<3x26x16xf32>
    %cst_80 = arith.constant 0.0360007733 : f32
    %297 = vector.broadcast %cst_80 : f32 to vector<3x26x16xf32>
    %298 = arith.mulf %297, %296 : vector<3x26x16xf32>
    %299 = arith.addf %295, %298 : vector<3x26x16xf32>
    %300 = vector.extract_strided_slice %5 {offsets = [0, 0, 9], sizes = [3, 26, 16], strides = [1, 1, 1]} : vector<3x26x26xf32> to vector<3x26x16xf32>
    %cst_81 = arith.constant 0.00759875868 : f32
    %301 = vector.broadcast %cst_81 : f32 to vector<3x26x16xf32>
    %302 = arith.mulf %301, %300 : vector<3x26x16xf32>
    %303 = arith.addf %299, %302 : vector<3x26x16xf32>
    %304 = vector.extract_strided_slice %5 {offsets = [0, 0, 10], sizes = [3, 26, 16], strides = [1, 1, 1]} : vector<3x26x26xf32> to vector<3x26x16xf32>
    %cst_82 = arith.constant 0.00102838024 : f32
    %305 = vector.broadcast %cst_82 : f32 to vector<3x26x16xf32>
    %306 = arith.mulf %305, %304 : vector<3x26x16xf32>
    %307 = arith.addf %303, %306 : vector<3x26x16xf32>
    %308 = vector.extract_strided_slice %307 {offsets = [0, 0, 0], sizes = [3, 16, 16], strides = [1, 1, 1]} : vector<3x26x16xf32> to vector<3x16x16xf32>
    %cst_83 = arith.constant 0.00102838024 : f32
    %309 = vector.broadcast %cst_83 : f32 to vector<3x16x16xf32>
    %310 = arith.mulf %309, %308 : vector<3x16x16xf32>
    %311 = vector.extract_strided_slice %307 {offsets = [0, 1, 0], sizes = [3, 16, 16], strides = [1, 1, 1]} : vector<3x26x16xf32> to vector<3x16x16xf32>
    %cst_84 = arith.constant 0.00759875868 : f32
    %312 = vector.broadcast %cst_84 : f32 to vector<3x16x16xf32>
    %313 = arith.mulf %312, %311 : vector<3x16x16xf32>
    %314 = arith.addf %310, %313 : vector<3x16x16xf32>
    %315 = vector.extract_strided_slice %307 {offsets = [0, 2, 0], sizes = [3, 16, 16], strides = [1, 1, 1]} : vector<3x26x16xf32> to vector<3x16x16xf32>
    %cst_85 = arith.constant 0.0360007733 : f32
    %316 = vector.broadcast %cst_85 : f32 to vector<3x16x16xf32>
    %317 = arith.mulf %316, %315 : vector<3x16x16xf32>
    %318 = arith.addf %314, %317 : vector<3x16x16xf32>
    %319 = vector.extract_strided_slice %307 {offsets = [0, 3, 0], sizes = [3, 16, 16], strides = [1, 1, 1]} : vector<3x26x16xf32> to vector<3x16x16xf32>
    %cst_86 = arith.constant 0.109360695 : f32
    %320 = vector.broadcast %cst_86 : f32 to vector<3x16x16xf32>
    %321 = arith.mulf %320, %319 : vector<3x16x16xf32>
    %322 = arith.addf %318, %321 : vector<3x16x16xf32>
    %323 = vector.extract_strided_slice %307 {offsets = [0, 4, 0], sizes = [3, 16, 16], strides = [1, 1, 1]} : vector<3x26x16xf32> to vector<3x16x16xf32>
    %cst_87 = arith.constant 0.213005543 : f32
    %324 = vector.broadcast %cst_87 : f32 to vector<3x16x16xf32>
    %325 = arith.mulf %324, %323 : vector<3x16x16xf32>
    %326 = arith.addf %322, %325 : vector<3x16x16xf32>
    %327 = vector.extract_strided_slice %307 {offsets = [0, 5, 0], sizes = [3, 16, 16], strides = [1, 1, 1]} : vector<3x26x16xf32> to vector<3x16x16xf32>
    %cst_88 = arith.constant 0.266011745 : f32
    %328 = vector.broadcast %cst_88 : f32 to vector<3x16x16xf32>
    %329 = arith.mulf %328, %327 : vector<3x16x16xf32>
    %330 = arith.addf %326, %329 : vector<3x16x16xf32>
    %331 = vector.extract_strided_slice %307 {offsets = [0, 6, 0], sizes = [3, 16, 16], strides = [1, 1, 1]} : vector<3x26x16xf32> to vector<3x16x16xf32>
    %cst_89 = arith.constant 0.213005543 : f32
    %332 = vector.broadcast %cst_89 : f32 to vector<3x16x16xf32>
    %333 = arith.mulf %332, %331 : vector<3x16x16xf32>
    %334 = arith.addf %330, %333 : vector<3x16x16xf32>
    %335 = vector.extract_strided_slice %307 {offsets = [0, 7, 0], sizes = [3, 16, 16], strides = [1, 1, 1]} : vector<3x26x16xf32> to vector<3x16x16xf32>
    %cst_90 = arith.constant 0.109360695 : f32
    %336 = vector.broadcast %cst_90 : f32 to vector<3x16x16xf32>
    %337 = arith.mulf %336, %335 : vector<3x16x16xf32>
    %338 = arith.addf %334, %337 : vector<3x16x16xf32>
    %339 = vector.extract_strided_slice %307 {offsets = [0, 8, 0], sizes = [3, 16, 16], strides = [1, 1, 1]} : vector<3x26x16xf32> to vector<3x16x16xf32>
    %cst_91 = arith.constant 0.0360007733 : f32
    %340 = vector.broadcast %cst_91 : f32 to vector<3x16x16xf32>
    %341 = arith.mulf %340, %339 : vector<3x16x16xf32>
    %342 = arith.addf %338, %341 : vector<3x16x16xf32>
    %343 = vector.extract_strided_slice %307 {offsets = [0, 9, 0], sizes = [3, 16, 16], strides = [1, 1, 1]} : vector<3x26x16xf32> to vector<3x16x16xf32>
    %cst_92 = arith.constant 0.00759875868 : f32
    %344 = vector.broadcast %cst_92 : f32 to vector<3x16x16xf32>
    %345 = arith.mulf %344, %343 : vector<3x16x16xf32>
    %346 = arith.addf %342, %345 : vector<3x16x16xf32>
    %347 = vector.extract_strided_slice %307 {offsets = [0, 10, 0], sizes = [3, 16, 16], strides = [1, 1, 1]} : vector<3x26x16xf32> to vector<3x16x16xf32>
    %cst_93 = arith.constant 0.00102838024 : f32
    %348 = vector.broadcast %cst_93 : f32 to vector<3x16x16xf32>
    %349 = arith.mulf %348, %347 : vector<3x16x16xf32>
    %350 = arith.addf %346, %349 : vector<3x16x16xf32>
    %351 = vector.extract_strided_slice %6 {offsets = [0, 0, 0], sizes = [3, 26, 16], strides = [1, 1, 1]} : vector<3x26x26xf32> to vector<3x26x16xf32>
    %cst_94 = arith.constant 0.00102838024 : f32
    %352 = vector.broadcast %cst_94 : f32 to vector<3x26x16xf32>
    %353 = arith.mulf %352, %351 : vector<3x26x16xf32>
    %354 = vector.extract_strided_slice %6 {offsets = [0, 0, 1], sizes = [3, 26, 16], strides = [1, 1, 1]} : vector<3x26x26xf32> to vector<3x26x16xf32>
    %cst_95 = arith.constant 0.00759875868 : f32
    %355 = vector.broadcast %cst_95 : f32 to vector<3x26x16xf32>
    %356 = arith.mulf %355, %354 : vector<3x26x16xf32>
    %357 = arith.addf %353, %356 : vector<3x26x16xf32>
    %358 = vector.extract_strided_slice %6 {offsets = [0, 0, 2], sizes = [3, 26, 16], strides = [1, 1, 1]} : vector<3x26x26xf32> to vector<3x26x16xf32>
    %cst_96 = arith.constant 0.0360007733 : f32
    %359 = vector.broadcast %cst_96 : f32 to vector<3x26x16xf32>
    %360 = arith.mulf %359, %358 : vector<3x26x16xf32>
    %361 = arith.addf %357, %360 : vector<3x26x16xf32>
    %362 = vector.extract_strided_slice %6 {offsets = [0, 0, 3], sizes = [3, 26, 16], strides = [1, 1, 1]} : vector<3x26x26xf32> to vector<3x26x16xf32>
    %cst_97 = arith.constant 0.109360695 : f32
    %363 = vector.broadcast %cst_97 : f32 to vector<3x26x16xf32>
    %364 = arith.mulf %363, %362 : vector<3x26x16xf32>
    %365 = arith.addf %361, %364 : vector<3x26x16xf32>
    %366 = vector.extract_strided_slice %6 {offsets = [0, 0, 4], sizes = [3, 26, 16], strides = [1, 1, 1]} : vector<3x26x26xf32> to vector<3x26x16xf32>
    %cst_98 = arith.constant 0.213005543 : f32
    %367 = vector.broadcast %cst_98 : f32 to vector<3x26x16xf32>
    %368 = arith.mulf %367, %366 : vector<3x26x16xf32>
    %369 = arith.addf %365, %368 : vector<3x26x16xf32>
    %370 = vector.extract_strided_slice %6 {offsets = [0, 0, 5], sizes = [3, 26, 16], strides = [1, 1, 1]} : vector<3x26x26xf32> to vector<3x26x16xf32>
    %cst_99 = arith.constant 0.266011745 : f32
    %371 = vector.broadcast %cst_99 : f32 to vector<3x26x16xf32>
    %372 = arith.mulf %371, %370 : vector<3x26x16xf32>
    %373 = arith.addf %369, %372 : vector<3x26x16xf32>
    %374 = vector.extract_strided_slice %6 {offsets = [0, 0, 6], sizes = [3, 26, 16], strides = [1, 1, 1]} : vector<3x26x26xf32> to vector<3x26x16xf32>
    %cst_100 = arith.constant 0.213005543 : f32
    %375 = vector.broadcast %cst_100 : f32 to vector<3x26x16xf32>
    %376 = arith.mulf %375, %374 : vector<3x26x16xf32>
    %377 = arith.addf %373, %376 : vector<3x26x16xf32>
    %378 = vector.extract_strided_slice %6 {offsets = [0, 0, 7], sizes = [3, 26, 16], strides = [1, 1, 1]} : vector<3x26x26xf32> to vector<3x26x16xf32>
    %cst_101 = arith.constant 0.109360695 : f32
    %379 = vector.broadcast %cst_101 : f32 to vector<3x26x16xf32>
    %380 = arith.mulf %379, %378 : vector<3x26x16xf32>
    %381 = arith.addf %377, %380 : vector<3x26x16xf32>
    %382 = vector.extract_strided_slice %6 {offsets = [0, 0, 8], sizes = [3, 26, 16], strides = [1, 1, 1]} : vector<3x26x26xf32> to vector<3x26x16xf32>
    %cst_102 = arith.constant 0.0360007733 : f32
    %383 = vector.broadcast %cst_102 : f32 to vector<3x26x16xf32>
    %384 = arith.mulf %383, %382 : vector<3x26x16xf32>
    %385 = arith.addf %381, %384 : vector<3x26x16xf32>
    %386 = vector.extract_strided_slice %6 {offsets = [0, 0, 9], sizes = [3, 26, 16], strides = [1, 1, 1]} : vector<3x26x26xf32> to vector<3x26x16xf32>
    %cst_103 = arith.constant 0.00759875868 : f32
    %387 = vector.broadcast %cst_103 : f32 to vector<3x26x16xf32>
    %388 = arith.mulf %387, %386 : vector<3x26x16xf32>
    %389 = arith.addf %385, %388 : vector<3x26x16xf32>
    %390 = vector.extract_strided_slice %6 {offsets = [0, 0, 10], sizes = [3, 26, 16], strides = [1, 1, 1]} : vector<3x26x26xf32> to vector<3x26x16xf32>
    %cst_104 = arith.constant 0.00102838024 : f32
    %391 = vector.broadcast %cst_104 : f32 to vector<3x26x16xf32>
    %392 = arith.mulf %391, %390 : vector<3x26x16xf32>
    %393 = arith.addf %389, %392 : vector<3x26x16xf32>
    %394 = vector.extract_strided_slice %393 {offsets = [0, 0, 0], sizes = [3, 16, 16], strides = [1, 1, 1]} : vector<3x26x16xf32> to vector<3x16x16xf32>
    %cst_105 = arith.constant 0.00102838024 : f32
    %395 = vector.broadcast %cst_105 : f32 to vector<3x16x16xf32>
    %396 = arith.mulf %395, %394 : vector<3x16x16xf32>
    %397 = vector.extract_strided_slice %393 {offsets = [0, 1, 0], sizes = [3, 16, 16], strides = [1, 1, 1]} : vector<3x26x16xf32> to vector<3x16x16xf32>
    %cst_106 = arith.constant 0.00759875868 : f32
    %398 = vector.broadcast %cst_106 : f32 to vector<3x16x16xf32>
    %399 = arith.mulf %398, %397 : vector<3x16x16xf32>
    %400 = arith.addf %396, %399 : vector<3x16x16xf32>
    %401 = vector.extract_strided_slice %393 {offsets = [0, 2, 0], sizes = [3, 16, 16], strides = [1, 1, 1]} : vector<3x26x16xf32> to vector<3x16x16xf32>
    %cst_107 = arith.constant 0.0360007733 : f32
    %402 = vector.broadcast %cst_107 : f32 to vector<3x16x16xf32>
    %403 = arith.mulf %402, %401 : vector<3x16x16xf32>
    %404 = arith.addf %400, %403 : vector<3x16x16xf32>
    %405 = vector.extract_strided_slice %393 {offsets = [0, 3, 0], sizes = [3, 16, 16], strides = [1, 1, 1]} : vector<3x26x16xf32> to vector<3x16x16xf32>
    %cst_108 = arith.constant 0.109360695 : f32
    %406 = vector.broadcast %cst_108 : f32 to vector<3x16x16xf32>
    %407 = arith.mulf %406, %405 : vector<3x16x16xf32>
    %408 = arith.addf %404, %407 : vector<3x16x16xf32>
    %409 = vector.extract_strided_slice %393 {offsets = [0, 4, 0], sizes = [3, 16, 16], strides = [1, 1, 1]} : vector<3x26x16xf32> to vector<3x16x16xf32>
    %cst_109 = arith.constant 0.213005543 : f32
    %410 = vector.broadcast %cst_109 : f32 to vector<3x16x16xf32>
    %411 = arith.mulf %410, %409 : vector<3x16x16xf32>
    %412 = arith.addf %408, %411 : vector<3x16x16xf32>
    %413 = vector.extract_strided_slice %393 {offsets = [0, 5, 0], sizes = [3, 16, 16], strides = [1, 1, 1]} : vector<3x26x16xf32> to vector<3x16x16xf32>
    %cst_110 = arith.constant 0.266011745 : f32
    %414 = vector.broadcast %cst_110 : f32 to vector<3x16x16xf32>
    %415 = arith.mulf %414, %413 : vector<3x16x16xf32>
    %416 = arith.addf %412, %415 : vector<3x16x16xf32>
    %417 = vector.extract_strided_slice %393 {offsets = [0, 6, 0], sizes = [3, 16, 16], strides = [1, 1, 1]} : vector<3x26x16xf32> to vector<3x16x16xf32>
    %cst_111 = arith.constant 0.213005543 : f32
    %418 = vector.broadcast %cst_111 : f32 to vector<3x16x16xf32>
    %419 = arith.mulf %418, %417 : vector<3x16x16xf32>
    %420 = arith.addf %416, %419 : vector<3x16x16xf32>
    %421 = vector.extract_strided_slice %393 {offsets = [0, 7, 0], sizes = [3, 16, 16], strides = [1, 1, 1]} : vector<3x26x16xf32> to vector<3x16x16xf32>
    %cst_112 = arith.constant 0.109360695 : f32
    %422 = vector.broadcast %cst_112 : f32 to vector<3x16x16xf32>
    %423 = arith.mulf %422, %421 : vector<3x16x16xf32>
    %424 = arith.addf %420, %423 : vector<3x16x16xf32>
    %425 = vector.extract_strided_slice %393 {offsets = [0, 8, 0], sizes = [3, 16, 16], strides = [1, 1, 1]} : vector<3x26x16xf32> to vector<3x16x16xf32>
    %cst_113 = arith.constant 0.0360007733 : f32
    %426 = vector.broadcast %cst_113 : f32 to vector<3x16x16xf32>
    %427 = arith.mulf %426, %425 : vector<3x16x16xf32>
    %428 = arith.addf %424, %427 : vector<3x16x16xf32>
    %429 = vector.extract_strided_slice %393 {offsets = [0, 9, 0], sizes = [3, 16, 16], strides = [1, 1, 1]} : vector<3x26x16xf32> to vector<3x16x16xf32>
    %cst_114 = arith.constant 0.00759875868 : f32
    %430 = vector.broadcast %cst_114 : f32 to vector<3x16x16xf32>
    %431 = arith.mulf %430, %429 : vector<3x16x16xf32>
    %432 = arith.addf %428, %431 : vector<3x16x16xf32>
    %433 = vector.extract_strided_slice %393 {offsets = [0, 10, 0], sizes = [3, 16, 16], strides = [1, 1, 1]} : vector<3x26x16xf32> to vector<3x16x16xf32>
    %cst_115 = arith.constant 0.00102838024 : f32
    %434 = vector.broadcast %cst_115 : f32 to vector<3x16x16xf32>
    %435 = arith.mulf %434, %433 : vector<3x16x16xf32>
    %436 = arith.addf %432, %435 : vector<3x16x16xf32>
    %437 = arith.mulf %92, %92 : vector<3x16x16xf32>
    %438 = arith.mulf %178, %178 : vector<3x16x16xf32>
    %439 = arith.mulf %92, %178 : vector<3x16x16xf32>
    %440 = arith.subf %264, %437 : vector<3x16x16xf32>
    %441 = arith.subf %350, %438 : vector<3x16x16xf32>
    %442 = arith.subf %436, %439 : vector<3x16x16xf32>
    %cst_116 = arith.constant 2.000000e+00 : f32
    %443 = vector.broadcast %cst_116 : f32 to vector<3x16x16xf32>
    %444 = arith.mulf %443, %439 : vector<3x16x16xf32>
    %cst_117 = arith.constant 9.99999974E-5 : f32
    %445 = vector.broadcast %cst_117 : f32 to vector<3x16x16xf32>
    %446 = arith.addf %444, %445 : vector<3x16x16xf32>
    %cst_118 = arith.constant 2.000000e+00 : f32
    %447 = vector.broadcast %cst_118 : f32 to vector<3x16x16xf32>
    %448 = arith.mulf %447, %442 : vector<3x16x16xf32>
    %cst_119 = arith.constant 8.99999984E-4 : f32
    %449 = vector.broadcast %cst_119 : f32 to vector<3x16x16xf32>
    %450 = arith.addf %448, %449 : vector<3x16x16xf32>
    %451 = arith.mulf %446, %450 : vector<3x16x16xf32>
    %452 = arith.addf %437, %438 : vector<3x16x16xf32>
    %cst_120 = arith.constant 9.99999974E-5 : f32
    %453 = vector.broadcast %cst_120 : f32 to vector<3x16x16xf32>
    %454 = arith.addf %452, %453 : vector<3x16x16xf32>
    %455 = arith.addf %440, %441 : vector<3x16x16xf32>
    %cst_121 = arith.constant 8.99999984E-4 : f32
    %456 = vector.broadcast %cst_121 : f32 to vector<3x16x16xf32>
    %457 = arith.addf %455, %456 : vector<3x16x16xf32>
    %458 = arith.mulf %454, %457 : vector<3x16x16xf32>
    %459 = arith.divf %451, %458 : vector<3x16x16xf32>
    %460 = vector.shape_cast %459 : vector<3x16x16xf32> to vector<1x3x16x16xf32>
    %cst_122 = arith.constant dense<0.000000e+00> : vector<1xf32>
    %461 = vector.multi_reduction <add>, %460, %cst_122 [1, 2, 3] : vector<1x3x16x16xf32> to vector<1xf32>
    %462 = vector.shape_cast %461 : vector<1xf32> to vector<1x1x1x1xf32>
    %463 = vector.extract %462[0, 0, 0, 0] : f32 from vector<1x1x1x1xf32>
    %464 = vector.broadcast %463 : f32 to vector<1x1x1xf32>
    %c0_123 = arith.constant 0 : index
    %c0_124 = arith.constant 0 : index
    %c0_125 = arith.constant 0 : index
    %465 = vector.load %arg3[%c0_123, %c0_124, %c0_125] : memref<1x1x1xf32, #tpu.memory_space<vmem>>, vector<1x1x1xf32>
    tpu.vector_store %arg3[%c0_123, %c0_124, %c0_125], %464 {strides = array<i32>} : memref<1x1x1xf32, #tpu.memory_space<vmem>>, vector<1x1x1xf32>,
    return
  }
  func.func @transform_0(%arg0: i32) -> (i32, i32, i32, i32) {
    %c0_i32 = arith.constant 0 : i32
    %c0_i32_0 = arith.constant 0 : i32
    %c0_i32_1 = arith.constant 0 : i32
    %c0_i32_2 = arith.constant 0 : i32
    return %arg0, %c0_i32, %c0_i32_0, %c0_i32_1 : i32, i32, i32, i32
  }
  func.func @transform_1(%arg0: i32) -> (i32, i32, i32, i32) {
    %c0_i32 = arith.constant 0 : i32
    %c0_i32_0 = arith.constant 0 : i32
    %c0_i32_1 = arith.constant 0 : i32
    %c0_i32_2 = arith.constant 0 : i32
    return %arg0, %c0_i32, %c0_i32_0, %c0_i32_1 : i32, i32, i32, i32
  }
  func.func @transform_2(%arg0: i32) -> (i32, i32, i32) {
    %c0_i32 = arith.constant 0 : i32
    %c0_i32_0 = arith.constant 0 : i32
    %c0_i32_1 = arith.constant 0 : i32
    return %arg0, %c0_i32, %c0_i32_0 : i32, i32, i32
  }
}

</mosaic_0001>

<llo_original>
// kernel: tpu_custom_call.1
$region0: #{tpu_custom_call.1}
  #allocation0 [shape = 'u32[]', space=smem, size = 0x4, offset = 0x4, fixed_abs, tag = 'smem constant byte address 0x4 - core index']
  #allocation1 [shape = 'u32[144,128]{1,0:T(1,128)}', space=vmem, size = 0x12000, scoped, tag = 'internal scratch']
  %s0 = inlined_call_operand.vmem [shape: f32[2,3,26,26], index: 0, kind: input, shape index: {}]
  %s1 = inlined_call_operand.vmem [shape: f32[2,3,26,26], index: 1, kind: input, shape index: {}]
  %s2 = inlined_call_operand.vmem [shape: f32[2,1,1], index: 2, kind: output, shape index: {}]
  %s3 = sld [smem:[#allocation0]]
  $region41: #{tpu_custom_call.1} parent=0
    _
  %s5 = ssub.s32 1, %s3
  %s6 = scalar_select 0, %s5, %s3
  loop: start=0, step=1, limit=4
  $region2: #{tpu_custom_call.1} parent=0 // loop_pre_header
    _
  $region3: #{tpu_custom_call.1} parent=0 // loop_header
    %s8 = sphi 0, %s12
    %p9 = scmp.ge.s32.totalorder %s8, 4
    %s18 = sphi 0, %s20
    %s21 = sphi 0, %s18
    %s22 = sphi 0, %s21
    %s38 = sphi 0, %s22
    %s44 = sphi 0, %s46
    %s47 = sphi 0, %s44
    %s48 = sphi 0, %s47
    %s64 = sphi 0, %s48
    %s70 = sphi 0, %s72
    %s73 = sphi 0, %s70
    %s74 = sphi 0, %s73
    %s90 = sphi 0, %s74
  $region4: #{tpu_custom_call.1} parent=0 // loop_header_branch
    %11 = sbr.rel (%p9) target = $region8
  $region5: #{tpu_custom_call.1} parent=0 // loop_body
    %s13 = ssub.s32 %s8, 1
    %s14 = ssub.s32 %s8, 2
    %s15 = sadd.s32 %s8, 1
    %s16 = ssub.s32 %s8, %s15
    %p17 = scmp.eq.s32.totalorder %s16, 0
    %s19 = sadd.s32 %s18, 1
    %s20 = scalar_select %p17, %s18, %s19
    %p23 = pneg %p17
    %p24 = scmp.eq.s32.totalorder %s8, 1
    %p25 = por %p23, %p24
    %p26 = scmp.ne.s32.totalorder %s18, %s21
    %p27 = scmp.eq.s32.totalorder %s8, 0
    %p28 = por %p26, %p27
    %p29 = scmp.ne.s32.totalorder %s18, %s21
    %p30 = scmp.eq.s32.totalorder %s13, 1
    %p31 = por %p29, %p30
    %p32 = scmp.ne.s32.totalorder %s21, %s22
    %p33 = scmp.eq.s32.totalorder %s13, 0
    %p34 = por %p32, %p33
    %p35 = scmp.ne.s32.totalorder %s21, %s22
    %p36 = scmp.eq.s32.totalorder %s14, 1
    %p37 = por %p35, %p36
    %p39 = scmp.ne.s32.totalorder %s22, %s38
    %p40 = scmp.eq.s32.totalorder %s14, 0
    %p41 = por %p39, %p40
    %s42 = ssub.s32 %s8, %s15
    %p43 = scmp.eq.s32.totalorder %s42, 0
    %s45 = sadd.s32 %s44, 1
    %s46 = scalar_select %p43, %s44, %s45
    %p49 = pneg %p43
    %p50 = scmp.eq.s32.totalorder %s8, 1
    %p51 = por %p49, %p50
    %p52 = scmp.ne.s32.totalorder %s44, %s47
    %p53 = scmp.eq.s32.totalorder %s8, 0
    %p54 = por %p52, %p53
    %p55 = scmp.ne.s32.totalorder %s44, %s47
    %p56 = scmp.eq.s32.totalorder %s13, 1
    %p57 = por %p55, %p56
    %p58 = scmp.ne.s32.totalorder %s47, %s48
    %p59 = scmp.eq.s32.totalorder %s13, 0
    %p60 = por %p58, %p59
    %p61 = scmp.ne.s32.totalorder %s47, %s48
    %p62 = scmp.eq.s32.totalorder %s14, 1
    %p63 = por %p61, %p62
    %p65 = scmp.ne.s32.totalorder %s48, %s64
    %p66 = scmp.eq.s32.totalorder %s14, 0
    %p67 = por %p65, %p66
    %s68 = ssub.s32 %s8, %s15
    %p69 = scmp.eq.s32.totalorder %s68, 0
    %s71 = sadd.s32 %s70, 1
    %s72 = scalar_select %p69, %s70, %s71
    %p75 = pneg %p69
    %p76 = scmp.eq.s32.totalorder %s8, 1
    %p77 = por %p75, %p76
    %p78 = scmp.ne.s32.totalorder %s70, %s73
    %p79 = scmp.eq.s32.totalorder %s8, 0
    %p80 = por %p78, %p79
    %p81 = scmp.ne.s32.totalorder %s70, %s73
    %p82 = scmp.eq.s32.totalorder %s13, 1
    %p83 = por %p81, %p82
    %p84 = scmp.ne.s32.totalorder %s73, %s74
    %p85 = scmp.eq.s32.totalorder %s13, 0
    %p86 = por %p84, %p85
    %p87 = scmp.ne.s32.totalorder %s73, %s74
    %p88 = scmp.eq.s32.totalorder %s14, 1
    %p89 = por %p87, %p88
    %p91 = scmp.ne.s32.totalorder %s74, %s90
    %p92 = scmp.eq.s32.totalorder %s14, 0
    %p93 = por %p91, %p92
    %p94 = scmp.le.s32.totalorder 1, %s8
    %p95 = scmp.lt.s32.totalorder %s8, 3
    %p96 = pnand %p94, %p95
    %p97 = pneg %p96
    // Predicated region
    $region9: #{tpu_custom_call.1} parent=5 // pred_check
      _
    $region10: #{tpu_custom_call.1} parent=5 // pred_check_branch
      %99 = sbr.rel (%p96) target = $region12
    $region11: #{tpu_custom_call.1} parent=5 // pred_region
      %s100 = ssub.s32 %s8, 1
    $region12: #{tpu_custom_call.1} parent=5 // pred_fallthru
      _
    %p101 = scmp.lt.s32.totalorder %s8, 2
    // Predicated region
    $region13: #{tpu_custom_call.1} parent=5 // pred_check
      %p102 = pneg %p101
    $region14: #{tpu_custom_call.1} parent=5 // pred_check_branch
      %104 = sbr.rel (%p102) target = $region16
    $region15: #{tpu_custom_call.1} parent=5 // pred_region
      // Predicated region
      $region17: #{tpu_custom_call.1} parent=15 // pred_check
        %p105 = pneg %p28
      $region18: #{tpu_custom_call.1} parent=15 // pred_check_branch
        %107 = sbr.rel (%p105) target = $region20
      $region19: #{tpu_custom_call.1} parent=15 // pred_region
        %p108 = scmp.lt.s32.totalorder %s8, 1
        %s109 = scalar_select %p108, %s8, 1
        %s110 = smul.addr %s109, 12
        %s111 = smul.addr %s110, 8
        %s112 = scalar_lea.vmem %s0, %s111
      $region20: #{tpu_custom_call.1} parent=15 // pred_fallthru
        _
      // Predicated region
      $region21: #{tpu_custom_call.1} parent=15 // pred_check
        %p113 = pneg %p54
      $region22: #{tpu_custom_call.1} parent=15 // pred_check_branch
        %115 = sbr.rel (%p113) target = $region24
      $region23: #{tpu_custom_call.1} parent=15 // pred_region
        %p116 = scmp.lt.s32.totalorder %s8, 1
        %s117 = scalar_select %p116, %s8, 1
        %s118 = smul.addr %s117, 12
        %s119 = smul.addr %s118, 8
        %s120 = scalar_lea.vmem %s1, %s119
      $region24: #{tpu_custom_call.1} parent=15 // pred_fallthru
        _
    $region16: #{tpu_custom_call.1} parent=5 // pred_fallthru
      _
    %p121 = scmp.le.s32.totalorder 1, %s8
    %p122 = scmp.lt.s32.totalorder %s8, 3
    %p123 = pnand %p121, %p122
    %p124 = pneg %p123
    // Predicated region
    $region25: #{tpu_custom_call.1} parent=5 // pred_check
      _
    $region26: #{tpu_custom_call.1} parent=5 // pred_check_branch
      %126 = sbr.rel (%p123) target = $region28
    $region27: #{tpu_custom_call.1} parent=5 // pred_region
      %s127 = ssub.s32 %s8, 1
      %p128 = scmp.lt.s32.totalorder %s13, 1
      %s129 = scalar_select %p128, %s13, 1
      %s130 = smul.addr %s129, 12
      %s131 = smul.addr %s130, 8
      %s132 = scalar_lea.vmem %s0, %s131
      %p133 = pneg %p34
      %p134 = pneg %p31
      %p135 = scmp.lt.s32.totalorder %s13, 1
      %s136 = scalar_select %p135, %s13, 1
      %s137 = smul.addr %s136, 12
      %s138 = smul.addr %s137, 8
      %s139 = scalar_lea.vmem %s1, %s138
      %p140 = pneg %p60
      %p141 = pneg %p57
      %p142 = pneg %p86
      %p143 = pneg %p83
      %p144 = scmp.lt.s32.totalorder %s13, 1
      %s145 = scalar_select %p144, %s13, 1
      %s146 = scalar_lea.vmem %s2, %s145
      %p147 = scmp.lt.s32.totalorder %s13, 1
      %s148 = scalar_select %p147, %s13, 1
      %s149 = smul.addr %s148, 12
      %s150 = smul.addr %s149, 8
      %s151 = scalar_lea.vmem %s0, %s150
      %p152 = scmp.lt.s32.totalorder %s13, 1
      %s153 = scalar_select %p152, %s13, 1
      %s154 = smul.addr %s153, 12
      %s155 = smul.addr %s154, 8
      %s156 = scalar_lea.vmem %s1, %s155
      %p157 = scmp.lt.s32.totalorder %s13, 1
      %s158 = scalar_select %p157, %s13, 1
      %s159 = scalar_lea.vmem %s2, %s158
      %v160 = vld [vmem:[%s151] sm:$0xff]
      %v161 = vld [vmem:[%s151 + $0x8] sm:$0xff]
      %v162 = vld [vmem:[%s151 + $0x10] sm:$0xff]
      %v163 = vld [vmem:[%s151 + $0x18] sm:$0x3]
      %v164 = vld [vmem:[%s151 + $0x20] sm:$0xff]
      %v165 = vld [vmem:[%s151 + $0x28] sm:$0xff]
      %v166 = vld [vmem:[%s151 + $0x30] sm:$0xff]
      %v167 = vld [vmem:[%s151 + $0x38] sm:$0x3]
      %v168 = vld [vmem:[%s151 + $0x40] sm:$0xff]
      %v169 = vld [vmem:[%s151 + $0x48] sm:$0xff]
      %v170 = vld [vmem:[%s151 + $0x50] sm:$0xff]
      %v171 = vld [vmem:[%s151 + $0x58] sm:$0x3]
      %v172 = vld [vmem:[%s156] sm:$0xff]
      %v173 = vld [vmem:[%s156 + $0x8] sm:$0xff]
      %v174 = vld [vmem:[%s156 + $0x10] sm:$0xff]
      %v175 = vld [vmem:[%s156 + $0x18] sm:$0x3]
      %v176 = vld [vmem:[%s156 + $0x20] sm:$0xff]
      %v177 = vld [vmem:[%s156 + $0x28] sm:$0xff]
      %v178 = vld [vmem:[%s156 + $0x30] sm:$0xff]
      %v179 = vld [vmem:[%s156 + $0x38] sm:$0x3]
      %v180 = vld [vmem:[%s156 + $0x40] sm:$0xff]
      %v181 = vld [vmem:[%s156 + $0x48] sm:$0xff]
      %v182 = vld [vmem:[%s156 + $0x50] sm:$0xff]
      %v183 = vld [vmem:[%s156 + $0x58] sm:$0x3]
      %v184 = vmul.f32 %v160, %v160
      %v185 = vmul.f32 %v161, %v161
      %v186 = vmul.f32 %v162, %v162
      %v187 = vmul.f32 %v163, %v163
      %v188 = vmul.f32 %v164, %v164
      %v189 = vmul.f32 %v165, %v165
      %v190 = vmul.f32 %v166, %v166
      %v191 = vmul.f32 %v167, %v167
      %v192 = vmul.f32 %v168, %v168
      %v193 = vmul.f32 %v169, %v169
      %v194 = vmul.f32 %v170, %v170
      %v195 = vmul.f32 %v171, %v171
      %v196 = vmul.f32 %v172, %v172
      %v197 = vmul.f32 %v173, %v173
      %v198 = vmul.f32 %v174, %v174
      %v199 = vmul.f32 %v175, %v175
      %v200 = vmul.f32 %v176, %v176
      %v201 = vmul.f32 %v177, %v177
      %v202 = vmul.f32 %v178, %v178
      %v203 = vmul.f32 %v179, %v179
      %v204 = vmul.f32 %v180, %v180
      %v205 = vmul.f32 %v181, %v181
      %v206 = vmul.f32 %v182, %v182
      %v207 = vmul.f32 %v183, %v183
      %v208 = vmul.f32 %v160, %v172
      %v209 = vmul.f32 %v161, %v173
      %v210 = vmul.f32 %v162, %v174
      %v211 = vmul.f32 %v163, %v175
      %v212 = vmul.f32 %v164, %v176
      %v213 = vmul.f32 %v165, %v177
      %v214 = vmul.f32 %v166, %v178
      %v215 = vmul.f32 %v167, %v179
      %v216 = vmul.f32 %v168, %v180
      %v217 = vmul.f32 %v169, %v181
      %v218 = vmul.f32 %v170, %v182
      %v219 = vmul.f32 %v171, %v183
      %v220 = vmul.f32 %v160, 0.0010283802
      %v221 = vmul.f32 %v161, 0.0010283802
      %v222 = vmul.f32 %v162, 0.0010283802
      %v223 = vmul.f32 %v163, 0.0010283802
      %v224 = vmul.f32 %v164, 0.0010283802
      %v225 = vmul.f32 %v165, 0.0010283802
      %v226 = vmul.f32 %v166, 0.0010283802
      %v227 = vmul.f32 %v167, 0.0010283802
      %v228 = vmul.f32 %v168, 0.0010283802
      %v229 = vmul.f32 %v169, 0.0010283802
      %v230 = vmul.f32 %v170, 0.0010283802
      %v231 = vmul.f32 %v171, 0.0010283802
      %v232 = vmul.f32 %v160, 0.0075987587
      %v233 = vmul.f32 %v161, 0.0075987587
      %v234 = vmul.f32 %v162, 0.0075987587
      %v235 = vmul.f32 %v163, 0.0075987587
      %v236 = vmul.f32 %v164, 0.0075987587
      %v237 = vmul.f32 %v165, 0.0075987587
      %v238 = vmul.f32 %v166, 0.0075987587
      %v239 = vmul.f32 %v167, 0.0075987587
      %v240 = vmul.f32 %v168, 0.0075987587
      %v241 = vmul.f32 %v169, 0.0075987587
      %v242 = vmul.f32 %v170, 0.0075987587
      %v243 = vmul.f32 %v171, 0.0075987587
      %256 = vrot.lane.b32.xlu0 %v232, 127
      %v257 = vpop.permute.xlu0 %256
      %258 = vrot.lane.b32.xlu0 %v233, 127
      %v259 = vpop.permute.xlu0 %258
      %260 = vrot.lane.b32.xlu0 %v234, 127
      %v261 = vpop.permute.xlu0 %260
      %262 = vrot.lane.b32.xlu0 %v235, 127
      %v263 = vpop.permute.xlu0 %262
      %264 = vrot.lane.b32.xlu0 %v236, 127
      %v265 = vpop.permute.xlu0 %264
      %266 = vrot.lane.b32.xlu0 %v237, 127
      %v267 = vpop.permute.xlu0 %266
      %268 = vrot.lane.b32.xlu0 %v238, 127
      %v269 = vpop.permute.xlu0 %268
      %270 = vrot.lane.b32.xlu0 %v239, 127
      %v271 = vpop.permute.xlu0 %270
      %272 = vrot.lane.b32.xlu0 %v240, 127
      %v273 = vpop.permute.xlu0 %272
      %274 = vrot.lane.b32.xlu0 %v241, 127
      %v275 = vpop.permute.xlu0 %274
      %276 = vrot.lane.b32.xlu0 %v242, 127
      %v277 = vpop.permute.xlu0 %276
      %278 = vrot.lane.b32.xlu0 %v243, 127
      %v279 = vpop.permute.xlu0 %278
      %v292 = vadd.f32 %v220, %v257
      %v293 = vadd.f32 %v221, %v259
      %v294 = vadd.f32 %v222, %v261
      %v295 = vadd.f32 %v223, %v263
      %v296 = vadd.f32 %v224, %v265
      %v297 = vadd.f32 %v225, %v267
      %v298 = vadd.f32 %v226, %v269
      %v299 = vadd.f32 %v227, %v271
      %v300 = vadd.f32 %v228, %v273
      %v301 = vadd.f32 %v229, %v275
      %v302 = vadd.f32 %v230, %v277
      %v303 = vadd.f32 %v231, %v279
      %v304 = vmul.f32 %v160, 0.036000773
      %v305 = vmul.f32 %v161, 0.036000773
      %v306 = vmul.f32 %v162, 0.036000773
      %v307 = vmul.f32 %v163, 0.036000773
      %v308 = vmul.f32 %v164, 0.036000773
      %v309 = vmul.f32 %v165, 0.036000773
      %v310 = vmul.f32 %v166, 0.036000773
      %v311 = vmul.f32 %v167, 0.036000773
      %v312 = vmul.f32 %v168, 0.036000773
      %v313 = vmul.f32 %v169, 0.036000773
      %v314 = vmul.f32 %v170, 0.036000773
      %v315 = vmul.f32 %v171, 0.036000773
      %328 = vrot.lane.b32.xlu0 %v304, 126
      %v329 = vpop.permute.xlu0 %328
      %330 = vrot.lane.b32.xlu0 %v305, 126
      %v331 = vpop.permute.xlu0 %330
      %332 = vrot.lane.b32.xlu0 %v306, 126
      %v333 = vpop.permute.xlu0 %332
      %334 = vrot.lane.b32.xlu0 %v307, 126
      %v335 = vpop.permute.xlu0 %334
      %336 = vrot.lane.b32.xlu0 %v308, 126
      %v337 = vpop.permute.xlu0 %336
      %338 = vrot.lane.b32.xlu0 %v309, 126
      %v339 = vpop.permute.xlu0 %338
      %340 = vrot.lane.b32.xlu0 %v310, 126
      %v341 = vpop.permute.xlu0 %340
      %342 = vrot.lane.b32.xlu0 %v311, 126
      %v343 = vpop.permute.xlu0 %342
      %344 = vrot.lane.b32.xlu0 %v312, 126
      %v345 = vpop.permute.xlu0 %344
      %346 = vrot.lane.b32.xlu0 %v313, 126
      %v347 = vpop.permute.xlu0 %346
      %348 = vrot.lane.b32.xlu0 %v314, 126
      %v349 = vpop.permute.xlu0 %348
      %350 = vrot.lane.b32.xlu0 %v315, 126
      %v351 = vpop.permute.xlu0 %350
      %v364 = vadd.f32 %v292, %v329
      %v365 = vadd.f32 %v293, %v331
      %v366 = vadd.f32 %v294, %v333
      %v367 = vadd.f32 %v295, %v335
      %v368 = vadd.f32 %v296, %v337
      %v369 = vadd.f32 %v297, %v339
      %v370 = vadd.f32 %v298, %v341
      %v371 = vadd.f32 %v299, %v343
      %v372 = vadd.f32 %v300, %v345
      %v373 = vadd.f32 %v301, %v347
      %v374 = vadd.f32 %v302, %v349
      %v375 = vadd.f32 %v303, %v351
      %v376 = vmul.f32 %v160, 0.109360695
      %v377 = vmul.f32 %v161, 0.109360695
      %v378 = vmul.f32 %v162, 0.109360695
      %v379 = vmul.f32 %v163, 0.109360695
      %v380 = vmul.f32 %v164, 0.109360695
      %v381 = vmul.f32 %v165, 0.109360695
      %v382 = vmul.f32 %v166, 0.109360695
      %v383 = vmul.f32 %v167, 0.109360695
      %v384 = vmul.f32 %v168, 0.109360695
      %v385 = vmul.f32 %v169, 0.109360695
      %v386 = vmul.f32 %v170, 0.109360695
      %v387 = vmul.f32 %v171, 0.109360695
      %400 = vrot.lane.b32.xlu0 %v376, 125
      %v401 = vpop.permute.xlu0 %400
      %402 = vrot.lane.b32.xlu0 %v377, 125
      %v403 = vpop.permute.xlu0 %402
      %404 = vrot.lane.b32.xlu0 %v378, 125
      %v405 = vpop.permute.xlu0 %404
      %406 = vrot.lane.b32.xlu0 %v379, 125
      %v407 = vpop.permute.xlu0 %406
      %408 = vrot.lane.b32.xlu0 %v380, 125
      %v409 = vpop.permute.xlu0 %408
      %410 = vrot.lane.b32.xlu0 %v381, 125
      %v411 = vpop.permute.xlu0 %410
      %412 = vrot.lane.b32.xlu0 %v382, 125
      %v413 = vpop.permute.xlu0 %412
      %414 = vrot.lane.b32.xlu0 %v383, 125
      %v415 = vpop.permute.xlu0 %414
      %416 = vrot.lane.b32.xlu0 %v384, 125
      %v417 = vpop.permute.xlu0 %416
      %418 = vrot.lane.b32.xlu0 %v385, 125
      %v419 = vpop.permute.xlu0 %418
      %420 = vrot.lane.b32.xlu0 %v386, 125
      %v421 = vpop.permute.xlu0 %420
      %422 = vrot.lane.b32.xlu0 %v387, 125
      %v423 = vpop.permute.xlu0 %422
      %v436 = vadd.f32 %v364, %v401
      %v437 = vadd.f32 %v365, %v403
      %v438 = vadd.f32 %v366, %v405
      %v439 = vadd.f32 %v367, %v407
      %v440 = vadd.f32 %v368, %v409
      %v441 = vadd.f32 %v369, %v411
      %v442 = vadd.f32 %v370, %v413
      %v443 = vadd.f32 %v371, %v415
      %v444 = vadd.f32 %v372, %v417
      %v445 = vadd.f32 %v373, %v419
      %v446 = vadd.f32 %v374, %v421
      %v447 = vadd.f32 %v375, %v423
      %v448 = vmul.f32 %v160, 0.21300554
      %v449 = vmul.f32 %v161, 0.21300554
      %v450 = vmul.f32 %v162, 0.21300554
      %v451 = vmul.f32 %v163, 0.21300554
      %v452 = vmul.f32 %v164, 0.21300554
      %v453 = vmul.f32 %v165, 0.21300554
      %v454 = vmul.f32 %v166, 0.21300554
      %v455 = vmul.f32 %v167, 0.21300554
      %v456 = vmul.f32 %v168, 0.21300554
      %v457 = vmul.f32 %v169, 0.21300554
      %v458 = vmul.f32 %v170, 0.21300554
      %v459 = vmul.f32 %v171, 0.21300554
      %472 = vrot.lane.b32.xlu0 %v448, 124
      %v473 = vpop.permute.xlu0 %472
      %474 = vrot.lane.b32.xlu0 %v449, 124
      %v475 = vpop.permute.xlu0 %474
      %476 = vrot.lane.b32.xlu0 %v450, 124
      %v477 = vpop.permute.xlu0 %476
      %478 = vrot.lane.b32.xlu0 %v451, 124
      %v479 = vpop.permute.xlu0 %478
      %480 = vrot.lane.b32.xlu0 %v452, 124
      %v481 = vpop.permute.xlu0 %480
      %482 = vrot.lane.b32.xlu0 %v453, 124
      %v483 = vpop.permute.xlu0 %482
      %484 = vrot.lane.b32.xlu0 %v454, 124
      %v485 = vpop.permute.xlu0 %484
      %486 = vrot.lane.b32.xlu0 %v455, 124
      %v487 = vpop.permute.xlu0 %486
      %488 = vrot.lane.b32.xlu0 %v456, 124
      %v489 = vpop.permute.xlu0 %488
      %490 = vrot.lane.b32.xlu0 %v457, 124
      %v491 = vpop.permute.xlu0 %490
      %492 = vrot.lane.b32.xlu0 %v458, 124
      %v493 = vpop.permute.xlu0 %492
      %494 = vrot.lane.b32.xlu0 %v459, 124
      %v495 = vpop.permute.xlu0 %494
      %v508 = vadd.f32 %v436, %v473
      %v509 = vadd.f32 %v437, %v475
      %v510 = vadd.f32 %v438, %v477
      %v511 = vadd.f32 %v439, %v479
      %v512 = vadd.f32 %v440, %v481
      %v513 = vadd.f32 %v441, %v483
      %v514 = vadd.f32 %v442, %v485
      %v515 = vadd.f32 %v443, %v487
      %v516 = vadd.f32 %v444, %v489
      %v517 = vadd.f32 %v445, %v491
      %v518 = vadd.f32 %v446, %v493
      %v519 = vadd.f32 %v447, %v495
      %v520 = vmul.f32 %v160, 0.26601174
      %v521 = vmul.f32 %v161, 0.26601174
      %v522 = vmul.f32 %v162, 0.26601174
      %v523 = vmul.f32 %v163, 0.26601174
      %v524 = vmul.f32 %v164, 0.26601174
      %v525 = vmul.f32 %v165, 0.26601174
      %v526 = vmul.f32 %v166, 0.26601174
      %v527 = vmul.f32 %v167, 0.26601174
      %v528 = vmul.f32 %v168, 0.26601174
      %v529 = vmul.f32 %v169, 0.26601174
      %v530 = vmul.f32 %v170, 0.26601174
      %v531 = vmul.f32 %v171, 0.26601174
      %544 = vrot.lane.b32.xlu0 %v520, 123
      %v545 = vpop.permute.xlu0 %544
      %546 = vrot.lane.b32.xlu0 %v521, 123
      %v547 = vpop.permute.xlu0 %546
      %548 = vrot.lane.b32.xlu0 %v522, 123
      %v549 = vpop.permute.xlu0 %548
      %550 = vrot.lane.b32.xlu0 %v523, 123
      %v551 = vpop.permute.xlu0 %550
      %552 = vrot.lane.b32.xlu0 %v524, 123
      %v553 = vpop.permute.xlu0 %552
      %554 = vrot.lane.b32.xlu0 %v525, 123
      %v555 = vpop.permute.xlu0 %554
      %556 = vrot.lane.b32.xlu0 %v526, 123
      %v557 = vpop.permute.xlu0 %556
      %558 = vrot.lane.b32.xlu0 %v527, 123
      %v559 = vpop.permute.xlu0 %558
      %560 = vrot.lane.b32.xlu0 %v528, 123
      %v561 = vpop.permute.xlu0 %560
      %562 = vrot.lane.b32.xlu0 %v529, 123
      %v563 = vpop.permute.xlu0 %562
      %564 = vrot.lane.b32.xlu0 %v530, 123
      %v565 = vpop.permute.xlu0 %564
      %566 = vrot.lane.b32.xlu0 %v531, 123
      %v567 = vpop.permute.xlu0 %566
      %v580 = vadd.f32 %v508, %v545
      %v581 = vadd.f32 %v509, %v547
      %v582 = vadd.f32 %v510, %v549
      %v583 = vadd.f32 %v511, %v551
      %v584 = vadd.f32 %v512, %v553
      %v585 = vadd.f32 %v513, %v555
      %v586 = vadd.f32 %v514, %v557
      %v587 = vadd.f32 %v515, %v559
      %v588 = vadd.f32 %v516, %v561
      %v589 = vadd.f32 %v517, %v563
      %v590 = vadd.f32 %v518, %v565
      %v591 = vadd.f32 %v519, %v567
      %592 = vrot.lane.b32.xlu0 %v448, 122
      %v593 = vpop.permute.xlu0 %592
      %594 = vrot.lane.b32.xlu0 %v449, 122
      %v595 = vpop.permute.xlu0 %594
      %596 = vrot.lane.b32.xlu0 %v450, 122
      %v597 = vpop.permute.xlu0 %596
      %598 = vrot.lane.b32.xlu0 %v451, 122
      %v599 = vpop.permute.xlu0 %598
      %600 = vrot.lane.b32.xlu0 %v452, 122
      %v601 = vpop.permute.xlu0 %600
      %602 = vrot.lane.b32.xlu0 %v453, 122
      %v603 = vpop.permute.xlu0 %602
      %604 = vrot.lane.b32.xlu0 %v454, 122
      %v605 = vpop.permute.xlu0 %604
      %606 = vrot.lane.b32.xlu0 %v455, 122
      %v607 = vpop.permute.xlu0 %606
      %608 = vrot.lane.b32.xlu0 %v456, 122
      %v609 = vpop.permute.xlu0 %608
      %610 = vrot.lane.b32.xlu0 %v457, 122
      %v611 = vpop.permute.xlu0 %610
      %612 = vrot.lane.b32.xlu0 %v458, 122
      %v613 = vpop.permute.xlu0 %612
      %614 = vrot.lane.b32.xlu0 %v459, 122
      %v615 = vpop.permute.xlu0 %614
      %v628 = vadd.f32 %v580, %v593
      %v629 = vadd.f32 %v581, %v595
      %v630 = vadd.f32 %v582, %v597
      %v631 = vadd.f32 %v583, %v599
      %v632 = vadd.f32 %v584, %v601
      %v633 = vadd.f32 %v585, %v603
      %v634 = vadd.f32 %v586, %v605
      %v635 = vadd.f32 %v587, %v607
      %v636 = vadd.f32 %v588, %v609
      %v637 = vadd.f32 %v589, %v611
      %v638 = vadd.f32 %v590, %v613
      %v639 = vadd.f32 %v591, %v615
      %640 = vrot.lane.b32.xlu0 %v376, 121
      %v641 = vpop.permute.xlu0 %640
      %642 = vrot.lane.b32.xlu0 %v377, 121
      %v643 = vpop.permute.xlu0 %642
      %644 = vrot.lane.b32.xlu0 %v378, 121
      %v645 = vpop.permute.xlu0 %644
      %646 = vrot.lane.b32.xlu0 %v379, 121
      %v647 = vpop.permute.xlu0 %646
      %648 = vrot.lane.b32.xlu0 %v380, 121
      %v649 = vpop.permute.xlu0 %648
      %650 = vrot.lane.b32.xlu0 %v381, 121
      %v651 = vpop.permute.xlu0 %650
      %652 = vrot.lane.b32.xlu0 %v382, 121
      %v653 = vpop.permute.xlu0 %652
      %654 = vrot.lane.b32.xlu0 %v383, 121
      %v655 = vpop.permute.xlu0 %654
      %656 = vrot.lane.b32.xlu0 %v384, 121
      %v657 = vpop.permute.xlu0 %656
      %658 = vrot.lane.b32.xlu0 %v385, 121
      %v659 = vpop.permute.xlu0 %658
      %660 = vrot.lane.b32.xlu0 %v386, 121
      %v661 = vpop.permute.xlu0 %660
      %662 = vrot.lane.b32.xlu0 %v387, 121
      %v663 = vpop.permute.xlu0 %662
      %v676 = vadd.f32 %v628, %v641
      %v677 = vadd.f32 %v629, %v643
      %v678 = vadd.f32 %v630, %v645
      %v679 = vadd.f32 %v631, %v647
      %v680 = vadd.f32 %v632, %v649
      %v681 = vadd.f32 %v633, %v651
      %v682 = vadd.f32 %v634, %v653
      %v683 = vadd.f32 %v635, %v655
      %v684 = vadd.f32 %v636, %v657
      %v685 = vadd.f32 %v637, %v659
      %v686 = vadd.f32 %v638, %v661
      %v687 = vadd.f32 %v639, %v663
      %688 = vrot.lane.b32.xlu0 %v304, 120
      %v689 = vpop.permute.xlu0 %688
      %690 = vrot.lane.b32.xlu0 %v305, 120
      %v691 = vpop.permute.xlu0 %690
      %692 = vrot.lane.b32.xlu0 %v306, 120
      %v693 = vpop.permute.xlu0 %692
      %694 = vrot.lane.b32.xlu0 %v307, 120
      %v695 = vpop.permute.xlu0 %694
      %696 = vrot.lane.b32.xlu0 %v308, 120
      %v697 = vpop.permute.xlu0 %696
      %698 = vrot.lane.b32.xlu0 %v309, 120
      %v699 = vpop.permute.xlu0 %698
      %700 = vrot.lane.b32.xlu0 %v310, 120
      %v701 = vpop.permute.xlu0 %700
      %702 = vrot.lane.b32.xlu0 %v311, 120
      %v703 = vpop.permute.xlu0 %702
      %704 = vrot.lane.b32.xlu0 %v312, 120
      %v705 = vpop.permute.xlu0 %704
      %706 = vrot.lane.b32.xlu0 %v313, 120
      %v707 = vpop.permute.xlu0 %706
      %708 = vrot.lane.b32.xlu0 %v314, 120
      %v709 = vpop.permute.xlu0 %708
      %710 = vrot.lane.b32.xlu0 %v315, 120
      %v711 = vpop.permute.xlu0 %710
      %v724 = vadd.f32 %v676, %v689
      %v725 = vadd.f32 %v677, %v691
      %v726 = vadd.f32 %v678, %v693
      %v727 = vadd.f32 %v679, %v695
      %v728 = vadd.f32 %v680, %v697
      %v729 = vadd.f32 %v681, %v699
      %v730 = vadd.f32 %v682, %v701
      %v731 = vadd.f32 %v683, %v703
      %v732 = vadd.f32 %v684, %v705
      %v733 = vadd.f32 %v685, %v707
      %v734 = vadd.f32 %v686, %v709
      %v735 = vadd.f32 %v687, %v711
      %736 = vrot.lane.b32.xlu0 %v232, 119
      %v737 = vpop.permute.xlu0 %736
      %738 = vrot.lane.b32.xlu0 %v233, 119
      %v739 = vpop.permute.xlu0 %738
      %740 = vrot.lane.b32.xlu0 %v234, 119
      %v741 = vpop.permute.xlu0 %740
      %742 = vrot.lane.b32.xlu0 %v235, 119
      %v743 = vpop.permute.xlu0 %742
      %744 = vrot.lane.b32.xlu0 %v236, 119
      %v745 = vpop.permute.xlu0 %744
      %746 = vrot.lane.b32.xlu0 %v237, 119
      %v747 = vpop.permute.xlu0 %746
      %748 = vrot.lane.b32.xlu0 %v238, 119
      %v749 = vpop.permute.xlu0 %748
      %750 = vrot.lane.b32.xlu0 %v239, 119
      %v751 = vpop.permute.xlu0 %750
      %752 = vrot.lane.b32.xlu0 %v240, 119
      %v753 = vpop.permute.xlu0 %752
      %754 = vrot.lane.b32.xlu0 %v241, 119
      %v755 = vpop.permute.xlu0 %754
      %756 = vrot.lane.b32.xlu0 %v242, 119
      %v757 = vpop.permute.xlu0 %756
      %758 = vrot.lane.b32.xlu0 %v243, 119
      %v759 = vpop.permute.xlu0 %758
      %v772 = vadd.f32 %v724, %v737
      %v773 = vadd.f32 %v725, %v739
      %v774 = vadd.f32 %v726, %v741
      %v775 = vadd.f32 %v727, %v743
      %v776 = vadd.f32 %v728, %v745
      %v777 = vadd.f32 %v729, %v747
      %v778 = vadd.f32 %v730, %v749
      %v779 = vadd.f32 %v731, %v751
      %v780 = vadd.f32 %v732, %v753
      %v781 = vadd.f32 %v733, %v755
      %v782 = vadd.f32 %v734, %v757
      %v783 = vadd.f32 %v735, %v759
      %796 = vrot.lane.b32.xlu0 %v220, 118
      %v797 = vpop.permute.xlu0 %796
      %798 = vrot.lane.b32.xlu0 %v221, 118
      %v799 = vpop.permute.xlu0 %798
      %800 = vrot.lane.b32.xlu0 %v222, 118
      %v801 = vpop.permute.xlu0 %800
      %802 = vrot.lane.b32.xlu0 %v223, 118
      %v803 = vpop.permute.xlu0 %802
      %804 = vrot.lane.b32.xlu0 %v224, 118
      %v805 = vpop.permute.xlu0 %804
      %806 = vrot.lane.b32.xlu0 %v225, 118
      %v807 = vpop.permute.xlu0 %806
      %808 = vrot.lane.b32.xlu0 %v226, 118
      %v809 = vpop.permute.xlu0 %808
      %810 = vrot.lane.b32.xlu0 %v227, 118
      %v811 = vpop.permute.xlu0 %810
      %812 = vrot.lane.b32.xlu0 %v228, 118
      %v813 = vpop.permute.xlu0 %812
      %814 = vrot.lane.b32.xlu0 %v229, 118
      %v815 = vpop.permute.xlu0 %814
      %816 = vrot.lane.b32.xlu0 %v230, 118
      %v817 = vpop.permute.xlu0 %816
      %818 = vrot.lane.b32.xlu0 %v231, 118
      %v819 = vpop.permute.xlu0 %818
      %v832 = vadd.f32 %v772, %v797
      %v833 = vadd.f32 %v773, %v799
      %v834 = vadd.f32 %v774, %v801
      %v835 = vadd.f32 %v775, %v803
      %v836 = vadd.f32 %v776, %v805
      %v837 = vadd.f32 %v777, %v807
      %v838 = vadd.f32 %v778, %v809
      %v839 = vadd.f32 %v779, %v811
      %v840 = vadd.f32 %v780, %v813
      %v841 = vadd.f32 %v781, %v815
      %v842 = vadd.f32 %v782, %v817
      %v843 = vadd.f32 %v783, %v819
      %v844 = vmul.f32 %v832, 0.0010283802
      %v845 = vmul.f32 %v833, 0.0010283802
      %v846 = vmul.f32 %v836, 0.0010283802
      %v847 = vmul.f32 %v837, 0.0010283802
      %v848 = vmul.f32 %v840, 0.0010283802
      %v849 = vmul.f32 %v841, 0.0010283802
      %v850 = vmul.f32 %v832, 0.0075987587
      %v851 = vmul.f32 %v833, 0.0075987587
      %v852 = vmul.f32 %v834, 0.0075987587
      %v853 = vmul.f32 %v836, 0.0075987587
      %v854 = vmul.f32 %v837, 0.0075987587
      %v855 = vmul.f32 %v838, 0.0075987587
      %v856 = vmul.f32 %v840, 0.0075987587
      %v857 = vmul.f32 %v841, 0.0075987587
      %v858 = vmul.f32 %v842, 0.0075987587
      %vm868 = vcmask 1046528
      %v869 = vrot.slane %v850, 1
      %v870 = vrot.slane %v851, 1
      %v871 = vsel %vm868, %v869, %v870
      %v872 = vrot.slane %v852, 1
      %v873 = vsel %vm868, %v870, %v872
      %v874 = vrot.slane %v853, 1
      %v875 = vrot.slane %v854, 1
      %v876 = vsel %vm868, %v874, %v875
      %v877 = vrot.slane %v855, 1
      %v878 = vsel %vm868, %v875, %v877
      %v879 = vrot.slane %v856, 1
      %v880 = vrot.slane %v857, 1
      %v881 = vsel %vm868, %v879, %v880
      %v882 = vrot.slane %v858, 1
      %v883 = vsel %vm868, %v880, %v882
      %v890 = vadd.f32 %v844, %v871
      %v891 = vadd.f32 %v845, %v873
      %v892 = vadd.f32 %v846, %v876
      %v893 = vadd.f32 %v847, %v878
      %v894 = vadd.f32 %v848, %v881
      %v895 = vadd.f32 %v849, %v883
      %v896 = vmul.f32 %v832, 0.036000773
      %v897 = vmul.f32 %v833, 0.036000773
      %v898 = vmul.f32 %v834, 0.036000773
      %v899 = vmul.f32 %v836, 0.036000773
      %v900 = vmul.f32 %v837, 0.036000773
      %v901 = vmul.f32 %v838, 0.036000773
      %v902 = vmul.f32 %v840, 0.036000773
      %v903 = vmul.f32 %v841, 0.036000773
      %v904 = vmul.f32 %v842, 0.036000773
      %vm914 = vcmask 1045504
      %v915 = vrot.slane %v896, 2
      %v916 = vrot.slane %v897, 2
      %v917 = vsel %vm914, %v915, %v916
      %v918 = vrot.slane %v898, 2
      %v919 = vsel %vm914, %v916, %v918
      %v920 = vrot.slane %v899, 2
      %v921 = vrot.slane %v900, 2
      %v922 = vsel %vm914, %v920, %v921
      %v923 = vrot.slane %v901, 2
      %v924 = vsel %vm914, %v921, %v923
      %v925 = vrot.slane %v902, 2
      %v926 = vrot.slane %v903, 2
      %v927 = vsel %vm914, %v925, %v926
      %v928 = vrot.slane %v904, 2
      %v929 = vsel %vm914, %v926, %v928
      %v936 = vadd.f32 %v890, %v917
      %v937 = vadd.f32 %v891, %v919
      %v938 = vadd.f32 %v892, %v922
      %v939 = vadd.f32 %v893, %v924
      %v940 = vadd.f32 %v894, %v927
      %v941 = vadd.f32 %v895, %v929
      %v942 = vmul.f32 %v832, 0.109360695
      %v943 = vmul.f32 %v833, 0.109360695
      %v944 = vmul.f32 %v834, 0.109360695
      %v945 = vmul.f32 %v836, 0.109360695
      %v946 = vmul.f32 %v837, 0.109360695
      %v947 = vmul.f32 %v838, 0.109360695
      %v948 = vmul.f32 %v840, 0.109360695
      %v949 = vmul.f32 %v841, 0.109360695
      %v950 = vmul.f32 %v842, 0.109360695
      %vm960 = vcmask 1044480
      %v961 = vrot.slane %v942, 3
      %v962 = vrot.slane %v943, 3
      %v963 = vsel %vm960, %v961, %v962
      %v964 = vrot.slane %v944, 3
      %v965 = vsel %vm960, %v962, %v964
      %v966 = vrot.slane %v945, 3
      %v967 = vrot.slane %v946, 3
      %v968 = vsel %vm960, %v966, %v967
      %v969 = vrot.slane %v947, 3
      %v970 = vsel %vm960, %v967, %v969
      %v971 = vrot.slane %v948, 3
      %v972 = vrot.slane %v949, 3
      %v973 = vsel %vm960, %v971, %v972
      %v974 = vrot.slane %v950, 3
      %v975 = vsel %vm960, %v972, %v974
      %v982 = vadd.f32 %v936, %v963
      %v983 = vadd.f32 %v937, %v965
      %v984 = vadd.f32 %v938, %v968
      %v985 = vadd.f32 %v939, %v970
      %v986 = vadd.f32 %v940, %v973
      %v987 = vadd.f32 %v941, %v975
      %v988 = vmul.f32 %v832, 0.21300554
      %v989 = vmul.f32 %v833, 0.21300554
      %v990 = vmul.f32 %v834, 0.21300554
      %v991 = vmul.f32 %v836, 0.21300554
      %v992 = vmul.f32 %v837, 0.21300554
      %v993 = vmul.f32 %v838, 0.21300554
      %v994 = vmul.f32 %v840, 0.21300554
      %v995 = vmul.f32 %v841, 0.21300554
      %v996 = vmul.f32 %v842, 0.21300554
      %vm1006 = vcmask 1043456
      %v1007 = vrot.slane %v988, 4
      %v1008 = vrot.slane %v989, 4
      %v1009 = vsel %vm1006, %v1007, %v1008
      %v1010 = vrot.slane %v990, 4
      %v1011 = vsel %vm1006, %v1008, %v1010
      %v1012 = vrot.slane %v991, 4
      %v1013 = vrot.slane %v992, 4
      %v1014 = vsel %vm1006, %v1012, %v1013
      %v1015 = vrot.slane %v993, 4
      %v1016 = vsel %vm1006, %v1013, %v1015
      %v1017 = vrot.slane %v994, 4
      %v1018 = vrot.slane %v995, 4
      %v1019 = vsel %vm1006, %v1017, %v1018
      %v1020 = vrot.slane %v996, 4
      %v1021 = vsel %vm1006, %v1018, %v1020
      %v1028 = vadd.f32 %v982, %v1009
      %v1029 = vadd.f32 %v983, %v1011
      %v1030 = vadd.f32 %v984, %v1014
      %v1031 = vadd.f32 %v985, %v1016
      %v1032 = vadd.f32 %v986, %v1019
      %v1033 = vadd.f32 %v987, %v1021
      %v1034 = vmul.f32 %v832, 0.26601174
      %v1035 = vmul.f32 %v833, 0.26601174
      %v1036 = vmul.f32 %v834, 0.26601174
      %v1037 = vmul.f32 %v836, 0.26601174
      %v1038 = vmul.f32 %v837, 0.26601174
      %v1039 = vmul.f32 %v838, 0.26601174
      %v1040 = vmul.f32 %v840, 0.26601174
      %v1041 = vmul.f32 %v841, 0.26601174
      %v1042 = vmul.f32 %v842, 0.26601174
      %vm1052 = vcmask 1042432
      %v1053 = vrot.slane %v1034, 5
      %v1054 = vrot.slane %v1035, 5
      %v1055 = vsel %vm1052, %v1053, %v1054
      %v1056 = vrot.slane %v1036, 5
      %v1057 = vsel %vm1052, %v1054, %v1056
      %v1058 = vrot.slane %v1037, 5
      %v1059 = vrot.slane %v1038, 5
      %v1060 = vsel %vm1052, %v1058, %v1059
      %v1061 = vrot.slane %v1039, 5
      %v1062 = vsel %vm1052, %v1059, %v1061
      %v1063 = vrot.slane %v1040, 5
      %v1064 = vrot.slane %v1041, 5
      %v1065 = vsel %vm1052, %v1063, %v1064
      %v1066 = vrot.slane %v1042, 5
      %v1067 = vsel %vm1052, %v1064, %v1066
      %v1074 = vadd.f32 %v1028, %v1055
      %v1075 = vadd.f32 %v1029, %v1057
      %v1076 = vadd.f32 %v1030, %v1060
      %v1077 = vadd.f32 %v1031, %v1062
      %v1078 = vadd.f32 %v1032, %v1065
      %v1079 = vadd.f32 %v1033, %v1067
      %vm1080 = vcmask 1041408
      %v1081 = vrot.slane %v988, 6
      %v1082 = vrot.slane %v989, 6
      %v1083 = vsel %vm1080, %v1081, %v1082
      %v1084 = vrot.slane %v990, 6
      %v1085 = vsel %vm1080, %v1082, %v1084
      %v1086 = vrot.slane %v991, 6
      %v1087 = vrot.slane %v992, 6
      %v1088 = vsel %vm1080, %v1086, %v1087
      %v1089 = vrot.slane %v993, 6
      %v1090 = vsel %vm1080, %v1087, %v1089
      %v1091 = vrot.slane %v994, 6
      %v1092 = vrot.slane %v995, 6
      %v1093 = vsel %vm1080, %v1091, %v1092
      %v1094 = vrot.slane %v996, 6
      %v1095 = vsel %vm1080, %v1092, %v1094
      %v1102 = vadd.f32 %v1074, %v1083
      %v1103 = vadd.f32 %v1075, %v1085
      %v1104 = vadd.f32 %v1076, %v1088
      %v1105 = vadd.f32 %v1077, %v1090
      %v1106 = vadd.f32 %v1078, %v1093
      %v1107 = vadd.f32 %v1079, %v1095
      %vm1108 = vcmask 1040384
      %v1109 = vrot.slane %v942, 7
      %v1110 = vrot.slane %v943, 7
      %v1111 = vsel %vm1108, %v1109, %v1110
      %v1112 = vrot.slane %v944, 7
      %v1113 = vsel %vm1108, %v1110, %v1112
      %v1114 = vrot.slane %v945, 7
      %v1115 = vrot.slane %v946, 7
      %v1116 = vsel %vm1108, %v1114, %v1115
      %v1117 = vrot.slane %v947, 7
      %v1118 = vsel %vm1108, %v1115, %v1117
      %v1119 = vrot.slane %v948, 7
      %v1120 = vrot.slane %v949, 7
      %v1121 = vsel %vm1108, %v1119, %v1120
      %v1122 = vrot.slane %v950, 7
      %v1123 = vsel %vm1108, %v1120, %v1122
      %v1130 = vadd.f32 %v1102, %v1111
      %v1131 = vadd.f32 %v1103, %v1113
      %v1132 = vadd.f32 %v1104, %v1116
      %v1133 = vadd.f32 %v1105, %v1118
      %v1134 = vadd.f32 %v1106, %v1121
      %v1135 = vadd.f32 %v1107, %v1123
      %v1136 = vadd.f32 %v1130, %v897
      %v1137 = vadd.f32 %v1131, %v898
      %v1138 = vadd.f32 %v1132, %v900
      %v1139 = vadd.f32 %v1133, %v901
      %v1140 = vadd.f32 %v1134, %v903
      %v1141 = vadd.f32 %v1135, %v904
      %v1142 = vmul.f32 %v835, 0.0075987587
      %v1143 = vmul.f32 %v839, 0.0075987587
      %v1144 = vmul.f32 %v843, 0.0075987587
      %v1148 = vrot.slane %v1142, 1
      %v1149 = vsel %vm868, %v872, %v1148
      %v1150 = vrot.slane %v1143, 1
      %v1151 = vsel %vm868, %v877, %v1150
      %v1152 = vrot.slane %v1144, 1
      %v1153 = vsel %vm868, %v882, %v1152
      %v1157 = vadd.f32 %v1136, %v873
      %v1158 = vadd.f32 %v1137, %v1149
      %v1159 = vadd.f32 %v1138, %v878
      %v1160 = vadd.f32 %v1139, %v1151
      %v1161 = vadd.f32 %v1140, %v883
      %v1162 = vadd.f32 %v1141, %v1153
      %v1163 = vmul.f32 %v834, 0.0010283802
      %v1164 = vmul.f32 %v835, 0.0010283802
      %v1165 = vmul.f32 %v838, 0.0010283802
      %v1166 = vmul.f32 %v839, 0.0010283802
      %v1167 = vmul.f32 %v842, 0.0010283802
      %v1168 = vmul.f32 %v843, 0.0010283802
      %v1178 = vrot.slane %v845, 2
      %v1179 = vrot.slane %v1163, 2
      %v1180 = vsel %vm914, %v1178, %v1179
      %v1181 = vrot.slane %v1164, 2
      %v1182 = vsel %vm914, %v1179, %v1181
      %v1183 = vrot.slane %v847, 2
      %v1184 = vrot.slane %v1165, 2
      %v1185 = vsel %vm914, %v1183, %v1184
      %v1186 = vrot.slane %v1166, 2
      %v1187 = vsel %vm914, %v1184, %v1186
      %v1188 = vrot.slane %v849, 2
      %v1189 = vrot.slane %v1167, 2
      %v1190 = vsel %vm914, %v1188, %v1189
      %v1191 = vrot.slane %v1168, 2
      %v1192 = vsel %vm914, %v1189, %v1191
      %v1199 = vadd.f32 %v1157, %v1180
      %v1200 = vadd.f32 %v1158, %v1182
      %v1201 = vadd.f32 %v1159, %v1185
      %v1202 = vadd.f32 %v1160, %v1187
      %v1203 = vadd.f32 %v1161, %v1190
      %v1204 = vadd.f32 %v1162, %v1192
      %v1205 = vmul.f32 %v172, 0.0010283802
      %v1206 = vmul.f32 %v173, 0.0010283802
      %v1207 = vmul.f32 %v174, 0.0010283802
      %v1208 = vmul.f32 %v175, 0.0010283802
      %v1209 = vmul.f32 %v176, 0.0010283802
      %v1210 = vmul.f32 %v177, 0.0010283802
      %v1211 = vmul.f32 %v178, 0.0010283802
      %v1212 = vmul.f32 %v179, 0.0010283802
      %v1213 = vmul.f32 %v180, 0.0010283802
      %v1214 = vmul.f32 %v181, 0.0010283802
      %v1215 = vmul.f32 %v182, 0.0010283802
      %v1216 = vmul.f32 %v183, 0.0010283802
      %v1217 = vmul.f32 %v172, 0.0075987587
      %v1218 = vmul.f32 %v173, 0.0075987587
      %v1219 = vmul.f32 %v174, 0.0075987587
      %v1220 = vmul.f32 %v175, 0.0075987587
      %v1221 = vmul.f32 %v176, 0.0075987587
      %v1222 = vmul.f32 %v177, 0.0075987587
      %v1223 = vmul.f32 %v178, 0.0075987587
      %v1224 = vmul.f32 %v179, 0.0075987587
      %v1225 = vmul.f32 %v180, 0.0075987587
      %v1226 = vmul.f32 %v181, 0.0075987587
      %v1227 = vmul.f32 %v182, 0.0075987587
      %v1228 = vmul.f32 %v183, 0.0075987587
      %1241 = vrot.lane.b32.xlu0 %v1217, 127
      %v1242 = vpop.permute.xlu0 %1241
      %1243 = vrot.lane.b32.xlu0 %v1218, 127
      %v1244 = vpop.permute.xlu0 %1243
      %1245 = vrot.lane.b32.xlu0 %v1219, 127
      %v1246 = vpop.permute.xlu0 %1245
      %1247 = vrot.lane.b32.xlu0 %v1220, 127
      %v1248 = vpop.permute.xlu0 %1247
      %1249 = vrot.lane.b32.xlu0 %v1221, 127
      %v1250 = vpop.permute.xlu0 %1249
      %1251 = vrot.lane.b32.xlu0 %v1222, 127
      %v1252 = vpop.permute.xlu0 %1251
      %1253 = vrot.lane.b32.xlu0 %v1223, 127
      %v1254 = vpop.permute.xlu0 %1253
      %1255 = vrot.lane.b32.xlu0 %v1224, 127
      %v1256 = vpop.permute.xlu0 %1255
      %1257 = vrot.lane.b32.xlu0 %v1225, 127
      %v1258 = vpop.permute.xlu0 %1257
      %1259 = vrot.lane.b32.xlu0 %v1226, 127
      %v1260 = vpop.permute.xlu0 %1259
      %1261 = vrot.lane.b32.xlu0 %v1227, 127
      %v1262 = vpop.permute.xlu0 %1261
      %1263 = vrot.lane.b32.xlu0 %v1228, 127
      %v1264 = vpop.permute.xlu0 %1263
      %v1277 = vadd.f32 %v1205, %v1242
      %v1278 = vadd.f32 %v1206, %v1244
      %v1279 = vadd.f32 %v1207, %v1246
      %v1280 = vadd.f32 %v1208, %v1248
      %v1281 = vadd.f32 %v1209, %v1250
      %v1282 = vadd.f32 %v1210, %v1252
      %v1283 = vadd.f32 %v1211, %v1254
      %v1284 = vadd.f32 %v1212, %v1256
      %v1285 = vadd.f32 %v1213, %v1258
      %v1286 = vadd.f32 %v1214, %v1260
      %v1287 = vadd.f32 %v1215, %v1262
      %v1288 = vadd.f32 %v1216, %v1264
      %v1289 = vmul.f32 %v172, 0.036000773
      %v1290 = vmul.f32 %v173, 0.036000773
      %v1291 = vmul.f32 %v174, 0.036000773
      %v1292 = vmul.f32 %v175, 0.036000773
      %v1293 = vmul.f32 %v176, 0.036000773
      %v1294 = vmul.f32 %v177, 0.036000773
      %v1295 = vmul.f32 %v178, 0.036000773
      %v1296 = vmul.f32 %v179, 0.036000773
      %v1297 = vmul.f32 %v180, 0.036000773
      %v1298 = vmul.f32 %v181, 0.036000773
      %v1299 = vmul.f32 %v182, 0.036000773
      %v1300 = vmul.f32 %v183, 0.036000773
      %1313 = vrot.lane.b32.xlu0 %v1289, 126
      %v1314 = vpop.permute.xlu0 %1313
      %1315 = vrot.lane.b32.xlu0 %v1290, 126
      %v1316 = vpop.permute.xlu0 %1315
      %1317 = vrot.lane.b32.xlu0 %v1291, 126
      %v1318 = vpop.permute.xlu0 %1317
      %1319 = vrot.lane.b32.xlu0 %v1292, 126
      %v1320 = vpop.permute.xlu0 %1319
      %1321 = vrot.lane.b32.xlu0 %v1293, 126
      %v1322 = vpop.permute.xlu0 %1321
      %1323 = vrot.lane.b32.xlu0 %v1294, 126
      %v1324 = vpop.permute.xlu0 %1323
      %1325 = vrot.lane.b32.xlu0 %v1295, 126
      %v1326 = vpop.permute.xlu0 %1325
      %1327 = vrot.lane.b32.xlu0 %v1296, 126
      %v1328 = vpop.permute.xlu0 %1327
      %1329 = vrot.lane.b32.xlu0 %v1297, 126
      %v1330 = vpop.permute.xlu0 %1329
      %1331 = vrot.lane.b32.xlu0 %v1298, 126
      %v1332 = vpop.permute.xlu0 %1331
      %1333 = vrot.lane.b32.xlu0 %v1299, 126
      %v1334 = vpop.permute.xlu0 %1333
      %1335 = vrot.lane.b32.xlu0 %v1300, 126
      %v1336 = vpop.permute.xlu0 %1335
      %v1349 = vadd.f32 %v1277, %v1314
      %v1350 = vadd.f32 %v1278, %v1316
      %v1351 = vadd.f32 %v1279, %v1318
      %v1352 = vadd.f32 %v1280, %v1320
      %v1353 = vadd.f32 %v1281, %v1322
      %v1354 = vadd.f32 %v1282, %v1324
      %v1355 = vadd.f32 %v1283, %v1326
      %v1356 = vadd.f32 %v1284, %v1328
      %v1357 = vadd.f32 %v1285, %v1330
      %v1358 = vadd.f32 %v1286, %v1332
      %v1359 = vadd.f32 %v1287, %v1334
      %v1360 = vadd.f32 %v1288, %v1336
      %v1361 = vmul.f32 %v172, 0.109360695
      %v1362 = vmul.f32 %v173, 0.109360695
      %v1363 = vmul.f32 %v174, 0.109360695
      %v1364 = vmul.f32 %v175, 0.109360695
      %v1365 = vmul.f32 %v176, 0.109360695
      %v1366 = vmul.f32 %v177, 0.109360695
      %v1367 = vmul.f32 %v178, 0.109360695
      %v1368 = vmul.f32 %v179, 0.109360695
      %v1369 = vmul.f32 %v180, 0.109360695
      %v1370 = vmul.f32 %v181, 0.109360695
      %v1371 = vmul.f32 %v182, 0.109360695
      %v1372 = vmul.f32 %v183, 0.109360695
      %1385 = vrot.lane.b32.xlu0 %v1361, 125
      %v1386 = vpop.permute.xlu0 %1385
      %1387 = vrot.lane.b32.xlu0 %v1362, 125
      %v1388 = vpop.permute.xlu0 %1387
      %1389 = vrot.lane.b32.xlu0 %v1363, 125
      %v1390 = vpop.permute.xlu0 %1389
      %1391 = vrot.lane.b32.xlu0 %v1364, 125
      %v1392 = vpop.permute.xlu0 %1391
      %1393 = vrot.lane.b32.xlu0 %v1365, 125
      %v1394 = vpop.permute.xlu0 %1393
      %1395 = vrot.lane.b32.xlu0 %v1366, 125
      %v1396 = vpop.permute.xlu0 %1395
      %1397 = vrot.lane.b32.xlu0 %v1367, 125
      %v1398 = vpop.permute.xlu0 %1397
      %1399 = vrot.lane.b32.xlu0 %v1368, 125
      %v1400 = vpop.permute.xlu0 %1399
      %1401 = vrot.lane.b32.xlu0 %v1369, 125
      %v1402 = vpop.permute.xlu0 %1401
      %1403 = vrot.lane.b32.xlu0 %v1370, 125
      %v1404 = vpop.permute.xlu0 %1403
      %1405 = vrot.lane.b32.xlu0 %v1371, 125
      %v1406 = vpop.permute.xlu0 %1405
      %1407 = vrot.lane.b32.xlu0 %v1372, 125
      %v1408 = vpop.permute.xlu0 %1407
      %v1421 = vadd.f32 %v1349, %v1386
      %v1422 = vadd.f32 %v1350, %v1388
      %v1423 = vadd.f32 %v1351, %v1390
      %v1424 = vadd.f32 %v1352, %v1392
      %v1425 = vadd.f32 %v1353, %v1394
      %v1426 = vadd.f32 %v1354, %v1396
      %v1427 = vadd.f32 %v1355, %v1398
      %v1428 = vadd.f32 %v1356, %v1400
      %v1429 = vadd.f32 %v1357, %v1402
      %v1430 = vadd.f32 %v1358, %v1404
      %v1431 = vadd.f32 %v1359, %v1406
      %v1432 = vadd.f32 %v1360, %v1408
      %v1433 = vmul.f32 %v172, 0.21300554
      %v1434 = vmul.f32 %v173, 0.21300554
      %v1435 = vmul.f32 %v174, 0.21300554
      %v1436 = vmul.f32 %v175, 0.21300554
      %v1437 = vmul.f32 %v176, 0.21300554
      %v1438 = vmul.f32 %v177, 0.21300554
      %v1439 = vmul.f32 %v178, 0.21300554
      %v1440 = vmul.f32 %v179, 0.21300554
      %v1441 = vmul.f32 %v180, 0.21300554
      %v1442 = vmul.f32 %v181, 0.21300554
      %v1443 = vmul.f32 %v182, 0.21300554
      %v1444 = vmul.f32 %v183, 0.21300554
      %1457 = vrot.lane.b32.xlu0 %v1433, 124
      %v1458 = vpop.permute.xlu0 %1457
      %1459 = vrot.lane.b32.xlu0 %v1434, 124
      %v1460 = vpop.permute.xlu0 %1459
      %1461 = vrot.lane.b32.xlu0 %v1435, 124
      %v1462 = vpop.permute.xlu0 %1461
      %1463 = vrot.lane.b32.xlu0 %v1436, 124
      %v1464 = vpop.permute.xlu0 %1463
      %1465 = vrot.lane.b32.xlu0 %v1437, 124
      %v1466 = vpop.permute.xlu0 %1465
      %1467 = vrot.lane.b32.xlu0 %v1438, 124
      %v1468 = vpop.permute.xlu0 %1467
      %1469 = vrot.lane.b32.xlu0 %v1439, 124
      %v1470 = vpop.permute.xlu0 %1469
      %1471 = vrot.lane.b32.xlu0 %v1440, 124
      %v1472 = vpop.permute.xlu0 %1471
      %1473 = vrot.lane.b32.xlu0 %v1441, 124
      %v1474 = vpop.permute.xlu0 %1473
      %1475 = vrot.lane.b32.xlu0 %v1442, 124
      %v1476 = vpop.permute.xlu0 %1475
      %1477 = vrot.lane.b32.xlu0 %v1443, 124
      %v1478 = vpop.permute.xlu0 %1477
      %1479 = vrot.lane.b32.xlu0 %v1444, 124
      %v1480 = vpop.permute.xlu0 %1479
      %v1493 = vadd.f32 %v1421, %v1458
      %v1494 = vadd.f32 %v1422, %v1460
      %v1495 = vadd.f32 %v1423, %v1462
      %v1496 = vadd.f32 %v1424, %v1464
      %v1497 = vadd.f32 %v1425, %v1466
      %v1498 = vadd.f32 %v1426, %v1468
      %v1499 = vadd.f32 %v1427, %v1470
      %v1500 = vadd.f32 %v1428, %v1472
      %v1501 = vadd.f32 %v1429, %v1474
      %v1502 = vadd.f32 %v1430, %v1476
      %v1503 = vadd.f32 %v1431, %v1478
      %v1504 = vadd.f32 %v1432, %v1480
      %v1505 = vmul.f32 %v172, 0.26601174
      %v1506 = vmul.f32 %v173, 0.26601174
      %v1507 = vmul.f32 %v174, 0.26601174
      %v1508 = vmul.f32 %v175, 0.26601174
      %v1509 = vmul.f32 %v176, 0.26601174
      %v1510 = vmul.f32 %v177, 0.26601174
      %v1511 = vmul.f32 %v178, 0.26601174
      %v1512 = vmul.f32 %v179, 0.26601174
      %v1513 = vmul.f32 %v180, 0.26601174
      %v1514 = vmul.f32 %v181, 0.26601174
      %v1515 = vmul.f32 %v182, 0.26601174
      %v1516 = vmul.f32 %v183, 0.26601174
      %1529 = vrot.lane.b32.xlu0 %v1505, 123
      %v1530 = vpop.permute.xlu0 %1529
      %1531 = vrot.lane.b32.xlu0 %v1506, 123
      %v1532 = vpop.permute.xlu0 %1531
      %1533 = vrot.lane.b32.xlu0 %v1507, 123
      %v1534 = vpop.permute.xlu0 %1533
      %1535 = vrot.lane.b32.xlu0 %v1508, 123
      %v1536 = vpop.permute.xlu0 %1535
      %1537 = vrot.lane.b32.xlu0 %v1509, 123
      %v1538 = vpop.permute.xlu0 %1537
      %1539 = vrot.lane.b32.xlu0 %v1510, 123
      %v1540 = vpop.permute.xlu0 %1539
      %1541 = vrot.lane.b32.xlu0 %v1511, 123
      %v1542 = vpop.permute.xlu0 %1541
      %1543 = vrot.lane.b32.xlu0 %v1512, 123
      %v1544 = vpop.permute.xlu0 %1543
      %1545 = vrot.lane.b32.xlu0 %v1513, 123
      %v1546 = vpop.permute.xlu0 %1545
      %1547 = vrot.lane.b32.xlu0 %v1514, 123
      %v1548 = vpop.permute.xlu0 %1547
      %1549 = vrot.lane.b32.xlu0 %v1515, 123
      %v1550 = vpop.permute.xlu0 %1549
      %1551 = vrot.lane.b32.xlu0 %v1516, 123
      %v1552 = vpop.permute.xlu0 %1551
      %v1565 = vadd.f32 %v1493, %v1530
      %v1566 = vadd.f32 %v1494, %v1532
      %v1567 = vadd.f32 %v1495, %v1534
      %v1568 = vadd.f32 %v1496, %v1536
      %v1569 = vadd.f32 %v1497, %v1538
      %v1570 = vadd.f32 %v1498, %v1540
      %v1571 = vadd.f32 %v1499, %v1542
      %v1572 = vadd.f32 %v1500, %v1544
      %v1573 = vadd.f32 %v1501, %v1546
      %v1574 = vadd.f32 %v1502, %v1548
      %v1575 = vadd.f32 %v1503, %v1550
      %v1576 = vadd.f32 %v1504, %v1552
      %1577 = vrot.lane.b32.xlu0 %v1433, 122
      %v1578 = vpop.permute.xlu0 %1577
      %1579 = vrot.lane.b32.xlu0 %v1434, 122
      %v1580 = vpop.permute.xlu0 %1579
      %1581 = vrot.lane.b32.xlu0 %v1435, 122
      %v1582 = vpop.permute.xlu0 %1581
      %1583 = vrot.lane.b32.xlu0 %v1436, 122
      %v1584 = vpop.permute.xlu0 %1583
      %1585 = vrot.lane.b32.xlu0 %v1437, 122
      %v1586 = vpop.permute.xlu0 %1585
      %1587 = vrot.lane.b32.xlu0 %v1438, 122
      %v1588 = vpop.permute.xlu0 %1587
      %1589 = vrot.lane.b32.xlu0 %v1439, 122
      %v1590 = vpop.permute.xlu0 %1589
      %1591 = vrot.lane.b32.xlu0 %v1440, 122
      %v1592 = vpop.permute.xlu0 %1591
      %1593 = vrot.lane.b32.xlu0 %v1441, 122
      %v1594 = vpop.permute.xlu0 %1593
      %1595 = vrot.lane.b32.xlu0 %v1442, 122
      %v1596 = vpop.permute.xlu0 %1595
      %1597 = vrot.lane.b32.xlu0 %v1443, 122
      %v1598 = vpop.permute.xlu0 %1597
      %1599 = vrot.lane.b32.xlu0 %v1444, 122
      %v1600 = vpop.permute.xlu0 %1599
      %v1613 = vadd.f32 %v1565, %v1578
      %v1614 = vadd.f32 %v1566, %v1580
      %v1615 = vadd.f32 %v1567, %v1582
      %v1616 = vadd.f32 %v1568, %v1584
      %v1617 = vadd.f32 %v1569, %v1586
      %v1618 = vadd.f32 %v1570, %v1588
      %v1619 = vadd.f32 %v1571, %v1590
      %v1620 = vadd.f32 %v1572, %v1592
      %v1621 = vadd.f32 %v1573, %v1594
      %v1622 = vadd.f32 %v1574, %v1596
      %v1623 = vadd.f32 %v1575, %v1598
      %v1624 = vadd.f32 %v1576, %v1600
      %1625 = vrot.lane.b32.xlu0 %v1361, 121
      %v1626 = vpop.permute.xlu0 %1625
      %1627 = vrot.lane.b32.xlu0 %v1362, 121
      %v1628 = vpop.permute.xlu0 %1627
      %1629 = vrot.lane.b32.xlu0 %v1363, 121
      %v1630 = vpop.permute.xlu0 %1629
      %1631 = vrot.lane.b32.xlu0 %v1364, 121
      %v1632 = vpop.permute.xlu0 %1631
      %1633 = vrot.lane.b32.xlu0 %v1365, 121
      %v1634 = vpop.permute.xlu0 %1633
      %1635 = vrot.lane.b32.xlu0 %v1366, 121
      %v1636 = vpop.permute.xlu0 %1635
      %1637 = vrot.lane.b32.xlu0 %v1367, 121
      %v1638 = vpop.permute.xlu0 %1637
      %1639 = vrot.lane.b32.xlu0 %v1368, 121
      %v1640 = vpop.permute.xlu0 %1639
      %1641 = vrot.lane.b32.xlu0 %v1369, 121
      %v1642 = vpop.permute.xlu0 %1641
      %1643 = vrot.lane.b32.xlu0 %v1370, 121
      %v1644 = vpop.permute.xlu0 %1643
      %1645 = vrot.lane.b32.xlu0 %v1371, 121
      %v1646 = vpop.permute.xlu0 %1645
      %1647 = vrot.lane.b32.xlu0 %v1372, 121
      %v1648 = vpop.permute.xlu0 %1647
      %v1661 = vadd.f32 %v1613, %v1626
      %v1662 = vadd.f32 %v1614, %v1628
      %v1663 = vadd.f32 %v1615, %v1630
      %v1664 = vadd.f32 %v1616, %v1632
      %v1665 = vadd.f32 %v1617, %v1634
      %v1666 = vadd.f32 %v1618, %v1636
      %v1667 = vadd.f32 %v1619, %v1638
      %v1668 = vadd.f32 %v1620, %v1640
      %v1669 = vadd.f32 %v1621, %v1642
      %v1670 = vadd.f32 %v1622, %v1644
      %v1671 = vadd.f32 %v1623, %v1646
      %v1672 = vadd.f32 %v1624, %v1648
      %1673 = vrot.lane.b32.xlu0 %v1289, 120
      %v1674 = vpop.permute.xlu0 %1673
      %1675 = vrot.lane.b32.xlu0 %v1290, 120
      %v1676 = vpop.permute.xlu0 %1675
      %1677 = vrot.lane.b32.xlu0 %v1291, 120
      %v1678 = vpop.permute.xlu0 %1677
      %1679 = vrot.lane.b32.xlu0 %v1292, 120
      %v1680 = vpop.permute.xlu0 %1679
      %1681 = vrot.lane.b32.xlu0 %v1293, 120
      %v1682 = vpop.permute.xlu0 %1681
      %1683 = vrot.lane.b32.xlu0 %v1294, 120
      %v1684 = vpop.permute.xlu0 %1683
      %1685 = vrot.lane.b32.xlu0 %v1295, 120
      %v1686 = vpop.permute.xlu0 %1685
      %1687 = vrot.lane.b32.xlu0 %v1296, 120
      %v1688 = vpop.permute.xlu0 %1687
      %1689 = vrot.lane.b32.xlu0 %v1297, 120
      %v1690 = vpop.permute.xlu0 %1689
      %1691 = vrot.lane.b32.xlu0 %v1298, 120
      %v1692 = vpop.permute.xlu0 %1691
      %1693 = vrot.lane.b32.xlu0 %v1299, 120
      %v1694 = vpop.permute.xlu0 %1693
      %1695 = vrot.lane.b32.xlu0 %v1300, 120
      %v1696 = vpop.permute.xlu0 %1695
      %v1709 = vadd.f32 %v1661, %v1674
      %v1710 = vadd.f32 %v1662, %v1676
      %v1711 = vadd.f32 %v1663, %v1678
      %v1712 = vadd.f32 %v1664, %v1680
      %v1713 = vadd.f32 %v1665, %v1682
      %v1714 = vadd.f32 %v1666, %v1684
      %v1715 = vadd.f32 %v1667, %v1686
      %v1716 = vadd.f32 %v1668, %v1688
      %v1717 = vadd.f32 %v1669, %v1690
      %v1718 = vadd.f32 %v1670, %v1692
      %v1719 = vadd.f32 %v1671, %v1694
      %v1720 = vadd.f32 %v1672, %v1696
      %1721 = vrot.lane.b32.xlu0 %v1217, 119
      %v1722 = vpop.permute.xlu0 %1721
      %1723 = vrot.lane.b32.xlu0 %v1218, 119
      %v1724 = vpop.permute.xlu0 %1723
      %1725 = vrot.lane.b32.xlu0 %v1219, 119
      %v1726 = vpop.permute.xlu0 %1725
      %1727 = vrot.lane.b32.xlu0 %v1220, 119
      %v1728 = vpop.permute.xlu0 %1727
      %1729 = vrot.lane.b32.xlu0 %v1221, 119
      %v1730 = vpop.permute.xlu0 %1729
      %1731 = vrot.lane.b32.xlu0 %v1222, 119
      %v1732 = vpop.permute.xlu0 %1731
      %1733 = vrot.lane.b32.xlu0 %v1223, 119
      %v1734 = vpop.permute.xlu0 %1733
      %1735 = vrot.lane.b32.xlu0 %v1224, 119
      %v1736 = vpop.permute.xlu0 %1735
      %1737 = vrot.lane.b32.xlu0 %v1225, 119
      %v1738 = vpop.permute.xlu0 %1737
      %1739 = vrot.lane.b32.xlu0 %v1226, 119
      %v1740 = vpop.permute.xlu0 %1739
      %1741 = vrot.lane.b32.xlu0 %v1227, 119
      %v1742 = vpop.permute.xlu0 %1741
      %1743 = vrot.lane.b32.xlu0 %v1228, 119
      %v1744 = vpop.permute.xlu0 %1743
      %v1757 = vadd.f32 %v1709, %v1722
      %v1758 = vadd.f32 %v1710, %v1724
      %v1759 = vadd.f32 %v1711, %v1726
      %v1760 = vadd.f32 %v1712, %v1728
      %v1761 = vadd.f32 %v1713, %v1730
      %v1762 = vadd.f32 %v1714, %v1732
      %v1763 = vadd.f32 %v1715, %v1734
      %v1764 = vadd.f32 %v1716, %v1736
      %v1765 = vadd.f32 %v1717, %v1738
      %v1766 = vadd.f32 %v1718, %v1740
      %v1767 = vadd.f32 %v1719, %v1742
      %v1768 = vadd.f32 %v1720, %v1744
      %1781 = vrot.lane.b32.xlu0 %v1205, 118
      %v1782 = vpop.permute.xlu0 %1781
      %1783 = vrot.lane.b32.xlu0 %v1206, 118
      %v1784 = vpop.permute.xlu0 %1783
      %1785 = vrot.lane.b32.xlu0 %v1207, 118
      %v1786 = vpop.permute.xlu0 %1785
      %1787 = vrot.lane.b32.xlu0 %v1208, 118
      %v1788 = vpop.permute.xlu0 %1787
      %1789 = vrot.lane.b32.xlu0 %v1209, 118
      %v1790 = vpop.permute.xlu0 %1789
      %1791 = vrot.lane.b32.xlu0 %v1210, 118
      %v1792 = vpop.permute.xlu0 %1791
      %1793 = vrot.lane.b32.xlu0 %v1211, 118
      %v1794 = vpop.permute.xlu0 %1793
      %1795 = vrot.lane.b32.xlu0 %v1212, 118
      %v1796 = vpop.permute.xlu0 %1795
      %1797 = vrot.lane.b32.xlu0 %v1213, 118
      %v1798 = vpop.permute.xlu0 %1797
      %1799 = vrot.lane.b32.xlu0 %v1214, 118
      %v1800 = vpop.permute.xlu0 %1799
      %1801 = vrot.lane.b32.xlu0 %v1215, 118
      %v1802 = vpop.permute.xlu0 %1801
      %1803 = vrot.lane.b32.xlu0 %v1216, 118
      %v1804 = vpop.permute.xlu0 %1803
      %v1817 = vadd.f32 %v1757, %v1782
      %v1818 = vadd.f32 %v1758, %v1784
      %v1819 = vadd.f32 %v1759, %v1786
      %v1820 = vadd.f32 %v1760, %v1788
      %v1821 = vadd.f32 %v1761, %v1790
      %v1822 = vadd.f32 %v1762, %v1792
      %v1823 = vadd.f32 %v1763, %v1794
      %v1824 = vadd.f32 %v1764, %v1796
      %v1825 = vadd.f32 %v1765, %v1798
      %v1826 = vadd.f32 %v1766, %v1800
      %v1827 = vadd.f32 %v1767, %v1802
      %v1828 = vadd.f32 %v1768, %v1804
      %v1829 = vmul.f32 %v1817, 0.0010283802
      %v1830 = vmul.f32 %v1818, 0.0010283802
      %v1831 = vmul.f32 %v1821, 0.0010283802
      %v1832 = vmul.f32 %v1822, 0.0010283802
      %v1833 = vmul.f32 %v1825, 0.0010283802
      %v1834 = vmul.f32 %v1826, 0.0010283802
      %v1835 = vmul.f32 %v1817, 0.0075987587
      %v1836 = vmul.f32 %v1818, 0.0075987587
      %v1837 = vmul.f32 %v1819, 0.0075987587
      %v1838 = vmul.f32 %v1821, 0.0075987587
      %v1839 = vmul.f32 %v1822, 0.0075987587
      %v1840 = vmul.f32 %v1823, 0.0075987587
      %v1841 = vmul.f32 %v1825, 0.0075987587
      %v1842 = vmul.f32 %v1826, 0.0075987587
      %v1843 = vmul.f32 %v1827, 0.0075987587
      %v1853 = vrot.slane %v1835, 1
      %v1854 = vrot.slane %v1836, 1
      %v1855 = vsel %vm868, %v1853, %v1854
      %v1856 = vrot.slane %v1837, 1
      %v1857 = vsel %vm868, %v1854, %v1856
      %v1858 = vrot.slane %v1838, 1
      %v1859 = vrot.slane %v1839, 1
      %v1860 = vsel %vm868, %v1858, %v1859
      %v1861 = vrot.slane %v1840, 1
      %v1862 = vsel %vm868, %v1859, %v1861
      %v1863 = vrot.slane %v1841, 1
      %v1864 = vrot.slane %v1842, 1
      %v1865 = vsel %vm868, %v1863, %v1864
      %v1866 = vrot.slane %v1843, 1
      %v1867 = vsel %vm868, %v1864, %v1866
      %v1874 = vadd.f32 %v1829, %v1855
      %v1875 = vadd.f32 %v1830, %v1857
      %v1876 = vadd.f32 %v1831, %v1860
      %v1877 = vadd.f32 %v1832, %v1862
      %v1878 = vadd.f32 %v1833, %v1865
      %v1879 = vadd.f32 %v1834, %v1867
      %v1880 = vmul.f32 %v1817, 0.036000773
      %v1881 = vmul.f32 %v1818, 0.036000773
      %v1882 = vmul.f32 %v1819, 0.036000773
      %v1883 = vmul.f32 %v1821, 0.036000773
      %v1884 = vmul.f32 %v1822, 0.036000773
      %v1885 = vmul.f32 %v1823, 0.036000773
      %v1886 = vmul.f32 %v1825, 0.036000773
      %v1887 = vmul.f32 %v1826, 0.036000773
      %v1888 = vmul.f32 %v1827, 0.036000773
      %v1898 = vrot.slane %v1880, 2
      %v1899 = vrot.slane %v1881, 2
      %v1900 = vsel %vm914, %v1898, %v1899
      %v1901 = vrot.slane %v1882, 2
      %v1902 = vsel %vm914, %v1899, %v1901
      %v1903 = vrot.slane %v1883, 2
      %v1904 = vrot.slane %v1884, 2
      %v1905 = vsel %vm914, %v1903, %v1904
      %v1906 = vrot.slane %v1885, 2
      %v1907 = vsel %vm914, %v1904, %v1906
      %v1908 = vrot.slane %v1886, 2
      %v1909 = vrot.slane %v1887, 2
      %v1910 = vsel %vm914, %v1908, %v1909
      %v1911 = vrot.slane %v1888, 2
      %v1912 = vsel %vm914, %v1909, %v1911
      %v1919 = vadd.f32 %v1874, %v1900
      %v1920 = vadd.f32 %v1875, %v1902
      %v1921 = vadd.f32 %v1876, %v1905
      %v1922 = vadd.f32 %v1877, %v1907
      %v1923 = vadd.f32 %v1878, %v1910
      %v1924 = vadd.f32 %v1879, %v1912
      %v1925 = vmul.f32 %v1817, 0.109360695
      %v1926 = vmul.f32 %v1818, 0.109360695
      %v1927 = vmul.f32 %v1819, 0.109360695
      %v1928 = vmul.f32 %v1821, 0.109360695
      %v1929 = vmul.f32 %v1822, 0.109360695
      %v1930 = vmul.f32 %v1823, 0.109360695
      %v1931 = vmul.f32 %v1825, 0.109360695
      %v1932 = vmul.f32 %v1826, 0.109360695
      %v1933 = vmul.f32 %v1827, 0.109360695
      %v1943 = vrot.slane %v1925, 3
      %v1944 = vrot.slane %v1926, 3
      %v1945 = vsel %vm960, %v1943, %v1944
      %v1946 = vrot.slane %v1927, 3
      %v1947 = vsel %vm960, %v1944, %v1946
      %v1948 = vrot.slane %v1928, 3
      %v1949 = vrot.slane %v1929, 3
      %v1950 = vsel %vm960, %v1948, %v1949
      %v1951 = vrot.slane %v1930, 3
      %v1952 = vsel %vm960, %v1949, %v1951
      %v1953 = vrot.slane %v1931, 3
      %v1954 = vrot.slane %v1932, 3
      %v1955 = vsel %vm960, %v1953, %v1954
      %v1956 = vrot.slane %v1933, 3
      %v1957 = vsel %vm960, %v1954, %v1956
      %v1964 = vadd.f32 %v1919, %v1945
      %v1965 = vadd.f32 %v1920, %v1947
      %v1966 = vadd.f32 %v1921, %v1950
      %v1967 = vadd.f32 %v1922, %v1952
      %v1968 = vadd.f32 %v1923, %v1955
      %v1969 = vadd.f32 %v1924, %v1957
      %v1970 = vmul.f32 %v1817, 0.21300554
      %v1971 = vmul.f32 %v1818, 0.21300554
      %v1972 = vmul.f32 %v1819, 0.21300554
      %v1973 = vmul.f32 %v1821, 0.21300554
      %v1974 = vmul.f32 %v1822, 0.21300554
      %v1975 = vmul.f32 %v1823, 0.21300554
      %v1976 = vmul.f32 %v1825, 0.21300554
      %v1977 = vmul.f32 %v1826, 0.21300554
      %v1978 = vmul.f32 %v1827, 0.21300554
      %v1988 = vrot.slane %v1970, 4
      %v1989 = vrot.slane %v1971, 4
      %v1990 = vsel %vm1006, %v1988, %v1989
      %v1991 = vrot.slane %v1972, 4
      %v1992 = vsel %vm1006, %v1989, %v1991
      %v1993 = vrot.slane %v1973, 4
      %v1994 = vrot.slane %v1974, 4
      %v1995 = vsel %vm1006, %v1993, %v1994
      %v1996 = vrot.slane %v1975, 4
      %v1997 = vsel %vm1006, %v1994, %v1996
      %v1998 = vrot.slane %v1976, 4
      %v1999 = vrot.slane %v1977, 4
      %v2000 = vsel %vm1006, %v1998, %v1999
      %v2001 = vrot.slane %v1978, 4
      %v2002 = vsel %vm1006, %v1999, %v2001
      %v2009 = vadd.f32 %v1964, %v1990
      %v2010 = vadd.f32 %v1965, %v1992
      %v2011 = vadd.f32 %v1966, %v1995
      %v2012 = vadd.f32 %v1967, %v1997
      %v2013 = vadd.f32 %v1968, %v2000
      %v2014 = vadd.f32 %v1969, %v2002
      %v2015 = vmul.f32 %v1817, 0.26601174
      %v2016 = vmul.f32 %v1818, 0.26601174
      %v2017 = vmul.f32 %v1819, 0.26601174
      %v2018 = vmul.f32 %v1821, 0.26601174
      %v2019 = vmul.f32 %v1822, 0.26601174
      %v2020 = vmul.f32 %v1823, 0.26601174
      %v2021 = vmul.f32 %v1825, 0.26601174
      %v2022 = vmul.f32 %v1826, 0.26601174
      %v2023 = vmul.f32 %v1827, 0.26601174
      %v2033 = vrot.slane %v2015, 5
      %v2034 = vrot.slane %v2016, 5
      %v2035 = vsel %vm1052, %v2033, %v2034
      %v2036 = vrot.slane %v2017, 5
      %v2037 = vsel %vm1052, %v2034, %v2036
      %v2038 = vrot.slane %v2018, 5
      %v2039 = vrot.slane %v2019, 5
      %v2040 = vsel %vm1052, %v2038, %v2039
      %v2041 = vrot.slane %v2020, 5
      %v2042 = vsel %vm1052, %v2039, %v2041
      %v2043 = vrot.slane %v2021, 5
      %v2044 = vrot.slane %v2022, 5
      %v2045 = vsel %vm1052, %v2043, %v2044
      %v2046 = vrot.slane %v2023, 5
      %v2047 = vsel %vm1052, %v2044, %v2046
      %v2054 = vadd.f32 %v2009, %v2035
      %v2055 = vadd.f32 %v2010, %v2037
      %v2056 = vadd.f32 %v2011, %v2040
      %v2057 = vadd.f32 %v2012, %v2042
      %v2058 = vadd.f32 %v2013, %v2045
      %v2059 = vadd.f32 %v2014, %v2047
      %v2060 = vrot.slane %v1970, 6
      %v2061 = vrot.slane %v1971, 6
      %v2062 = vsel %vm1080, %v2060, %v2061
      %v2063 = vrot.slane %v1972, 6
      %v2064 = vsel %vm1080, %v2061, %v2063
      %v2065 = vrot.slane %v1973, 6
      %v2066 = vrot.slane %v1974, 6
      %v2067 = vsel %vm1080, %v2065, %v2066
      %v2068 = vrot.slane %v1975, 6
      %v2069 = vsel %vm1080, %v2066, %v2068
      %v2070 = vrot.slane %v1976, 6
      %v2071 = vrot.slane %v1977, 6
      %v2072 = vsel %vm1080, %v2070, %v2071
      %v2073 = vrot.slane %v1978, 6
      %v2074 = vsel %vm1080, %v2071, %v2073
      %v2081 = vadd.f32 %v2054, %v2062
      %v2082 = vadd.f32 %v2055, %v2064
      %v2083 = vadd.f32 %v2056, %v2067
      %v2084 = vadd.f32 %v2057, %v2069
      %v2085 = vadd.f32 %v2058, %v2072
      %v2086 = vadd.f32 %v2059, %v2074
      %v2087 = vrot.slane %v1925, 7
      %v2088 = vrot.slane %v1926, 7
      %v2089 = vsel %vm1108, %v2087, %v2088
      %v2090 = vrot.slane %v1927, 7
      %v2091 = vsel %vm1108, %v2088, %v2090
      %v2092 = vrot.slane %v1928, 7
      %v2093 = vrot.slane %v1929, 7
      %v2094 = vsel %vm1108, %v2092, %v2093
      %v2095 = vrot.slane %v1930, 7
      %v2096 = vsel %vm1108, %v2093, %v2095
      %v2097 = vrot.slane %v1931, 7
      %v2098 = vrot.slane %v1932, 7
      %v2099 = vsel %vm1108, %v2097, %v2098
      %v2100 = vrot.slane %v1933, 7
      %v2101 = vsel %vm1108, %v2098, %v2100
      %v2108 = vadd.f32 %v2081, %v2089
      %v2109 = vadd.f32 %v2082, %v2091
      %v2110 = vadd.f32 %v2083, %v2094
      %v2111 = vadd.f32 %v2084, %v2096
      %v2112 = vadd.f32 %v2085, %v2099
      %v2113 = vadd.f32 %v2086, %v2101
      %v2114 = vadd.f32 %v2108, %v1881
      %v2115 = vadd.f32 %v2109, %v1882
      %v2116 = vadd.f32 %v2110, %v1884
      %v2117 = vadd.f32 %v2111, %v1885
      %v2118 = vadd.f32 %v2112, %v1887
      %v2119 = vadd.f32 %v2113, %v1888
      %v2120 = vmul.f32 %v1820, 0.0075987587
      %v2121 = vmul.f32 %v1824, 0.0075987587
      %v2122 = vmul.f32 %v1828, 0.0075987587
      %v2126 = vrot.slane %v2120, 1
      %v2127 = vsel %vm868, %v1856, %v2126
      %v2128 = vrot.slane %v2121, 1
      %v2129 = vsel %vm868, %v1861, %v2128
      %v2130 = vrot.slane %v2122, 1
      %v2131 = vsel %vm868, %v1866, %v2130
      %v2135 = vadd.f32 %v2114, %v1857
      %v2136 = vadd.f32 %v2115, %v2127
      %v2137 = vadd.f32 %v2116, %v1862
      %v2138 = vadd.f32 %v2117, %v2129
      %v2139 = vadd.f32 %v2118, %v1867
      %v2140 = vadd.f32 %v2119, %v2131
      %v2141 = vmul.f32 %v1819, 0.0010283802
      %v2142 = vmul.f32 %v1820, 0.0010283802
      %v2143 = vmul.f32 %v1823, 0.0010283802
      %v2144 = vmul.f32 %v1824, 0.0010283802
      %v2145 = vmul.f32 %v1827, 0.0010283802
      %v2146 = vmul.f32 %v1828, 0.0010283802
      %v2156 = vrot.slane %v1830, 2
      %v2157 = vrot.slane %v2141, 2
      %v2158 = vsel %vm914, %v2156, %v2157
      %v2159 = vrot.slane %v2142, 2
      %v2160 = vsel %vm914, %v2157, %v2159
      %v2161 = vrot.slane %v1832, 2
      %v2162 = vrot.slane %v2143, 2
      %v2163 = vsel %vm914, %v2161, %v2162
      %v2164 = vrot.slane %v2144, 2
      %v2165 = vsel %vm914, %v2162, %v2164
      %v2166 = vrot.slane %v1834, 2
      %v2167 = vrot.slane %v2145, 2
      %v2168 = vsel %vm914, %v2166, %v2167
      %v2169 = vrot.slane %v2146, 2
      %v2170 = vsel %vm914, %v2167, %v2169
      %v2177 = vadd.f32 %v2135, %v2158
      %v2178 = vadd.f32 %v2136, %v2160
      %v2179 = vadd.f32 %v2137, %v2163
      %v2180 = vadd.f32 %v2138, %v2165
      %v2181 = vadd.f32 %v2139, %v2168
      %v2182 = vadd.f32 %v2140, %v2170
      %v2183 = vmul.f32 %v184, 0.0010283802
      %v2184 = vmul.f32 %v185, 0.0010283802
      %v2185 = vmul.f32 %v186, 0.0010283802
      %v2186 = vmul.f32 %v187, 0.0010283802
      %v2187 = vmul.f32 %v188, 0.0010283802
      %v2188 = vmul.f32 %v189, 0.0010283802
      %v2189 = vmul.f32 %v190, 0.0010283802
      %v2190 = vmul.f32 %v191, 0.0010283802
      %v2191 = vmul.f32 %v192, 0.0010283802
      %v2192 = vmul.f32 %v193, 0.0010283802
      %v2193 = vmul.f32 %v194, 0.0010283802
      %v2194 = vmul.f32 %v195, 0.0010283802
      %v2195 = vmul.f32 %v184, 0.0075987587
      %v2196 = vmul.f32 %v185, 0.0075987587
      %v2197 = vmul.f32 %v186, 0.0075987587
      %v2198 = vmul.f32 %v187, 0.0075987587
      %v2199 = vmul.f32 %v188, 0.0075987587
      %v2200 = vmul.f32 %v189, 0.0075987587
      %v2201 = vmul.f32 %v190, 0.0075987587
      %v2202 = vmul.f32 %v191, 0.0075987587
      %v2203 = vmul.f32 %v192, 0.0075987587
      %v2204 = vmul.f32 %v193, 0.0075987587
      %v2205 = vmul.f32 %v194, 0.0075987587
      %v2206 = vmul.f32 %v195, 0.0075987587
      %2219 = vrot.lane.b32.xlu0 %v2195, 127
      %v2220 = vpop.permute.xlu0 %2219
      %2221 = vrot.lane.b32.xlu0 %v2196, 127
      %v2222 = vpop.permute.xlu0 %2221
      %2223 = vrot.lane.b32.xlu0 %v2197, 127
      %v2224 = vpop.permute.xlu0 %2223
      %2225 = vrot.lane.b32.xlu0 %v2198, 127
      %v2226 = vpop.permute.xlu0 %2225
      %2227 = vrot.lane.b32.xlu0 %v2199, 127
      %v2228 = vpop.permute.xlu0 %2227
      %2229 = vrot.lane.b32.xlu0 %v2200, 127
      %v2230 = vpop.permute.xlu0 %2229
      %2231 = vrot.lane.b32.xlu0 %v2201, 127
      %v2232 = vpop.permute.xlu0 %2231
      %2233 = vrot.lane.b32.xlu0 %v2202, 127
      %v2234 = vpop.permute.xlu0 %2233
      %2235 = vrot.lane.b32.xlu0 %v2203, 127
      %v2236 = vpop.permute.xlu0 %2235
      %2237 = vrot.lane.b32.xlu0 %v2204, 127
      %v2238 = vpop.permute.xlu0 %2237
      %2239 = vrot.lane.b32.xlu0 %v2205, 127
      %v2240 = vpop.permute.xlu0 %2239
      %2241 = vrot.lane.b32.xlu0 %v2206, 127
      %v2242 = vpop.permute.xlu0 %2241
      %v2255 = vadd.f32 %v2183, %v2220
      %v2256 = vadd.f32 %v2184, %v2222
      %v2257 = vadd.f32 %v2185, %v2224
      %v2258 = vadd.f32 %v2186, %v2226
      %v2259 = vadd.f32 %v2187, %v2228
      %v2260 = vadd.f32 %v2188, %v2230
      %v2261 = vadd.f32 %v2189, %v2232
      %v2262 = vadd.f32 %v2190, %v2234
      %v2263 = vadd.f32 %v2191, %v2236
      %v2264 = vadd.f32 %v2192, %v2238
      %v2265 = vadd.f32 %v2193, %v2240
      %v2266 = vadd.f32 %v2194, %v2242
      %v2267 = vmul.f32 %v184, 0.036000773
      %v2268 = vmul.f32 %v185, 0.036000773
      %v2269 = vmul.f32 %v186, 0.036000773
      %v2270 = vmul.f32 %v187, 0.036000773
      %v2271 = vmul.f32 %v188, 0.036000773
      %v2272 = vmul.f32 %v189, 0.036000773
      %v2273 = vmul.f32 %v190, 0.036000773
      %v2274 = vmul.f32 %v191, 0.036000773
      %v2275 = vmul.f32 %v192, 0.036000773
      %v2276 = vmul.f32 %v193, 0.036000773
      %v2277 = vmul.f32 %v194, 0.036000773
      %v2278 = vmul.f32 %v195, 0.036000773
      %2291 = vrot.lane.b32.xlu0 %v2267, 126
      %v2292 = vpop.permute.xlu0 %2291
      %2293 = vrot.lane.b32.xlu0 %v2268, 126
      %v2294 = vpop.permute.xlu0 %2293
      %2295 = vrot.lane.b32.xlu0 %v2269, 126
      %v2296 = vpop.permute.xlu0 %2295
      %2297 = vrot.lane.b32.xlu0 %v2270, 126
      %v2298 = vpop.permute.xlu0 %2297
      %2299 = vrot.lane.b32.xlu0 %v2271, 126
      %v2300 = vpop.permute.xlu0 %2299
      %2301 = vrot.lane.b32.xlu0 %v2272, 126
      %v2302 = vpop.permute.xlu0 %2301
      %2303 = vrot.lane.b32.xlu0 %v2273, 126
      %v2304 = vpop.permute.xlu0 %2303
      %2305 = vrot.lane.b32.xlu0 %v2274, 126
      %v2306 = vpop.permute.xlu0 %2305
      %2307 = vrot.lane.b32.xlu0 %v2275, 126
      %v2308 = vpop.permute.xlu0 %2307
      %2309 = vrot.lane.b32.xlu0 %v2276, 126
      %v2310 = vpop.permute.xlu0 %2309
      %2311 = vrot.lane.b32.xlu0 %v2277, 126
      %v2312 = vpop.permute.xlu0 %2311
      %2313 = vrot.lane.b32.xlu0 %v2278, 126
      %v2314 = vpop.permute.xlu0 %2313
      %v2327 = vadd.f32 %v2255, %v2292
      %v2328 = vadd.f32 %v2256, %v2294
      %v2329 = vadd.f32 %v2257, %v2296
      %v2330 = vadd.f32 %v2258, %v2298
      %v2331 = vadd.f32 %v2259, %v2300
      %v2332 = vadd.f32 %v2260, %v2302
      %v2333 = vadd.f32 %v2261, %v2304
      %v2334 = vadd.f32 %v2262, %v2306
      %v2335 = vadd.f32 %v2263, %v2308
      %v2336 = vadd.f32 %v2264, %v2310
      %v2337 = vadd.f32 %v2265, %v2312
      %v2338 = vadd.f32 %v2266, %v2314
      %v2339 = vmul.f32 %v184, 0.109360695
      %v2340 = vmul.f32 %v185, 0.109360695
      %v2341 = vmul.f32 %v186, 0.109360695
      %v2342 = vmul.f32 %v187, 0.109360695
      %v2343 = vmul.f32 %v188, 0.109360695
      %v2344 = vmul.f32 %v189, 0.109360695
      %v2345 = vmul.f32 %v190, 0.109360695
      %v2346 = vmul.f32 %v191, 0.109360695
      %v2347 = vmul.f32 %v192, 0.109360695
      %v2348 = vmul.f32 %v193, 0.109360695
      %v2349 = vmul.f32 %v194, 0.109360695
      %v2350 = vmul.f32 %v195, 0.109360695
      %2363 = vrot.lane.b32.xlu0 %v2339, 125
      %v2364 = vpop.permute.xlu0 %2363
      %2365 = vrot.lane.b32.xlu0 %v2340, 125
      %v2366 = vpop.permute.xlu0 %2365
      %2367 = vrot.lane.b32.xlu0 %v2341, 125
      %v2368 = vpop.permute.xlu0 %2367
      %2369 = vrot.lane.b32.xlu0 %v2342, 125
      %v2370 = vpop.permute.xlu0 %2369
      %2371 = vrot.lane.b32.xlu0 %v2343, 125
      %v2372 = vpop.permute.xlu0 %2371
      %2373 = vrot.lane.b32.xlu0 %v2344, 125
      %v2374 = vpop.permute.xlu0 %2373
      %2375 = vrot.lane.b32.xlu0 %v2345, 125
      %v2376 = vpop.permute.xlu0 %2375
      %2377 = vrot.lane.b32.xlu0 %v2346, 125
      %v2378 = vpop.permute.xlu0 %2377
      %2379 = vrot.lane.b32.xlu0 %v2347, 125
      %v2380 = vpop.permute.xlu0 %2379
      %2381 = vrot.lane.b32.xlu0 %v2348, 125
      %v2382 = vpop.permute.xlu0 %2381
      %2383 = vrot.lane.b32.xlu0 %v2349, 125
      %v2384 = vpop.permute.xlu0 %2383
      %2385 = vrot.lane.b32.xlu0 %v2350, 125
      %v2386 = vpop.permute.xlu0 %2385
      %v2399 = vadd.f32 %v2327, %v2364
      %v2400 = vadd.f32 %v2328, %v2366
      %v2401 = vadd.f32 %v2329, %v2368
      %v2402 = vadd.f32 %v2330, %v2370
      %v2403 = vadd.f32 %v2331, %v2372
      %v2404 = vadd.f32 %v2332, %v2374
      %v2405 = vadd.f32 %v2333, %v2376
      %v2406 = vadd.f32 %v2334, %v2378
      %v2407 = vadd.f32 %v2335, %v2380
      %v2408 = vadd.f32 %v2336, %v2382
      %v2409 = vadd.f32 %v2337, %v2384
      %v2410 = vadd.f32 %v2338, %v2386
      %v2411 = vmul.f32 %v184, 0.21300554
      %v2412 = vmul.f32 %v185, 0.21300554
      %v2413 = vmul.f32 %v186, 0.21300554
      %v2414 = vmul.f32 %v187, 0.21300554
      %v2415 = vmul.f32 %v188, 0.21300554
      %v2416 = vmul.f32 %v189, 0.21300554
      %v2417 = vmul.f32 %v190, 0.21300554
      %v2418 = vmul.f32 %v191, 0.21300554
      %v2419 = vmul.f32 %v192, 0.21300554
      %v2420 = vmul.f32 %v193, 0.21300554
      %v2421 = vmul.f32 %v194, 0.21300554
      %v2422 = vmul.f32 %v195, 0.21300554
      %2435 = vrot.lane.b32.xlu0 %v2411, 124
      %v2436 = vpop.permute.xlu0 %2435
      %2437 = vrot.lane.b32.xlu0 %v2412, 124
      %v2438 = vpop.permute.xlu0 %2437
      %2439 = vrot.lane.b32.xlu0 %v2413, 124
      %v2440 = vpop.permute.xlu0 %2439
      %2441 = vrot.lane.b32.xlu0 %v2414, 124
      %v2442 = vpop.permute.xlu0 %2441
      %2443 = vrot.lane.b32.xlu0 %v2415, 124
      %v2444 = vpop.permute.xlu0 %2443
      %2445 = vrot.lane.b32.xlu0 %v2416, 124
      %v2446 = vpop.permute.xlu0 %2445
      %2447 = vrot.lane.b32.xlu0 %v2417, 124
      %v2448 = vpop.permute.xlu0 %2447
      %2449 = vrot.lane.b32.xlu0 %v2418, 124
      %v2450 = vpop.permute.xlu0 %2449
      %2451 = vrot.lane.b32.xlu0 %v2419, 124
      %v2452 = vpop.permute.xlu0 %2451
      %2453 = vrot.lane.b32.xlu0 %v2420, 124
      %v2454 = vpop.permute.xlu0 %2453
      %2455 = vrot.lane.b32.xlu0 %v2421, 124
      %v2456 = vpop.permute.xlu0 %2455
      %2457 = vrot.lane.b32.xlu0 %v2422, 124
      %v2458 = vpop.permute.xlu0 %2457
      %v2471 = vadd.f32 %v2399, %v2436
      %v2472 = vadd.f32 %v2400, %v2438
      %v2473 = vadd.f32 %v2401, %v2440
      %v2474 = vadd.f32 %v2402, %v2442
      %v2475 = vadd.f32 %v2403, %v2444
      %v2476 = vadd.f32 %v2404, %v2446
      %v2477 = vadd.f32 %v2405, %v2448
      %v2478 = vadd.f32 %v2406, %v2450
      %v2479 = vadd.f32 %v2407, %v2452
      %v2480 = vadd.f32 %v2408, %v2454
      %v2481 = vadd.f32 %v2409, %v2456
      %v2482 = vadd.f32 %v2410, %v2458
      %v2483 = vmul.f32 %v184, 0.26601174
      %v2484 = vmul.f32 %v185, 0.26601174
      %v2485 = vmul.f32 %v186, 0.26601174
      %v2486 = vmul.f32 %v187, 0.26601174
      %v2487 = vmul.f32 %v188, 0.26601174
      %v2488 = vmul.f32 %v189, 0.26601174
      %v2489 = vmul.f32 %v190, 0.26601174
      %v2490 = vmul.f32 %v191, 0.26601174
      %v2491 = vmul.f32 %v192, 0.26601174
      %v2492 = vmul.f32 %v193, 0.26601174
      %v2493 = vmul.f32 %v194, 0.26601174
      %v2494 = vmul.f32 %v195, 0.26601174
      %2507 = vrot.lane.b32.xlu0 %v2483, 123
      %v2508 = vpop.permute.xlu0 %2507
      %2509 = vrot.lane.b32.xlu0 %v2484, 123
      %v2510 = vpop.permute.xlu0 %2509
      %2511 = vrot.lane.b32.xlu0 %v2485, 123
      %v2512 = vpop.permute.xlu0 %2511
      %2513 = vrot.lane.b32.xlu0 %v2486, 123
      %v2514 = vpop.permute.xlu0 %2513
      %2515 = vrot.lane.b32.xlu0 %v2487, 123
      %v2516 = vpop.permute.xlu0 %2515
      %2517 = vrot.lane.b32.xlu0 %v2488, 123
      %v2518 = vpop.permute.xlu0 %2517
      %2519 = vrot.lane.b32.xlu0 %v2489, 123
      %v2520 = vpop.permute.xlu0 %2519
      %2521 = vrot.lane.b32.xlu0 %v2490, 123
      %v2522 = vpop.permute.xlu0 %2521
      %2523 = vrot.lane.b32.xlu0 %v2491, 123
      %v2524 = vpop.permute.xlu0 %2523
      %2525 = vrot.lane.b32.xlu0 %v2492, 123
      %v2526 = vpop.permute.xlu0 %2525
      %2527 = vrot.lane.b32.xlu0 %v2493, 123
      %v2528 = vpop.permute.xlu0 %2527
      %2529 = vrot.lane.b32.xlu0 %v2494, 123
      %v2530 = vpop.permute.xlu0 %2529
      %v2543 = vadd.f32 %v2471, %v2508
      %v2544 = vadd.f32 %v2472, %v2510
      %v2545 = vadd.f32 %v2473, %v2512
      %v2546 = vadd.f32 %v2474, %v2514
      %v2547 = vadd.f32 %v2475, %v2516
      %v2548 = vadd.f32 %v2476, %v2518
      %v2549 = vadd.f32 %v2477, %v2520
      %v2550 = vadd.f32 %v2478, %v2522
      %v2551 = vadd.f32 %v2479, %v2524
      %v2552 = vadd.f32 %v2480, %v2526
      %v2553 = vadd.f32 %v2481, %v2528
      %v2554 = vadd.f32 %v2482, %v2530
      %2555 = vrot.lane.b32.xlu0 %v2411, 122
      %v2556 = vpop.permute.xlu0 %2555
      %2557 = vrot.lane.b32.xlu0 %v2412, 122
      %v2558 = vpop.permute.xlu0 %2557
      %2559 = vrot.lane.b32.xlu0 %v2413, 122
      %v2560 = vpop.permute.xlu0 %2559
      %2561 = vrot.lane.b32.xlu0 %v2414, 122
      %v2562 = vpop.permute.xlu0 %2561
      %2563 = vrot.lane.b32.xlu0 %v2415, 122
      %v2564 = vpop.permute.xlu0 %2563
      %2565 = vrot.lane.b32.xlu0 %v2416, 122
      %v2566 = vpop.permute.xlu0 %2565
      %2567 = vrot.lane.b32.xlu0 %v2417, 122
      %v2568 = vpop.permute.xlu0 %2567
      %2569 = vrot.lane.b32.xlu0 %v2418, 122
      %v2570 = vpop.permute.xlu0 %2569
      %2571 = vrot.lane.b32.xlu0 %v2419, 122
      %v2572 = vpop.permute.xlu0 %2571
      %2573 = vrot.lane.b32.xlu0 %v2420, 122
      %v2574 = vpop.permute.xlu0 %2573
      %2575 = vrot.lane.b32.xlu0 %v2421, 122
      %v2576 = vpop.permute.xlu0 %2575
      %2577 = vrot.lane.b32.xlu0 %v2422, 122
      %v2578 = vpop.permute.xlu0 %2577
      %v2591 = vadd.f32 %v2543, %v2556
      %v2592 = vadd.f32 %v2544, %v2558
      %v2593 = vadd.f32 %v2545, %v2560
      %v2594 = vadd.f32 %v2546, %v2562
      %v2595 = vadd.f32 %v2547, %v2564
      %v2596 = vadd.f32 %v2548, %v2566
      %v2597 = vadd.f32 %v2549, %v2568
      %v2598 = vadd.f32 %v2550, %v2570
      %v2599 = vadd.f32 %v2551, %v2572
      %v2600 = vadd.f32 %v2552, %v2574
      %v2601 = vadd.f32 %v2553, %v2576
      %v2602 = vadd.f32 %v2554, %v2578
      %2603 = vrot.lane.b32.xlu0 %v2339, 121
      %v2604 = vpop.permute.xlu0 %2603
      %2605 = vrot.lane.b32.xlu0 %v2340, 121
      %v2606 = vpop.permute.xlu0 %2605
      %2607 = vrot.lane.b32.xlu0 %v2341, 121
      %v2608 = vpop.permute.xlu0 %2607
      %2609 = vrot.lane.b32.xlu0 %v2342, 121
      %v2610 = vpop.permute.xlu0 %2609
      %2611 = vrot.lane.b32.xlu0 %v2343, 121
      %v2612 = vpop.permute.xlu0 %2611
      %2613 = vrot.lane.b32.xlu0 %v2344, 121
      %v2614 = vpop.permute.xlu0 %2613
      %2615 = vrot.lane.b32.xlu0 %v2345, 121
      %v2616 = vpop.permute.xlu0 %2615
      %2617 = vrot.lane.b32.xlu0 %v2346, 121
      %v2618 = vpop.permute.xlu0 %2617
      %2619 = vrot.lane.b32.xlu0 %v2347, 121
      %v2620 = vpop.permute.xlu0 %2619
      %2621 = vrot.lane.b32.xlu0 %v2348, 121
      %v2622 = vpop.permute.xlu0 %2621
      %2623 = vrot.lane.b32.xlu0 %v2349, 121
      %v2624 = vpop.permute.xlu0 %2623
      %2625 = vrot.lane.b32.xlu0 %v2350, 121
      %v2626 = vpop.permute.xlu0 %2625
      %v2639 = vadd.f32 %v2591, %v2604
      %v2640 = vadd.f32 %v2592, %v2606
      %v2641 = vadd.f32 %v2593, %v2608
      %v2642 = vadd.f32 %v2594, %v2610
      %v2643 = vadd.f32 %v2595, %v2612
      %v2644 = vadd.f32 %v2596, %v2614
      %v2645 = vadd.f32 %v2597, %v2616
      %v2646 = vadd.f32 %v2598, %v2618
      %v2647 = vadd.f32 %v2599, %v2620
      %v2648 = vadd.f32 %v2600, %v2622
      %v2649 = vadd.f32 %v2601, %v2624
      %v2650 = vadd.f32 %v2602, %v2626
      %2651 = vrot.lane.b32.xlu0 %v2267, 120
      %v2652 = vpop.permute.xlu0 %2651
      %2653 = vrot.lane.b32.xlu0 %v2268, 120
      %v2654 = vpop.permute.xlu0 %2653
      %2655 = vrot.lane.b32.xlu0 %v2269, 120
      %v2656 = vpop.permute.xlu0 %2655
      %2657 = vrot.lane.b32.xlu0 %v2270, 120
      %v2658 = vpop.permute.xlu0 %2657
      %2659 = vrot.lane.b32.xlu0 %v2271, 120
      %v2660 = vpop.permute.xlu0 %2659
      %2661 = vrot.lane.b32.xlu0 %v2272, 120
      %v2662 = vpop.permute.xlu0 %2661
      %2663 = vrot.lane.b32.xlu0 %v2273, 120
      %v2664 = vpop.permute.xlu0 %2663
      %2665 = vrot.lane.b32.xlu0 %v2274, 120
      %v2666 = vpop.permute.xlu0 %2665
      %2667 = vrot.lane.b32.xlu0 %v2275, 120
      %v2668 = vpop.permute.xlu0 %2667
      %2669 = vrot.lane.b32.xlu0 %v2276, 120
      %v2670 = vpop.permute.xlu0 %2669
      %2671 = vrot.lane.b32.xlu0 %v2277, 120
      %v2672 = vpop.permute.xlu0 %2671
      %2673 = vrot.lane.b32.xlu0 %v2278, 120
      %v2674 = vpop.permute.xlu0 %2673
      %v2687 = vadd.f32 %v2639, %v2652
      %v2688 = vadd.f32 %v2640, %v2654
      %v2689 = vadd.f32 %v2641, %v2656
      %v2690 = vadd.f32 %v2642, %v2658
      %v2691 = vadd.f32 %v2643, %v2660
      %v2692 = vadd.f32 %v2644, %v2662
      %v2693 = vadd.f32 %v2645, %v2664
      %v2694 = vadd.f32 %v2646, %v2666
      %v2695 = vadd.f32 %v2647, %v2668
      %v2696 = vadd.f32 %v2648, %v2670
      %v2697 = vadd.f32 %v2649, %v2672
      %v2698 = vadd.f32 %v2650, %v2674
      %2699 = vrot.lane.b32.xlu0 %v2195, 119
      %v2700 = vpop.permute.xlu0 %2699
      %2701 = vrot.lane.b32.xlu0 %v2196, 119
      %v2702 = vpop.permute.xlu0 %2701
      %2703 = vrot.lane.b32.xlu0 %v2197, 119
      %v2704 = vpop.permute.xlu0 %2703
      %2705 = vrot.lane.b32.xlu0 %v2198, 119
      %v2706 = vpop.permute.xlu0 %2705
      %2707 = vrot.lane.b32.xlu0 %v2199, 119
      %v2708 = vpop.permute.xlu0 %2707
      %2709 = vrot.lane.b32.xlu0 %v2200, 119
      %v2710 = vpop.permute.xlu0 %2709
      %2711 = vrot.lane.b32.xlu0 %v2201, 119
      %v2712 = vpop.permute.xlu0 %2711
      %2713 = vrot.lane.b32.xlu0 %v2202, 119
      %v2714 = vpop.permute.xlu0 %2713
      %2715 = vrot.lane.b32.xlu0 %v2203, 119
      %v2716 = vpop.permute.xlu0 %2715
      %2717 = vrot.lane.b32.xlu0 %v2204, 119
      %v2718 = vpop.permute.xlu0 %2717
      %2719 = vrot.lane.b32.xlu0 %v2205, 119
      %v2720 = vpop.permute.xlu0 %2719
      %2721 = vrot.lane.b32.xlu0 %v2206, 119
      %v2722 = vpop.permute.xlu0 %2721
      %v2735 = vadd.f32 %v2687, %v2700
      %v2736 = vadd.f32 %v2688, %v2702
      %v2737 = vadd.f32 %v2689, %v2704
      %v2738 = vadd.f32 %v2690, %v2706
      %v2739 = vadd.f32 %v2691, %v2708
      %v2740 = vadd.f32 %v2692, %v2710
      %v2741 = vadd.f32 %v2693, %v2712
      %v2742 = vadd.f32 %v2694, %v2714
      %v2743 = vadd.f32 %v2695, %v2716
      %v2744 = vadd.f32 %v2696, %v2718
      %v2745 = vadd.f32 %v2697, %v2720
      %v2746 = vadd.f32 %v2698, %v2722
      %2759 = vrot.lane.b32.xlu0 %v2183, 118
      %v2760 = vpop.permute.xlu0 %2759
      %2761 = vrot.lane.b32.xlu0 %v2184, 118
      %v2762 = vpop.permute.xlu0 %2761
      %2763 = vrot.lane.b32.xlu0 %v2185, 118
      %v2764 = vpop.permute.xlu0 %2763
      %2765 = vrot.lane.b32.xlu0 %v2186, 118
      %v2766 = vpop.permute.xlu0 %2765
      %2767 = vrot.lane.b32.xlu0 %v2187, 118
      %v2768 = vpop.permute.xlu0 %2767
      %2769 = vrot.lane.b32.xlu0 %v2188, 118
      %v2770 = vpop.permute.xlu0 %2769
      %2771 = vrot.lane.b32.xlu0 %v2189, 118
      %v2772 = vpop.permute.xlu0 %2771
      %2773 = vrot.lane.b32.xlu0 %v2190, 118
      %v2774 = vpop.permute.xlu0 %2773
      %2775 = vrot.lane.b32.xlu0 %v2191, 118
      %v2776 = vpop.permute.xlu0 %2775
      %2777 = vrot.lane.b32.xlu0 %v2192, 118
      %v2778 = vpop.permute.xlu0 %2777
      %2779 = vrot.lane.b32.xlu0 %v2193, 118
      %v2780 = vpop.permute.xlu0 %2779
      %2781 = vrot.lane.b32.xlu0 %v2194, 118
      %v2782 = vpop.permute.xlu0 %2781
      %v2795 = vadd.f32 %v2735, %v2760
      %v2796 = vadd.f32 %v2736, %v2762
      %v2797 = vadd.f32 %v2737, %v2764
      %v2798 = vadd.f32 %v2738, %v2766
      %v2799 = vadd.f32 %v2739, %v2768
      %v2800 = vadd.f32 %v2740, %v2770
      %v2801 = vadd.f32 %v2741, %v2772
      %v2802 = vadd.f32 %v2742, %v2774
      %v2803 = vadd.f32 %v2743, %v2776
      %v2804 = vadd.f32 %v2744, %v2778
      %v2805 = vadd.f32 %v2745, %v2780
      %v2806 = vadd.f32 %v2746, %v2782
      %v2807 = vmul.f32 %v2795, 0.0010283802
      %v2808 = vmul.f32 %v2796, 0.0010283802
      %v2809 = vmul.f32 %v2799, 0.0010283802
      %v2810 = vmul.f32 %v2800, 0.0010283802
      %v2811 = vmul.f32 %v2803, 0.0010283802
      %v2812 = vmul.f32 %v2804, 0.0010283802
      %v2813 = vmul.f32 %v2795, 0.0075987587
      %v2814 = vmul.f32 %v2796, 0.0075987587
      %v2815 = vmul.f32 %v2797, 0.0075987587
      %v2816 = vmul.f32 %v2799, 0.0075987587
      %v2817 = vmul.f32 %v2800, 0.0075987587
      %v2818 = vmul.f32 %v2801, 0.0075987587
      %v2819 = vmul.f32 %v2803, 0.0075987587
      %v2820 = vmul.f32 %v2804, 0.0075987587
      %v2821 = vmul.f32 %v2805, 0.0075987587
      %v2831 = vrot.slane %v2813, 1
      %v2832 = vrot.slane %v2814, 1
      %v2833 = vsel %vm868, %v2831, %v2832
      %v2834 = vrot.slane %v2815, 1
      %v2835 = vsel %vm868, %v2832, %v2834
      %v2836 = vrot.slane %v2816, 1
      %v2837 = vrot.slane %v2817, 1
      %v2838 = vsel %vm868, %v2836, %v2837
      %v2839 = vrot.slane %v2818, 1
      %v2840 = vsel %vm868, %v2837, %v2839
      %v2841 = vrot.slane %v2819, 1
      %v2842 = vrot.slane %v2820, 1
      %v2843 = vsel %vm868, %v2841, %v2842
      %v2844 = vrot.slane %v2821, 1
      %v2845 = vsel %vm868, %v2842, %v2844
      %v2852 = vadd.f32 %v2807, %v2833
      %v2853 = vadd.f32 %v2808, %v2835
      %v2854 = vadd.f32 %v2809, %v2838
      %v2855 = vadd.f32 %v2810, %v2840
      %v2856 = vadd.f32 %v2811, %v2843
      %v2857 = vadd.f32 %v2812, %v2845
      %v2858 = vmul.f32 %v2795, 0.036000773
      %v2859 = vmul.f32 %v2796, 0.036000773
      %v2860 = vmul.f32 %v2797, 0.036000773
      %v2861 = vmul.f32 %v2799, 0.036000773
      %v2862 = vmul.f32 %v2800, 0.036000773
      %v2863 = vmul.f32 %v2801, 0.036000773
      %v2864 = vmul.f32 %v2803, 0.036000773
      %v2865 = vmul.f32 %v2804, 0.036000773
      %v2866 = vmul.f32 %v2805, 0.036000773
      %v2876 = vrot.slane %v2858, 2
      %v2877 = vrot.slane %v2859, 2
      %v2878 = vsel %vm914, %v2876, %v2877
      %v2879 = vrot.slane %v2860, 2
      %v2880 = vsel %vm914, %v2877, %v2879
      %v2881 = vrot.slane %v2861, 2
      %v2882 = vrot.slane %v2862, 2
      %v2883 = vsel %vm914, %v2881, %v2882
      %v2884 = vrot.slane %v2863, 2
      %v2885 = vsel %vm914, %v2882, %v2884
      %v2886 = vrot.slane %v2864, 2
      %v2887 = vrot.slane %v2865, 2
      %v2888 = vsel %vm914, %v2886, %v2887
      %v2889 = vrot.slane %v2866, 2
      %v2890 = vsel %vm914, %v2887, %v2889
      %v2897 = vadd.f32 %v2852, %v2878
      %v2898 = vadd.f32 %v2853, %v2880
      %v2899 = vadd.f32 %v2854, %v2883
      %v2900 = vadd.f32 %v2855, %v2885
      %v2901 = vadd.f32 %v2856, %v2888
      %v2902 = vadd.f32 %v2857, %v2890
      %v2903 = vmul.f32 %v2795, 0.109360695
      %v2904 = vmul.f32 %v2796, 0.109360695
      %v2905 = vmul.f32 %v2797, 0.109360695
      %v2906 = vmul.f32 %v2799, 0.109360695
      %v2907 = vmul.f32 %v2800, 0.109360695
      %v2908 = vmul.f32 %v2801, 0.109360695
      %v2909 = vmul.f32 %v2803, 0.109360695
      %v2910 = vmul.f32 %v2804, 0.109360695
      %v2911 = vmul.f32 %v2805, 0.109360695
      %v2921 = vrot.slane %v2903, 3
      %v2922 = vrot.slane %v2904, 3
      %v2923 = vsel %vm960, %v2921, %v2922
      %v2924 = vrot.slane %v2905, 3
      %v2925 = vsel %vm960, %v2922, %v2924
      %v2926 = vrot.slane %v2906, 3
      %v2927 = vrot.slane %v2907, 3
      %v2928 = vsel %vm960, %v2926, %v2927
      %v2929 = vrot.slane %v2908, 3
      %v2930 = vsel %vm960, %v2927, %v2929
      %v2931 = vrot.slane %v2909, 3
      %v2932 = vrot.slane %v2910, 3
      %v2933 = vsel %vm960, %v2931, %v2932
      %v2934 = vrot.slane %v2911, 3
      %v2935 = vsel %vm960, %v2932, %v2934
      %v2942 = vadd.f32 %v2897, %v2923
      %v2943 = vadd.f32 %v2898, %v2925
      %v2944 = vadd.f32 %v2899, %v2928
      %v2945 = vadd.f32 %v2900, %v2930
      %v2946 = vadd.f32 %v2901, %v2933
      %v2947 = vadd.f32 %v2902, %v2935
      %v2948 = vmul.f32 %v2795, 0.21300554
      %v2949 = vmul.f32 %v2796, 0.21300554
      %v2950 = vmul.f32 %v2797, 0.21300554
      %v2951 = vmul.f32 %v2799, 0.21300554
      %v2952 = vmul.f32 %v2800, 0.21300554
      %v2953 = vmul.f32 %v2801, 0.21300554
      %v2954 = vmul.f32 %v2803, 0.21300554
      %v2955 = vmul.f32 %v2804, 0.21300554
      %v2956 = vmul.f32 %v2805, 0.21300554
      %v2966 = vrot.slane %v2948, 4
      %v2967 = vrot.slane %v2949, 4
      %v2968 = vsel %vm1006, %v2966, %v2967
      %v2969 = vrot.slane %v2950, 4
      %v2970 = vsel %vm1006, %v2967, %v2969
      %v2971 = vrot.slane %v2951, 4
      %v2972 = vrot.slane %v2952, 4
      %v2973 = vsel %vm1006, %v2971, %v2972
      %v2974 = vrot.slane %v2953, 4
      %v2975 = vsel %vm1006, %v2972, %v2974
      %v2976 = vrot.slane %v2954, 4
      %v2977 = vrot.slane %v2955, 4
      %v2978 = vsel %vm1006, %v2976, %v2977
      %v2979 = vrot.slane %v2956, 4
      %v2980 = vsel %vm1006, %v2977, %v2979
      %v2987 = vadd.f32 %v2942, %v2968
      %v2988 = vadd.f32 %v2943, %v2970
      %v2989 = vadd.f32 %v2944, %v2973
      %v2990 = vadd.f32 %v2945, %v2975
      %v2991 = vadd.f32 %v2946, %v2978
      %v2992 = vadd.f32 %v2947, %v2980
      %v2993 = vmul.f32 %v2795, 0.26601174
      %v2994 = vmul.f32 %v2796, 0.26601174
      %v2995 = vmul.f32 %v2797, 0.26601174
      %v2996 = vmul.f32 %v2799, 0.26601174
      %v2997 = vmul.f32 %v2800, 0.26601174
      %v2998 = vmul.f32 %v2801, 0.26601174
      %v2999 = vmul.f32 %v2803, 0.26601174
      %v3000 = vmul.f32 %v2804, 0.26601174
      %v3001 = vmul.f32 %v2805, 0.26601174
      %v3011 = vrot.slane %v2993, 5
      %v3012 = vrot.slane %v2994, 5
      %v3013 = vsel %vm1052, %v3011, %v3012
      %v3014 = vrot.slane %v2995, 5
      %v3015 = vsel %vm1052, %v3012, %v3014
      %v3016 = vrot.slane %v2996, 5
      %v3017 = vrot.slane %v2997, 5
      %v3018 = vsel %vm1052, %v3016, %v3017
      %v3019 = vrot.slane %v2998, 5
      %v3020 = vsel %vm1052, %v3017, %v3019
      %v3021 = vrot.slane %v2999, 5
      %v3022 = vrot.slane %v3000, 5
      %v3023 = vsel %vm1052, %v3021, %v3022
      %v3024 = vrot.slane %v3001, 5
      %v3025 = vsel %vm1052, %v3022, %v3024
      %v3032 = vadd.f32 %v2987, %v3013
      %v3033 = vadd.f32 %v2988, %v3015
      %v3034 = vadd.f32 %v2989, %v3018
      %v3035 = vadd.f32 %v2990, %v3020
      %v3036 = vadd.f32 %v2991, %v3023
      %v3037 = vadd.f32 %v2992, %v3025
      %v3038 = vrot.slane %v2948, 6
      %v3039 = vrot.slane %v2949, 6
      %v3040 = vsel %vm1080, %v3038, %v3039
      %v3041 = vrot.slane %v2950, 6
      %v3042 = vsel %vm1080, %v3039, %v3041
      %v3043 = vrot.slane %v2951, 6
      %v3044 = vrot.slane %v2952, 6
      %v3045 = vsel %vm1080, %v3043, %v3044
      %v3046 = vrot.slane %v2953, 6
      %v3047 = vsel %vm1080, %v3044, %v3046
      %v3048 = vrot.slane %v2954, 6
      %v3049 = vrot.slane %v2955, 6
      %v3050 = vsel %vm1080, %v3048, %v3049
      %v3051 = vrot.slane %v2956, 6
      %v3052 = vsel %vm1080, %v3049, %v3051
      %v3059 = vadd.f32 %v3032, %v3040
      %v3060 = vadd.f32 %v3033, %v3042
      %v3061 = vadd.f32 %v3034, %v3045
      %v3062 = vadd.f32 %v3035, %v3047
      %v3063 = vadd.f32 %v3036, %v3050
      %v3064 = vadd.f32 %v3037, %v3052
      %v3065 = vrot.slane %v2903, 7
      %v3066 = vrot.slane %v2904, 7
      %v3067 = vsel %vm1108, %v3065, %v3066
      %v3068 = vrot.slane %v2905, 7
      %v3069 = vsel %vm1108, %v3066, %v3068
      %v3070 = vrot.slane %v2906, 7
      %v3071 = vrot.slane %v2907, 7
      %v3072 = vsel %vm1108, %v3070, %v3071
      %v3073 = vrot.slane %v2908, 7
      %v3074 = vsel %vm1108, %v3071, %v3073
      %v3075 = vrot.slane %v2909, 7
      %v3076 = vrot.slane %v2910, 7
      %v3077 = vsel %vm1108, %v3075, %v3076
      %v3078 = vrot.slane %v2911, 7
      %v3079 = vsel %vm1108, %v3076, %v3078
      %v3086 = vadd.f32 %v3059, %v3067
      %v3087 = vadd.f32 %v3060, %v3069
      %v3088 = vadd.f32 %v3061, %v3072
      %v3089 = vadd.f32 %v3062, %v3074
      %v3090 = vadd.f32 %v3063, %v3077
      %v3091 = vadd.f32 %v3064, %v3079
      %v3092 = vadd.f32 %v3086, %v2859
      %v3093 = vadd.f32 %v3087, %v2860
      %v3094 = vadd.f32 %v3088, %v2862
      %v3095 = vadd.f32 %v3089, %v2863
      %v3096 = vadd.f32 %v3090, %v2865
      %v3097 = vadd.f32 %v3091, %v2866
      %v3098 = vmul.f32 %v2798, 0.0075987587
      %v3099 = vmul.f32 %v2802, 0.0075987587
      %v3100 = vmul.f32 %v2806, 0.0075987587
      %v3104 = vrot.slane %v3098, 1
      %v3105 = vsel %vm868, %v2834, %v3104
      %v3106 = vrot.slane %v3099, 1
      %v3107 = vsel %vm868, %v2839, %v3106
      %v3108 = vrot.slane %v3100, 1
      %v3109 = vsel %vm868, %v2844, %v3108
      %v3113 = vadd.f32 %v3092, %v2835
      %v3114 = vadd.f32 %v3093, %v3105
      %v3115 = vadd.f32 %v3094, %v2840
      %v3116 = vadd.f32 %v3095, %v3107
      %v3117 = vadd.f32 %v3096, %v2845
      %v3118 = vadd.f32 %v3097, %v3109
      %v3119 = vmul.f32 %v2797, 0.0010283802
      %v3120 = vmul.f32 %v2798, 0.0010283802
      %v3121 = vmul.f32 %v2801, 0.0010283802
      %v3122 = vmul.f32 %v2802, 0.0010283802
      %v3123 = vmul.f32 %v2805, 0.0010283802
      %v3124 = vmul.f32 %v2806, 0.0010283802
      %v3134 = vrot.slane %v2808, 2
      %v3135 = vrot.slane %v3119, 2
      %v3136 = vsel %vm914, %v3134, %v3135
      %v3137 = vrot.slane %v3120, 2
      %v3138 = vsel %vm914, %v3135, %v3137
      %v3139 = vrot.slane %v2810, 2
      %v3140 = vrot.slane %v3121, 2
      %v3141 = vsel %vm914, %v3139, %v3140
      %v3142 = vrot.slane %v3122, 2
      %v3143 = vsel %vm914, %v3140, %v3142
      %v3144 = vrot.slane %v2812, 2
      %v3145 = vrot.slane %v3123, 2
      %v3146 = vsel %vm914, %v3144, %v3145
      %v3147 = vrot.slane %v3124, 2
      %v3148 = vsel %vm914, %v3145, %v3147
      %v3155 = vadd.f32 %v3113, %v3136
      %v3156 = vadd.f32 %v3114, %v3138
      %v3157 = vadd.f32 %v3115, %v3141
      %v3158 = vadd.f32 %v3116, %v3143
      %v3159 = vadd.f32 %v3117, %v3146
      %v3160 = vadd.f32 %v3118, %v3148
      %v3161 = vmul.f32 %v196, 0.0010283802
      %v3162 = vmul.f32 %v197, 0.0010283802
      %v3163 = vmul.f32 %v198, 0.0010283802
      %v3164 = vmul.f32 %v199, 0.0010283802
      %v3165 = vmul.f32 %v200, 0.0010283802
      %v3166 = vmul.f32 %v201, 0.0010283802
      %v3167 = vmul.f32 %v202, 0.0010283802
      %v3168 = vmul.f32 %v203, 0.0010283802
      %v3169 = vmul.f32 %v204, 0.0010283802
      %v3170 = vmul.f32 %v205, 0.0010283802
      %v3171 = vmul.f32 %v206, 0.0010283802
      %v3172 = vmul.f32 %v207, 0.0010283802
      %v3173 = vmul.f32 %v196, 0.0075987587
      %v3174 = vmul.f32 %v197, 0.0075987587
      %v3175 = vmul.f32 %v198, 0.0075987587
      %v3176 = vmul.f32 %v199, 0.0075987587
      %v3177 = vmul.f32 %v200, 0.0075987587
      %v3178 = vmul.f32 %v201, 0.0075987587
      %v3179 = vmul.f32 %v202, 0.0075987587
      %v3180 = vmul.f32 %v203, 0.0075987587
      %v3181 = vmul.f32 %v204, 0.0075987587
      %v3182 = vmul.f32 %v205, 0.0075987587
      %v3183 = vmul.f32 %v206, 0.0075987587
      %v3184 = vmul.f32 %v207, 0.0075987587
      %3197 = vrot.lane.b32.xlu0 %v3173, 127
      %v3198 = vpop.permute.xlu0 %3197
      %3199 = vrot.lane.b32.xlu0 %v3174, 127
      %v3200 = vpop.permute.xlu0 %3199
      %3201 = vrot.lane.b32.xlu0 %v3175, 127
      %v3202 = vpop.permute.xlu0 %3201
      %3203 = vrot.lane.b32.xlu0 %v3176, 127
      %v3204 = vpop.permute.xlu0 %3203
      %3205 = vrot.lane.b32.xlu0 %v3177, 127
      %v3206 = vpop.permute.xlu0 %3205
      %3207 = vrot.lane.b32.xlu0 %v3178, 127
      %v3208 = vpop.permute.xlu0 %3207
      %3209 = vrot.lane.b32.xlu0 %v3179, 127
      %v3210 = vpop.permute.xlu0 %3209
      %3211 = vrot.lane.b32.xlu0 %v3180, 127
      %v3212 = vpop.permute.xlu0 %3211
      %3213 = vrot.lane.b32.xlu0 %v3181, 127
      %v3214 = vpop.permute.xlu0 %3213
      %3215 = vrot.lane.b32.xlu0 %v3182, 127
      %v3216 = vpop.permute.xlu0 %3215
      %3217 = vrot.lane.b32.xlu0 %v3183, 127
      %v3218 = vpop.permute.xlu0 %3217
      %3219 = vrot.lane.b32.xlu0 %v3184, 127
      %v3220 = vpop.permute.xlu0 %3219
      %v3233 = vadd.f32 %v3161, %v3198
      %v3234 = vadd.f32 %v3162, %v3200
      %v3235 = vadd.f32 %v3163, %v3202
      %v3236 = vadd.f32 %v3164, %v3204
      %v3237 = vadd.f32 %v3165, %v3206
      %v3238 = vadd.f32 %v3166, %v3208
      %v3239 = vadd.f32 %v3167, %v3210
      %v3240 = vadd.f32 %v3168, %v3212
      %v3241 = vadd.f32 %v3169, %v3214
      %v3242 = vadd.f32 %v3170, %v3216
      %v3243 = vadd.f32 %v3171, %v3218
      %v3244 = vadd.f32 %v3172, %v3220
      %v3245 = vmul.f32 %v196, 0.036000773
      %v3246 = vmul.f32 %v197, 0.036000773
      %v3247 = vmul.f32 %v198, 0.036000773
      %v3248 = vmul.f32 %v199, 0.036000773
      %v3249 = vmul.f32 %v200, 0.036000773
      %v3250 = vmul.f32 %v201, 0.036000773
      %v3251 = vmul.f32 %v202, 0.036000773
      %v3252 = vmul.f32 %v203, 0.036000773
      %v3253 = vmul.f32 %v204, 0.036000773
      %v3254 = vmul.f32 %v205, 0.036000773
      %v3255 = vmul.f32 %v206, 0.036000773
      %v3256 = vmul.f32 %v207, 0.036000773
      %3269 = vrot.lane.b32.xlu0 %v3245, 126
      %v3270 = vpop.permute.xlu0 %3269
      %3271 = vrot.lane.b32.xlu0 %v3246, 126
      %v3272 = vpop.permute.xlu0 %3271
      %3273 = vrot.lane.b32.xlu0 %v3247, 126
      %v3274 = vpop.permute.xlu0 %3273
      %3275 = vrot.lane.b32.xlu0 %v3248, 126
      %v3276 = vpop.permute.xlu0 %3275
      %3277 = vrot.lane.b32.xlu0 %v3249, 126
      %v3278 = vpop.permute.xlu0 %3277
      %3279 = vrot.lane.b32.xlu0 %v3250, 126
      %v3280 = vpop.permute.xlu0 %3279
      %3281 = vrot.lane.b32.xlu0 %v3251, 126
      %v3282 = vpop.permute.xlu0 %3281
      %3283 = vrot.lane.b32.xlu0 %v3252, 126
      %v3284 = vpop.permute.xlu0 %3283
      %3285 = vrot.lane.b32.xlu0 %v3253, 126
      %v3286 = vpop.permute.xlu0 %3285
      %3287 = vrot.lane.b32.xlu0 %v3254, 126
      %v3288 = vpop.permute.xlu0 %3287
      %3289 = vrot.lane.b32.xlu0 %v3255, 126
      %v3290 = vpop.permute.xlu0 %3289
      %3291 = vrot.lane.b32.xlu0 %v3256, 126
      %v3292 = vpop.permute.xlu0 %3291
      %v3305 = vadd.f32 %v3233, %v3270
      %v3306 = vadd.f32 %v3234, %v3272
      %v3307 = vadd.f32 %v3235, %v3274
      %v3308 = vadd.f32 %v3236, %v3276
      %v3309 = vadd.f32 %v3237, %v3278
      %v3310 = vadd.f32 %v3238, %v3280
      %v3311 = vadd.f32 %v3239, %v3282
      %v3312 = vadd.f32 %v3240, %v3284
      %v3313 = vadd.f32 %v3241, %v3286
      %v3314 = vadd.f32 %v3242, %v3288
      %v3315 = vadd.f32 %v3243, %v3290
      %v3316 = vadd.f32 %v3244, %v3292
      %v3317 = vmul.f32 %v196, 0.109360695
      %v3318 = vmul.f32 %v197, 0.109360695
      %v3319 = vmul.f32 %v198, 0.109360695
      %v3320 = vmul.f32 %v199, 0.109360695
      %v3321 = vmul.f32 %v200, 0.109360695
      %v3322 = vmul.f32 %v201, 0.109360695
      %v3323 = vmul.f32 %v202, 0.109360695
      %v3324 = vmul.f32 %v203, 0.109360695
      %v3325 = vmul.f32 %v204, 0.109360695
      %v3326 = vmul.f32 %v205, 0.109360695
      %v3327 = vmul.f32 %v206, 0.109360695
      %v3328 = vmul.f32 %v207, 0.109360695
      %3341 = vrot.lane.b32.xlu0 %v3317, 125
      %v3342 = vpop.permute.xlu0 %3341
      %3343 = vrot.lane.b32.xlu0 %v3318, 125
      %v3344 = vpop.permute.xlu0 %3343
      %3345 = vrot.lane.b32.xlu0 %v3319, 125
      %v3346 = vpop.permute.xlu0 %3345
      %3347 = vrot.lane.b32.xlu0 %v3320, 125
      %v3348 = vpop.permute.xlu0 %3347
      %3349 = vrot.lane.b32.xlu0 %v3321, 125
      %v3350 = vpop.permute.xlu0 %3349
      %3351 = vrot.lane.b32.xlu0 %v3322, 125
      %v3352 = vpop.permute.xlu0 %3351
      %3353 = vrot.lane.b32.xlu0 %v3323, 125
      %v3354 = vpop.permute.xlu0 %3353
      %3355 = vrot.lane.b32.xlu0 %v3324, 125
      %v3356 = vpop.permute.xlu0 %3355
      %3357 = vrot.lane.b32.xlu0 %v3325, 125
      %v3358 = vpop.permute.xlu0 %3357
      %3359 = vrot.lane.b32.xlu0 %v3326, 125
      %v3360 = vpop.permute.xlu0 %3359
      %3361 = vrot.lane.b32.xlu0 %v3327, 125
      %v3362 = vpop.permute.xlu0 %3361
      %3363 = vrot.lane.b32.xlu0 %v3328, 125
      %v3364 = vpop.permute.xlu0 %3363
      %v3377 = vadd.f32 %v3305, %v3342
      %v3378 = vadd.f32 %v3306, %v3344
      %v3379 = vadd.f32 %v3307, %v3346
      %v3380 = vadd.f32 %v3308, %v3348
      %v3381 = vadd.f32 %v3309, %v3350
      %v3382 = vadd.f32 %v3310, %v3352
      %v3383 = vadd.f32 %v3311, %v3354
      %v3384 = vadd.f32 %v3312, %v3356
      %v3385 = vadd.f32 %v3313, %v3358
      %v3386 = vadd.f32 %v3314, %v3360
      %v3387 = vadd.f32 %v3315, %v3362
      %v3388 = vadd.f32 %v3316, %v3364
      %v3389 = vmul.f32 %v196, 0.21300554
      %v3390 = vmul.f32 %v197, 0.21300554
      %v3391 = vmul.f32 %v198, 0.21300554
      %v3392 = vmul.f32 %v199, 0.21300554
      %v3393 = vmul.f32 %v200, 0.21300554
      %v3394 = vmul.f32 %v201, 0.21300554
      %v3395 = vmul.f32 %v202, 0.21300554
      %v3396 = vmul.f32 %v203, 0.21300554
      %v3397 = vmul.f32 %v204, 0.21300554
      %v3398 = vmul.f32 %v205, 0.21300554
      %v3399 = vmul.f32 %v206, 0.21300554
      %v3400 = vmul.f32 %v207, 0.21300554
      %3413 = vrot.lane.b32.xlu0 %v3389, 124
      %v3414 = vpop.permute.xlu0 %3413
      %3415 = vrot.lane.b32.xlu0 %v3390, 124
      %v3416 = vpop.permute.xlu0 %3415
      %3417 = vrot.lane.b32.xlu0 %v3391, 124
      %v3418 = vpop.permute.xlu0 %3417
      %3419 = vrot.lane.b32.xlu0 %v3392, 124
      %v3420 = vpop.permute.xlu0 %3419
      %3421 = vrot.lane.b32.xlu0 %v3393, 124
      %v3422 = vpop.permute.xlu0 %3421
      %3423 = vrot.lane.b32.xlu0 %v3394, 124
      %v3424 = vpop.permute.xlu0 %3423
      %3425 = vrot.lane.b32.xlu0 %v3395, 124
      %v3426 = vpop.permute.xlu0 %3425
      %3427 = vrot.lane.b32.xlu0 %v3396, 124
      %v3428 = vpop.permute.xlu0 %3427
      %3429 = vrot.lane.b32.xlu0 %v3397, 124
      %v3430 = vpop.permute.xlu0 %3429
      %3431 = vrot.lane.b32.xlu0 %v3398, 124
      %v3432 = vpop.permute.xlu0 %3431
      %3433 = vrot.lane.b32.xlu0 %v3399, 124
      %v3434 = vpop.permute.xlu0 %3433
      %3435 = vrot.lane.b32.xlu0 %v3400, 124
      %v3436 = vpop.permute.xlu0 %3435
      %v3449 = vadd.f32 %v3377, %v3414
      %v3450 = vadd.f32 %v3378, %v3416
      %v3451 = vadd.f32 %v3379, %v3418
      %v3452 = vadd.f32 %v3380, %v3420
      %v3453 = vadd.f32 %v3381, %v3422
      %v3454 = vadd.f32 %v3382, %v3424
      %v3455 = vadd.f32 %v3383, %v3426
      %v3456 = vadd.f32 %v3384, %v3428
      %v3457 = vadd.f32 %v3385, %v3430
      %v3458 = vadd.f32 %v3386, %v3432
      %v3459 = vadd.f32 %v3387, %v3434
      %v3460 = vadd.f32 %v3388, %v3436
      %v3461 = vmul.f32 %v196, 0.26601174
      %v3462 = vmul.f32 %v197, 0.26601174
      %v3463 = vmul.f32 %v198, 0.26601174
      %v3464 = vmul.f32 %v199, 0.26601174
      %v3465 = vmul.f32 %v200, 0.26601174
      %v3466 = vmul.f32 %v201, 0.26601174
      %v3467 = vmul.f32 %v202, 0.26601174
      %v3468 = vmul.f32 %v203, 0.26601174
      %v3469 = vmul.f32 %v204, 0.26601174
      %v3470 = vmul.f32 %v205, 0.26601174
      %v3471 = vmul.f32 %v206, 0.26601174
      %v3472 = vmul.f32 %v207, 0.26601174
      %3485 = vrot.lane.b32.xlu0 %v3461, 123
      %v3486 = vpop.permute.xlu0 %3485
      %3487 = vrot.lane.b32.xlu0 %v3462, 123
      %v3488 = vpop.permute.xlu0 %3487
      %3489 = vrot.lane.b32.xlu0 %v3463, 123
      %v3490 = vpop.permute.xlu0 %3489
      %3491 = vrot.lane.b32.xlu0 %v3464, 123
      %v3492 = vpop.permute.xlu0 %3491
      %3493 = vrot.lane.b32.xlu0 %v3465, 123
      %v3494 = vpop.permute.xlu0 %3493
      %3495 = vrot.lane.b32.xlu0 %v3466, 123
      %v3496 = vpop.permute.xlu0 %3495
      %3497 = vrot.lane.b32.xlu0 %v3467, 123
      %v3498 = vpop.permute.xlu0 %3497
      %3499 = vrot.lane.b32.xlu0 %v3468, 123
      %v3500 = vpop.permute.xlu0 %3499
      %3501 = vrot.lane.b32.xlu0 %v3469, 123
      %v3502 = vpop.permute.xlu0 %3501
      %3503 = vrot.lane.b32.xlu0 %v3470, 123
      %v3504 = vpop.permute.xlu0 %3503
      %3505 = vrot.lane.b32.xlu0 %v3471, 123
      %v3506 = vpop.permute.xlu0 %3505
      %3507 = vrot.lane.b32.xlu0 %v3472, 123
      %v3508 = vpop.permute.xlu0 %3507
      %v3521 = vadd.f32 %v3449, %v3486
      %v3522 = vadd.f32 %v3450, %v3488
      %v3523 = vadd.f32 %v3451, %v3490
      %v3524 = vadd.f32 %v3452, %v3492
      %v3525 = vadd.f32 %v3453, %v3494
      %v3526 = vadd.f32 %v3454, %v3496
      %v3527 = vadd.f32 %v3455, %v3498
      %v3528 = vadd.f32 %v3456, %v3500
      %v3529 = vadd.f32 %v3457, %v3502
      %v3530 = vadd.f32 %v3458, %v3504
      %v3531 = vadd.f32 %v3459, %v3506
      %v3532 = vadd.f32 %v3460, %v3508
      %3533 = vrot.lane.b32.xlu0 %v3389, 122
      %v3534 = vpop.permute.xlu0 %3533
      %3535 = vrot.lane.b32.xlu0 %v3390, 122
      %v3536 = vpop.permute.xlu0 %3535
      %3537 = vrot.lane.b32.xlu0 %v3391, 122
      %v3538 = vpop.permute.xlu0 %3537
      %3539 = vrot.lane.b32.xlu0 %v3392, 122
      %v3540 = vpop.permute.xlu0 %3539
      %3541 = vrot.lane.b32.xlu0 %v3393, 122
      %v3542 = vpop.permute.xlu0 %3541
      %3543 = vrot.lane.b32.xlu0 %v3394, 122
      %v3544 = vpop.permute.xlu0 %3543
      %3545 = vrot.lane.b32.xlu0 %v3395, 122
      %v3546 = vpop.permute.xlu0 %3545
      %3547 = vrot.lane.b32.xlu0 %v3396, 122
      %v3548 = vpop.permute.xlu0 %3547
      %3549 = vrot.lane.b32.xlu0 %v3397, 122
      %v3550 = vpop.permute.xlu0 %3549
      %3551 = vrot.lane.b32.xlu0 %v3398, 122
      %v3552 = vpop.permute.xlu0 %3551
      %3553 = vrot.lane.b32.xlu0 %v3399, 122
      %v3554 = vpop.permute.xlu0 %3553
      %3555 = vrot.lane.b32.xlu0 %v3400, 122
      %v3556 = vpop.permute.xlu0 %3555
      %v3569 = vadd.f32 %v3521, %v3534
      %v3570 = vadd.f32 %v3522, %v3536
      %v3571 = vadd.f32 %v3523, %v3538
      %v3572 = vadd.f32 %v3524, %v3540
      %v3573 = vadd.f32 %v3525, %v3542
      %v3574 = vadd.f32 %v3526, %v3544
      %v3575 = vadd.f32 %v3527, %v3546
      %v3576 = vadd.f32 %v3528, %v3548
      %v3577 = vadd.f32 %v3529, %v3550
      %v3578 = vadd.f32 %v3530, %v3552
      %v3579 = vadd.f32 %v3531, %v3554
      %v3580 = vadd.f32 %v3532, %v3556
      %3581 = vrot.lane.b32.xlu0 %v3317, 121
      %v3582 = vpop.permute.xlu0 %3581
      %3583 = vrot.lane.b32.xlu0 %v3318, 121
      %v3584 = vpop.permute.xlu0 %3583
      %3585 = vrot.lane.b32.xlu0 %v3319, 121
      %v3586 = vpop.permute.xlu0 %3585
      %3587 = vrot.lane.b32.xlu0 %v3320, 121
      %v3588 = vpop.permute.xlu0 %3587
      %3589 = vrot.lane.b32.xlu0 %v3321, 121
      %v3590 = vpop.permute.xlu0 %3589
      %3591 = vrot.lane.b32.xlu0 %v3322, 121
      %v3592 = vpop.permute.xlu0 %3591
      %3593 = vrot.lane.b32.xlu0 %v3323, 121
      %v3594 = vpop.permute.xlu0 %3593
      %3595 = vrot.lane.b32.xlu0 %v3324, 121
      %v3596 = vpop.permute.xlu0 %3595
      %3597 = vrot.lane.b32.xlu0 %v3325, 121
      %v3598 = vpop.permute.xlu0 %3597
      %3599 = vrot.lane.b32.xlu0 %v3326, 121
      %v3600 = vpop.permute.xlu0 %3599
      %3601 = vrot.lane.b32.xlu0 %v3327, 121
      %v3602 = vpop.permute.xlu0 %3601
      %3603 = vrot.lane.b32.xlu0 %v3328, 121
      %v3604 = vpop.permute.xlu0 %3603
      %v3617 = vadd.f32 %v3569, %v3582
      %v3618 = vadd.f32 %v3570, %v3584
      %v3619 = vadd.f32 %v3571, %v3586
      %v3620 = vadd.f32 %v3572, %v3588
      %v3621 = vadd.f32 %v3573, %v3590
      %v3622 = vadd.f32 %v3574, %v3592
      %v3623 = vadd.f32 %v3575, %v3594
      %v3624 = vadd.f32 %v3576, %v3596
      %v3625 = vadd.f32 %v3577, %v3598
      %v3626 = vadd.f32 %v3578, %v3600
      %v3627 = vadd.f32 %v3579, %v3602
      %v3628 = vadd.f32 %v3580, %v3604
      %3629 = vrot.lane.b32.xlu0 %v3245, 120
      %v3630 = vpop.permute.xlu0 %3629
      %3631 = vrot.lane.b32.xlu0 %v3246, 120
      %v3632 = vpop.permute.xlu0 %3631
      %3633 = vrot.lane.b32.xlu0 %v3247, 120
      %v3634 = vpop.permute.xlu0 %3633
      %3635 = vrot.lane.b32.xlu0 %v3248, 120
      %v3636 = vpop.permute.xlu0 %3635
      %3637 = vrot.lane.b32.xlu0 %v3249, 120
      %v3638 = vpop.permute.xlu0 %3637
      %3639 = vrot.lane.b32.xlu0 %v3250, 120
      %v3640 = vpop.permute.xlu0 %3639
      %3641 = vrot.lane.b32.xlu0 %v3251, 120
      %v3642 = vpop.permute.xlu0 %3641
      %3643 = vrot.lane.b32.xlu0 %v3252, 120
      %v3644 = vpop.permute.xlu0 %3643
      %3645 = vrot.lane.b32.xlu0 %v3253, 120
      %v3646 = vpop.permute.xlu0 %3645
      %3647 = vrot.lane.b32.xlu0 %v3254, 120
      %v3648 = vpop.permute.xlu0 %3647
      %3649 = vrot.lane.b32.xlu0 %v3255, 120
      %v3650 = vpop.permute.xlu0 %3649
      %3651 = vrot.lane.b32.xlu0 %v3256, 120
      %v3652 = vpop.permute.xlu0 %3651
      %v3665 = vadd.f32 %v3617, %v3630
      %v3666 = vadd.f32 %v3618, %v3632
      %v3667 = vadd.f32 %v3619, %v3634
      %v3668 = vadd.f32 %v3620, %v3636
      %v3669 = vadd.f32 %v3621, %v3638
      %v3670 = vadd.f32 %v3622, %v3640
      %v3671 = vadd.f32 %v3623, %v3642
      %v3672 = vadd.f32 %v3624, %v3644
      %v3673 = vadd.f32 %v3625, %v3646
      %v3674 = vadd.f32 %v3626, %v3648
      %v3675 = vadd.f32 %v3627, %v3650
      %v3676 = vadd.f32 %v3628, %v3652
      %3677 = vrot.lane.b32.xlu0 %v3173, 119
      %v3678 = vpop.permute.xlu0 %3677
      %3679 = vrot.lane.b32.xlu0 %v3174, 119
      %v3680 = vpop.permute.xlu0 %3679
      %3681 = vrot.lane.b32.xlu0 %v3175, 119
      %v3682 = vpop.permute.xlu0 %3681
      %3683 = vrot.lane.b32.xlu0 %v3176, 119
      %v3684 = vpop.permute.xlu0 %3683
      %3685 = vrot.lane.b32.xlu0 %v3177, 119
      %v3686 = vpop.permute.xlu0 %3685
      %3687 = vrot.lane.b32.xlu0 %v3178, 119
      %v3688 = vpop.permute.xlu0 %3687
      %3689 = vrot.lane.b32.xlu0 %v3179, 119
      %v3690 = vpop.permute.xlu0 %3689
      %3691 = vrot.lane.b32.xlu0 %v3180, 119
      %v3692 = vpop.permute.xlu0 %3691
      %3693 = vrot.lane.b32.xlu0 %v3181, 119
      %v3694 = vpop.permute.xlu0 %3693
      %3695 = vrot.lane.b32.xlu0 %v3182, 119
      %v3696 = vpop.permute.xlu0 %3695
      %3697 = vrot.lane.b32.xlu0 %v3183, 119
      %v3698 = vpop.permute.xlu0 %3697
      %3699 = vrot.lane.b32.xlu0 %v3184, 119
      %v3700 = vpop.permute.xlu0 %3699
      %v3713 = vadd.f32 %v3665, %v3678
      %v3714 = vadd.f32 %v3666, %v3680
      %v3715 = vadd.f32 %v3667, %v3682
      %v3716 = vadd.f32 %v3668, %v3684
      %v3717 = vadd.f32 %v3669, %v3686
      %v3718 = vadd.f32 %v3670, %v3688
      %v3719 = vadd.f32 %v3671, %v3690
      %v3720 = vadd.f32 %v3672, %v3692
      %v3721 = vadd.f32 %v3673, %v3694
      %v3722 = vadd.f32 %v3674, %v3696
      %v3723 = vadd.f32 %v3675, %v3698
      %v3724 = vadd.f32 %v3676, %v3700
      %3737 = vrot.lane.b32.xlu0 %v3161, 118
      %v3738 = vpop.permute.xlu0 %3737
      %3739 = vrot.lane.b32.xlu0 %v3162, 118
      %v3740 = vpop.permute.xlu0 %3739
      %3741 = vrot.lane.b32.xlu0 %v3163, 118
      %v3742 = vpop.permute.xlu0 %3741
      %3743 = vrot.lane.b32.xlu0 %v3164, 118
      %v3744 = vpop.permute.xlu0 %3743
      %3745 = vrot.lane.b32.xlu0 %v3165, 118
      %v3746 = vpop.permute.xlu0 %3745
      %3747 = vrot.lane.b32.xlu0 %v3166, 118
      %v3748 = vpop.permute.xlu0 %3747
      %3749 = vrot.lane.b32.xlu0 %v3167, 118
      %v3750 = vpop.permute.xlu0 %3749
      %3751 = vrot.lane.b32.xlu0 %v3168, 118
      %v3752 = vpop.permute.xlu0 %3751
      %3753 = vrot.lane.b32.xlu0 %v3169, 118
      %v3754 = vpop.permute.xlu0 %3753
      %3755 = vrot.lane.b32.xlu0 %v3170, 118
      %v3756 = vpop.permute.xlu0 %3755
      %3757 = vrot.lane.b32.xlu0 %v3171, 118
      %v3758 = vpop.permute.xlu0 %3757
      %3759 = vrot.lane.b32.xlu0 %v3172, 118
      %v3760 = vpop.permute.xlu0 %3759
      %v3773 = vadd.f32 %v3713, %v3738
      %v3774 = vadd.f32 %v3714, %v3740
      %v3775 = vadd.f32 %v3715, %v3742
      %v3776 = vadd.f32 %v3716, %v3744
      %v3777 = vadd.f32 %v3717, %v3746
      %v3778 = vadd.f32 %v3718, %v3748
      %v3779 = vadd.f32 %v3719, %v3750
      %v3780 = vadd.f32 %v3720, %v3752
      %v3781 = vadd.f32 %v3721, %v3754
      %v3782 = vadd.f32 %v3722, %v3756
      %v3783 = vadd.f32 %v3723, %v3758
      %v3784 = vadd.f32 %v3724, %v3760
      %v3785 = vmul.f32 %v3773, 0.0010283802
      %v3786 = vmul.f32 %v3774, 0.0010283802
      %v3787 = vmul.f32 %v3777, 0.0010283802
      %v3788 = vmul.f32 %v3778, 0.0010283802
      %v3789 = vmul.f32 %v3781, 0.0010283802
      %v3790 = vmul.f32 %v3782, 0.0010283802
      %v3791 = vmul.f32 %v3773, 0.0075987587
      %v3792 = vmul.f32 %v3774, 0.0075987587
      %v3793 = vmul.f32 %v3775, 0.0075987587
      %v3794 = vmul.f32 %v3777, 0.0075987587
      %v3795 = vmul.f32 %v3778, 0.0075987587
      %v3796 = vmul.f32 %v3779, 0.0075987587
      %v3797 = vmul.f32 %v3781, 0.0075987587
      %v3798 = vmul.f32 %v3782, 0.0075987587
      %v3799 = vmul.f32 %v3783, 0.0075987587
      %v3809 = vrot.slane %v3791, 1
      %v3810 = vrot.slane %v3792, 1
      %v3811 = vsel %vm868, %v3809, %v3810
      %v3812 = vrot.slane %v3793, 1
      %v3813 = vsel %vm868, %v3810, %v3812
      %v3814 = vrot.slane %v3794, 1
      %v3815 = vrot.slane %v3795, 1
      %v3816 = vsel %vm868, %v3814, %v3815
      %v3817 = vrot.slane %v3796, 1
      %v3818 = vsel %vm868, %v3815, %v3817
      %v3819 = vrot.slane %v3797, 1
      %v3820 = vrot.slane %v3798, 1
      %v3821 = vsel %vm868, %v3819, %v3820
      %v3822 = vrot.slane %v3799, 1
      %v3823 = vsel %vm868, %v3820, %v3822
      %v3830 = vadd.f32 %v3785, %v3811
      %v3831 = vadd.f32 %v3786, %v3813
      %v3832 = vadd.f32 %v3787, %v3816
      %v3833 = vadd.f32 %v3788, %v3818
      %v3834 = vadd.f32 %v3789, %v3821
      %v3835 = vadd.f32 %v3790, %v3823
      %v3836 = vmul.f32 %v3773, 0.036000773
      %v3837 = vmul.f32 %v3774, 0.036000773
      %v3838 = vmul.f32 %v3775, 0.036000773
      %v3839 = vmul.f32 %v3777, 0.036000773
      %v3840 = vmul.f32 %v3778, 0.036000773
      %v3841 = vmul.f32 %v3779, 0.036000773
      %v3842 = vmul.f32 %v3781, 0.036000773
      %v3843 = vmul.f32 %v3782, 0.036000773
      %v3844 = vmul.f32 %v3783, 0.036000773
      %v3854 = vrot.slane %v3836, 2
      %v3855 = vrot.slane %v3837, 2
      %v3856 = vsel %vm914, %v3854, %v3855
      %v3857 = vrot.slane %v3838, 2
      %v3858 = vsel %vm914, %v3855, %v3857
      %v3859 = vrot.slane %v3839, 2
      %v3860 = vrot.slane %v3840, 2
      %v3861 = vsel %vm914, %v3859, %v3860
      %v3862 = vrot.slane %v3841, 2
      %v3863 = vsel %vm914, %v3860, %v3862
      %v3864 = vrot.slane %v3842, 2
      %v3865 = vrot.slane %v3843, 2
      %v3866 = vsel %vm914, %v3864, %v3865
      %v3867 = vrot.slane %v3844, 2
      %v3868 = vsel %vm914, %v3865, %v3867
      %v3875 = vadd.f32 %v3830, %v3856
      %v3876 = vadd.f32 %v3831, %v3858
      %v3877 = vadd.f32 %v3832, %v3861
      %v3878 = vadd.f32 %v3833, %v3863
      %v3879 = vadd.f32 %v3834, %v3866
      %v3880 = vadd.f32 %v3835, %v3868
      %v3881 = vmul.f32 %v3773, 0.109360695
      %v3882 = vmul.f32 %v3774, 0.109360695
      %v3883 = vmul.f32 %v3775, 0.109360695
      %v3884 = vmul.f32 %v3777, 0.109360695
      %v3885 = vmul.f32 %v3778, 0.109360695
      %v3886 = vmul.f32 %v3779, 0.109360695
      %v3887 = vmul.f32 %v3781, 0.109360695
      %v3888 = vmul.f32 %v3782, 0.109360695
      %v3889 = vmul.f32 %v3783, 0.109360695
      %v3899 = vrot.slane %v3881, 3
      %v3900 = vrot.slane %v3882, 3
      %v3901 = vsel %vm960, %v3899, %v3900
      %v3902 = vrot.slane %v3883, 3
      %v3903 = vsel %vm960, %v3900, %v3902
      %v3904 = vrot.slane %v3884, 3
      %v3905 = vrot.slane %v3885, 3
      %v3906 = vsel %vm960, %v3904, %v3905
      %v3907 = vrot.slane %v3886, 3
      %v3908 = vsel %vm960, %v3905, %v3907
      %v3909 = vrot.slane %v3887, 3
      %v3910 = vrot.slane %v3888, 3
      %v3911 = vsel %vm960, %v3909, %v3910
      %v3912 = vrot.slane %v3889, 3
      %v3913 = vsel %vm960, %v3910, %v3912
      %v3920 = vadd.f32 %v3875, %v3901
      %v3921 = vadd.f32 %v3876, %v3903
      %v3922 = vadd.f32 %v3877, %v3906
      %v3923 = vadd.f32 %v3878, %v3908
      %v3924 = vadd.f32 %v3879, %v3911
      %v3925 = vadd.f32 %v3880, %v3913
      %v3926 = vmul.f32 %v3773, 0.21300554
      %v3927 = vmul.f32 %v3774, 0.21300554
      %v3928 = vmul.f32 %v3775, 0.21300554
      %v3929 = vmul.f32 %v3777, 0.21300554
      %v3930 = vmul.f32 %v3778, 0.21300554
      %v3931 = vmul.f32 %v3779, 0.21300554
      %v3932 = vmul.f32 %v3781, 0.21300554
      %v3933 = vmul.f32 %v3782, 0.21300554
      %v3934 = vmul.f32 %v3783, 0.21300554
      %v3944 = vrot.slane %v3926, 4
      %v3945 = vrot.slane %v3927, 4
      %v3946 = vsel %vm1006, %v3944, %v3945
      %v3947 = vrot.slane %v3928, 4
      %v3948 = vsel %vm1006, %v3945, %v3947
      %v3949 = vrot.slane %v3929, 4
      %v3950 = vrot.slane %v3930, 4
      %v3951 = vsel %vm1006, %v3949, %v3950
      %v3952 = vrot.slane %v3931, 4
      %v3953 = vsel %vm1006, %v3950, %v3952
      %v3954 = vrot.slane %v3932, 4
      %v3955 = vrot.slane %v3933, 4
      %v3956 = vsel %vm1006, %v3954, %v3955
      %v3957 = vrot.slane %v3934, 4
      %v3958 = vsel %vm1006, %v3955, %v3957
      %v3965 = vadd.f32 %v3920, %v3946
      %v3966 = vadd.f32 %v3921, %v3948
      %v3967 = vadd.f32 %v3922, %v3951
      %v3968 = vadd.f32 %v3923, %v3953
      %v3969 = vadd.f32 %v3924, %v3956
      %v3970 = vadd.f32 %v3925, %v3958
      %v3971 = vmul.f32 %v3773, 0.26601174
      %v3972 = vmul.f32 %v3774, 0.26601174
      %v3973 = vmul.f32 %v3775, 0.26601174
      %v3974 = vmul.f32 %v3777, 0.26601174
      %v3975 = vmul.f32 %v3778, 0.26601174
      %v3976 = vmul.f32 %v3779, 0.26601174
      %v3977 = vmul.f32 %v3781, 0.26601174
      %v3978 = vmul.f32 %v3782, 0.26601174
      %v3979 = vmul.f32 %v3783, 0.26601174
      %v3989 = vrot.slane %v3971, 5
      %v3990 = vrot.slane %v3972, 5
      %v3991 = vsel %vm1052, %v3989, %v3990
      %v3992 = vrot.slane %v3973, 5
      %v3993 = vsel %vm1052, %v3990, %v3992
      %v3994 = vrot.slane %v3974, 5
      %v3995 = vrot.slane %v3975, 5
      %v3996 = vsel %vm1052, %v3994, %v3995
      %v3997 = vrot.slane %v3976, 5
      %v3998 = vsel %vm1052, %v3995, %v3997
      %v3999 = vrot.slane %v3977, 5
      %v4000 = vrot.slane %v3978, 5
      %v4001 = vsel %vm1052, %v3999, %v4000
      %v4002 = vrot.slane %v3979, 5
      %v4003 = vsel %vm1052, %v4000, %v4002
      %v4010 = vadd.f32 %v3965, %v3991
      %v4011 = vadd.f32 %v3966, %v3993
      %v4012 = vadd.f32 %v3967, %v3996
      %v4013 = vadd.f32 %v3968, %v3998
      %v4014 = vadd.f32 %v3969, %v4001
      %v4015 = vadd.f32 %v3970, %v4003
      %v4016 = vrot.slane %v3926, 6
      %v4017 = vrot.slane %v3927, 6
      %v4018 = vsel %vm1080, %v4016, %v4017
      %v4019 = vrot.slane %v3928, 6
      %v4020 = vsel %vm1080, %v4017, %v4019
      %v4021 = vrot.slane %v3929, 6
      %v4022 = vrot.slane %v3930, 6
      %v4023 = vsel %vm1080, %v4021, %v4022
      %v4024 = vrot.slane %v3931, 6
      %v4025 = vsel %vm1080, %v4022, %v4024
      %v4026 = vrot.slane %v3932, 6
      %v4027 = vrot.slane %v3933, 6
      %v4028 = vsel %vm1080, %v4026, %v4027
      %v4029 = vrot.slane %v3934, 6
      %v4030 = vsel %vm1080, %v4027, %v4029
      %v4037 = vadd.f32 %v4010, %v4018
      %v4038 = vadd.f32 %v4011, %v4020
      %v4039 = vadd.f32 %v4012, %v4023
      %v4040 = vadd.f32 %v4013, %v4025
      %v4041 = vadd.f32 %v4014, %v4028
      %v4042 = vadd.f32 %v4015, %v4030
      %v4043 = vrot.slane %v3881, 7
      %v4044 = vrot.slane %v3882, 7
      %v4045 = vsel %vm1108, %v4043, %v4044
      %v4046 = vrot.slane %v3883, 7
      %v4047 = vsel %vm1108, %v4044, %v4046
      %v4048 = vrot.slane %v3884, 7
      %v4049 = vrot.slane %v3885, 7
      %v4050 = vsel %vm1108, %v4048, %v4049
      %v4051 = vrot.slane %v3886, 7
      %v4052 = vsel %vm1108, %v4049, %v4051
      %v4053 = vrot.slane %v3887, 7
      %v4054 = vrot.slane %v3888, 7
      %v4055 = vsel %vm1108, %v4053, %v4054
      %v4056 = vrot.slane %v3889, 7
      %v4057 = vsel %vm1108, %v4054, %v4056
      %v4064 = vadd.f32 %v4037, %v4045
      %v4065 = vadd.f32 %v4038, %v4047
      %v4066 = vadd.f32 %v4039, %v4050
      %v4067 = vadd.f32 %v4040, %v4052
      %v4068 = vadd.f32 %v4041, %v4055
      %v4069 = vadd.f32 %v4042, %v4057
      %v4070 = vadd.f32 %v4064, %v3837
      %v4071 = vadd.f32 %v4065, %v3838
      %v4072 = vadd.f32 %v4066, %v3840
      %v4073 = vadd.f32 %v4067, %v3841
      %v4074 = vadd.f32 %v4068, %v3843
      %v4075 = vadd.f32 %v4069, %v3844
      %v4076 = vmul.f32 %v3776, 0.0075987587
      %v4077 = vmul.f32 %v3780, 0.0075987587
      %v4078 = vmul.f32 %v3784, 0.0075987587
      %v4082 = vrot.slane %v4076, 1
      %v4083 = vsel %vm868, %v3812, %v4082
      %v4084 = vrot.slane %v4077, 1
      %v4085 = vsel %vm868, %v3817, %v4084
      %v4086 = vrot.slane %v4078, 1
      %v4087 = vsel %vm868, %v3822, %v4086
      %v4091 = vadd.f32 %v4070, %v3813
      %v4092 = vadd.f32 %v4071, %v4083
      %v4093 = vadd.f32 %v4072, %v3818
      %v4094 = vadd.f32 %v4073, %v4085
      %v4095 = vadd.f32 %v4074, %v3823
      %v4096 = vadd.f32 %v4075, %v4087
      %v4097 = vmul.f32 %v3775, 0.0010283802
      %v4098 = vmul.f32 %v3776, 0.0010283802
      %v4099 = vmul.f32 %v3779, 0.0010283802
      %v4100 = vmul.f32 %v3780, 0.0010283802
      %v4101 = vmul.f32 %v3783, 0.0010283802
      %v4102 = vmul.f32 %v3784, 0.0010283802
      %v4112 = vrot.slane %v3786, 2
      %v4113 = vrot.slane %v4097, 2
      %v4114 = vsel %vm914, %v4112, %v4113
      %v4115 = vrot.slane %v4098, 2
      %v4116 = vsel %vm914, %v4113, %v4115
      %v4117 = vrot.slane %v3788, 2
      %v4118 = vrot.slane %v4099, 2
      %v4119 = vsel %vm914, %v4117, %v4118
      %v4120 = vrot.slane %v4100, 2
      %v4121 = vsel %vm914, %v4118, %v4120
      %v4122 = vrot.slane %v3790, 2
      %v4123 = vrot.slane %v4101, 2
      %v4124 = vsel %vm914, %v4122, %v4123
      %v4125 = vrot.slane %v4102, 2
      %v4126 = vsel %vm914, %v4123, %v4125
      %v4133 = vadd.f32 %v4091, %v4114
      %v4134 = vadd.f32 %v4092, %v4116
      %v4135 = vadd.f32 %v4093, %v4119
      %v4136 = vadd.f32 %v4094, %v4121
      %v4137 = vadd.f32 %v4095, %v4124
      %v4138 = vadd.f32 %v4096, %v4126
      %v4139 = vmul.f32 %v208, 0.0010283802
      %v4140 = vmul.f32 %v209, 0.0010283802
      %v4141 = vmul.f32 %v210, 0.0010283802
      %v4142 = vmul.f32 %v211, 0.0010283802
      %v4143 = vmul.f32 %v212, 0.0010283802
      %v4144 = vmul.f32 %v213, 0.0010283802
      %v4145 = vmul.f32 %v214, 0.0010283802
      %v4146 = vmul.f32 %v215, 0.0010283802
      %v4147 = vmul.f32 %v216, 0.0010283802
      %v4148 = vmul.f32 %v217, 0.0010283802
      %v4149 = vmul.f32 %v218, 0.0010283802
      %v4150 = vmul.f32 %v219, 0.0010283802
      %v4151 = vmul.f32 %v208, 0.0075987587
      %v4152 = vmul.f32 %v209, 0.0075987587
      %v4153 = vmul.f32 %v210, 0.0075987587
      %v4154 = vmul.f32 %v211, 0.0075987587
      %v4155 = vmul.f32 %v212, 0.0075987587
      %v4156 = vmul.f32 %v213, 0.0075987587
      %v4157 = vmul.f32 %v214, 0.0075987587
      %v4158 = vmul.f32 %v215, 0.0075987587
      %v4159 = vmul.f32 %v216, 0.0075987587
      %v4160 = vmul.f32 %v217, 0.0075987587
      %v4161 = vmul.f32 %v218, 0.0075987587
      %v4162 = vmul.f32 %v219, 0.0075987587
      %4175 = vrot.lane.b32.xlu0 %v4151, 127
      %v4176 = vpop.permute.xlu0 %4175
      %4177 = vrot.lane.b32.xlu0 %v4152, 127
      %v4178 = vpop.permute.xlu0 %4177
      %4179 = vrot.lane.b32.xlu0 %v4153, 127
      %v4180 = vpop.permute.xlu0 %4179
      %4181 = vrot.lane.b32.xlu0 %v4154, 127
      %v4182 = vpop.permute.xlu0 %4181
      %4183 = vrot.lane.b32.xlu0 %v4155, 127
      %v4184 = vpop.permute.xlu0 %4183
      %4185 = vrot.lane.b32.xlu0 %v4156, 127
      %v4186 = vpop.permute.xlu0 %4185
      %4187 = vrot.lane.b32.xlu0 %v4157, 127
      %v4188 = vpop.permute.xlu0 %4187
      %4189 = vrot.lane.b32.xlu0 %v4158, 127
      %v4190 = vpop.permute.xlu0 %4189
      %4191 = vrot.lane.b32.xlu0 %v4159, 127
      %v4192 = vpop.permute.xlu0 %4191
      %4193 = vrot.lane.b32.xlu0 %v4160, 127
      %v4194 = vpop.permute.xlu0 %4193
      %4195 = vrot.lane.b32.xlu0 %v4161, 127
      %v4196 = vpop.permute.xlu0 %4195
      %4197 = vrot.lane.b32.xlu0 %v4162, 127
      %v4198 = vpop.permute.xlu0 %4197
      %v4211 = vadd.f32 %v4139, %v4176
      %v4212 = vadd.f32 %v4140, %v4178
      %v4213 = vadd.f32 %v4141, %v4180
      %v4214 = vadd.f32 %v4142, %v4182
      %v4215 = vadd.f32 %v4143, %v4184
      %v4216 = vadd.f32 %v4144, %v4186
      %v4217 = vadd.f32 %v4145, %v4188
      %v4218 = vadd.f32 %v4146, %v4190
      %v4219 = vadd.f32 %v4147, %v4192
      %v4220 = vadd.f32 %v4148, %v4194
      %v4221 = vadd.f32 %v4149, %v4196
      %v4222 = vadd.f32 %v4150, %v4198
      %v4223 = vmul.f32 %v208, 0.036000773
      %v4224 = vmul.f32 %v209, 0.036000773
      %v4225 = vmul.f32 %v210, 0.036000773
      %v4226 = vmul.f32 %v211, 0.036000773
      %v4227 = vmul.f32 %v212, 0.036000773
      %v4228 = vmul.f32 %v213, 0.036000773
      %v4229 = vmul.f32 %v214, 0.036000773
      %v4230 = vmul.f32 %v215, 0.036000773
      %v4231 = vmul.f32 %v216, 0.036000773
      %v4232 = vmul.f32 %v217, 0.036000773
      %v4233 = vmul.f32 %v218, 0.036000773
      %v4234 = vmul.f32 %v219, 0.036000773
      %4247 = vrot.lane.b32.xlu0 %v4223, 126
      %v4248 = vpop.permute.xlu0 %4247
      %4249 = vrot.lane.b32.xlu0 %v4224, 126
      %v4250 = vpop.permute.xlu0 %4249
      %4251 = vrot.lane.b32.xlu0 %v4225, 126
      %v4252 = vpop.permute.xlu0 %4251
      %4253 = vrot.lane.b32.xlu0 %v4226, 126
      %v4254 = vpop.permute.xlu0 %4253
      %4255 = vrot.lane.b32.xlu0 %v4227, 126
      %v4256 = vpop.permute.xlu0 %4255
      %4257 = vrot.lane.b32.xlu0 %v4228, 126
      %v4258 = vpop.permute.xlu0 %4257
      %4259 = vrot.lane.b32.xlu0 %v4229, 126
      %v4260 = vpop.permute.xlu0 %4259
      %4261 = vrot.lane.b32.xlu0 %v4230, 126
      %v4262 = vpop.permute.xlu0 %4261
      %4263 = vrot.lane.b32.xlu0 %v4231, 126
      %v4264 = vpop.permute.xlu0 %4263
      %4265 = vrot.lane.b32.xlu0 %v4232, 126
      %v4266 = vpop.permute.xlu0 %4265
      %4267 = vrot.lane.b32.xlu0 %v4233, 126
      %v4268 = vpop.permute.xlu0 %4267
      %4269 = vrot.lane.b32.xlu0 %v4234, 126
      %v4270 = vpop.permute.xlu0 %4269
      %v4283 = vadd.f32 %v4211, %v4248
      %v4284 = vadd.f32 %v4212, %v4250
      %v4285 = vadd.f32 %v4213, %v4252
      %v4286 = vadd.f32 %v4214, %v4254
      %v4287 = vadd.f32 %v4215, %v4256
      %v4288 = vadd.f32 %v4216, %v4258
      %v4289 = vadd.f32 %v4217, %v4260
      %v4290 = vadd.f32 %v4218, %v4262
      %v4291 = vadd.f32 %v4219, %v4264
      %v4292 = vadd.f32 %v4220, %v4266
      %v4293 = vadd.f32 %v4221, %v4268
      %v4294 = vadd.f32 %v4222, %v4270
      %v4295 = vmul.f32 %v208, 0.109360695
      %v4296 = vmul.f32 %v209, 0.109360695
      %v4297 = vmul.f32 %v210, 0.109360695
      %v4298 = vmul.f32 %v211, 0.109360695
      %v4299 = vmul.f32 %v212, 0.109360695
      %v4300 = vmul.f32 %v213, 0.109360695
      %v4301 = vmul.f32 %v214, 0.109360695
      %v4302 = vmul.f32 %v215, 0.109360695
      %v4303 = vmul.f32 %v216, 0.109360695
      %v4304 = vmul.f32 %v217, 0.109360695
      %v4305 = vmul.f32 %v218, 0.109360695
      %v4306 = vmul.f32 %v219, 0.109360695
      %4319 = vrot.lane.b32.xlu0 %v4295, 125
      %v4320 = vpop.permute.xlu0 %4319
      %4321 = vrot.lane.b32.xlu0 %v4296, 125
      %v4322 = vpop.permute.xlu0 %4321
      %4323 = vrot.lane.b32.xlu0 %v4297, 125
      %v4324 = vpop.permute.xlu0 %4323
      %4325 = vrot.lane.b32.xlu0 %v4298, 125
      %v4326 = vpop.permute.xlu0 %4325
      %4327 = vrot.lane.b32.xlu0 %v4299, 125
      %v4328 = vpop.permute.xlu0 %4327
      %4329 = vrot.lane.b32.xlu0 %v4300, 125
      %v4330 = vpop.permute.xlu0 %4329
      %4331 = vrot.lane.b32.xlu0 %v4301, 125
      %v4332 = vpop.permute.xlu0 %4331
      %4333 = vrot.lane.b32.xlu0 %v4302, 125
      %v4334 = vpop.permute.xlu0 %4333
      %4335 = vrot.lane.b32.xlu0 %v4303, 125
      %v4336 = vpop.permute.xlu0 %4335
      %4337 = vrot.lane.b32.xlu0 %v4304, 125
      %v4338 = vpop.permute.xlu0 %4337
      %4339 = vrot.lane.b32.xlu0 %v4305, 125
      %v4340 = vpop.permute.xlu0 %4339
      %4341 = vrot.lane.b32.xlu0 %v4306, 125
      %v4342 = vpop.permute.xlu0 %4341
      %v4355 = vadd.f32 %v4283, %v4320
      %v4356 = vadd.f32 %v4284, %v4322
      %v4357 = vadd.f32 %v4285, %v4324
      %v4358 = vadd.f32 %v4286, %v4326
      %v4359 = vadd.f32 %v4287, %v4328
      %v4360 = vadd.f32 %v4288, %v4330
      %v4361 = vadd.f32 %v4289, %v4332
      %v4362 = vadd.f32 %v4290, %v4334
      %v4363 = vadd.f32 %v4291, %v4336
      %v4364 = vadd.f32 %v4292, %v4338
      %v4365 = vadd.f32 %v4293, %v4340
      %v4366 = vadd.f32 %v4294, %v4342
      %v4367 = vmul.f32 %v208, 0.21300554
      %v4368 = vmul.f32 %v209, 0.21300554
      %v4369 = vmul.f32 %v210, 0.21300554
      %v4370 = vmul.f32 %v211, 0.21300554
      %v4371 = vmul.f32 %v212, 0.21300554
      %v4372 = vmul.f32 %v213, 0.21300554
      %v4373 = vmul.f32 %v214, 0.21300554
      %v4374 = vmul.f32 %v215, 0.21300554
      %v4375 = vmul.f32 %v216, 0.21300554
      %v4376 = vmul.f32 %v217, 0.21300554
      %v4377 = vmul.f32 %v218, 0.21300554
      %v4378 = vmul.f32 %v219, 0.21300554
      %4391 = vrot.lane.b32.xlu0 %v4367, 124
      %v4392 = vpop.permute.xlu0 %4391
      %4393 = vrot.lane.b32.xlu0 %v4368, 124
      %v4394 = vpop.permute.xlu0 %4393
      %4395 = vrot.lane.b32.xlu0 %v4369, 124
      %v4396 = vpop.permute.xlu0 %4395
      %4397 = vrot.lane.b32.xlu0 %v4370, 124
      %v4398 = vpop.permute.xlu0 %4397
      %4399 = vrot.lane.b32.xlu0 %v4371, 124
      %v4400 = vpop.permute.xlu0 %4399
      %4401 = vrot.lane.b32.xlu0 %v4372, 124
      %v4402 = vpop.permute.xlu0 %4401
      %4403 = vrot.lane.b32.xlu0 %v4373, 124
      %v4404 = vpop.permute.xlu0 %4403
      %4405 = vrot.lane.b32.xlu0 %v4374, 124
      %v4406 = vpop.permute.xlu0 %4405
      %4407 = vrot.lane.b32.xlu0 %v4375, 124
      %v4408 = vpop.permute.xlu0 %4407
      %4409 = vrot.lane.b32.xlu0 %v4376, 124
      %v4410 = vpop.permute.xlu0 %4409
      %4411 = vrot.lane.b32.xlu0 %v4377, 124
      %v4412 = vpop.permute.xlu0 %4411
      %4413 = vrot.lane.b32.xlu0 %v4378, 124
      %v4414 = vpop.permute.xlu0 %4413
      %v4427 = vadd.f32 %v4355, %v4392
      %v4428 = vadd.f32 %v4356, %v4394
      %v4429 = vadd.f32 %v4357, %v4396
      %v4430 = vadd.f32 %v4358, %v4398
      %v4431 = vadd.f32 %v4359, %v4400
      %v4432 = vadd.f32 %v4360, %v4402
      %v4433 = vadd.f32 %v4361, %v4404
      %v4434 = vadd.f32 %v4362, %v4406
      %v4435 = vadd.f32 %v4363, %v4408
      %v4436 = vadd.f32 %v4364, %v4410
      %v4437 = vadd.f32 %v4365, %v4412
      %v4438 = vadd.f32 %v4366, %v4414
      %v4439 = vmul.f32 %v208, 0.26601174
      %v4440 = vmul.f32 %v209, 0.26601174
      %v4441 = vmul.f32 %v210, 0.26601174
      %v4442 = vmul.f32 %v211, 0.26601174
      %v4443 = vmul.f32 %v212, 0.26601174
      %v4444 = vmul.f32 %v213, 0.26601174
      %v4445 = vmul.f32 %v214, 0.26601174
      %v4446 = vmul.f32 %v215, 0.26601174
      %v4447 = vmul.f32 %v216, 0.26601174
      %v4448 = vmul.f32 %v217, 0.26601174
      %v4449 = vmul.f32 %v218, 0.26601174
      %v4450 = vmul.f32 %v219, 0.26601174
      %4463 = vrot.lane.b32.xlu0 %v4439, 123
      %v4464 = vpop.permute.xlu0 %4463
      %4465 = vrot.lane.b32.xlu0 %v4440, 123
      %v4466 = vpop.permute.xlu0 %4465
      %4467 = vrot.lane.b32.xlu0 %v4441, 123
      %v4468 = vpop.permute.xlu0 %4467
      %4469 = vrot.lane.b32.xlu0 %v4442, 123
      %v4470 = vpop.permute.xlu0 %4469
      %4471 = vrot.lane.b32.xlu0 %v4443, 123
      %v4472 = vpop.permute.xlu0 %4471
      %4473 = vrot.lane.b32.xlu0 %v4444, 123
      %v4474 = vpop.permute.xlu0 %4473
      %4475 = vrot.lane.b32.xlu0 %v4445, 123
      %v4476 = vpop.permute.xlu0 %4475
      %4477 = vrot.lane.b32.xlu0 %v4446, 123
      %v4478 = vpop.permute.xlu0 %4477
      %4479 = vrot.lane.b32.xlu0 %v4447, 123
      %v4480 = vpop.permute.xlu0 %4479
      %4481 = vrot.lane.b32.xlu0 %v4448, 123
      %v4482 = vpop.permute.xlu0 %4481
      %4483 = vrot.lane.b32.xlu0 %v4449, 123
      %v4484 = vpop.permute.xlu0 %4483
      %4485 = vrot.lane.b32.xlu0 %v4450, 123
      %v4486 = vpop.permute.xlu0 %4485
      %v4499 = vadd.f32 %v4427, %v4464
      %v4500 = vadd.f32 %v4428, %v4466
      %v4501 = vadd.f32 %v4429, %v4468
      %v4502 = vadd.f32 %v4430, %v4470
      %v4503 = vadd.f32 %v4431, %v4472
      %v4504 = vadd.f32 %v4432, %v4474
      %v4505 = vadd.f32 %v4433, %v4476
      %v4506 = vadd.f32 %v4434, %v4478
      %v4507 = vadd.f32 %v4435, %v4480
      %v4508 = vadd.f32 %v4436, %v4482
      %v4509 = vadd.f32 %v4437, %v4484
      %v4510 = vadd.f32 %v4438, %v4486
      %4511 = vrot.lane.b32.xlu0 %v4367, 122
      %v4512 = vpop.permute.xlu0 %4511
      %4513 = vrot.lane.b32.xlu0 %v4368, 122
      %v4514 = vpop.permute.xlu0 %4513
      %4515 = vrot.lane.b32.xlu0 %v4369, 122
      %v4516 = vpop.permute.xlu0 %4515
      %4517 = vrot.lane.b32.xlu0 %v4370, 122
      %v4518 = vpop.permute.xlu0 %4517
      %4519 = vrot.lane.b32.xlu0 %v4371, 122
      %v4520 = vpop.permute.xlu0 %4519
      %4521 = vrot.lane.b32.xlu0 %v4372, 122
      %v4522 = vpop.permute.xlu0 %4521
      %4523 = vrot.lane.b32.xlu0 %v4373, 122
      %v4524 = vpop.permute.xlu0 %4523
      %4525 = vrot.lane.b32.xlu0 %v4374, 122
      %v4526 = vpop.permute.xlu0 %4525
      %4527 = vrot.lane.b32.xlu0 %v4375, 122
      %v4528 = vpop.permute.xlu0 %4527
      %4529 = vrot.lane.b32.xlu0 %v4376, 122
      %v4530 = vpop.permute.xlu0 %4529
      %4531 = vrot.lane.b32.xlu0 %v4377, 122
      %v4532 = vpop.permute.xlu0 %4531
      %4533 = vrot.lane.b32.xlu0 %v4378, 122
      %v4534 = vpop.permute.xlu0 %4533
      %v4547 = vadd.f32 %v4499, %v4512
      %v4548 = vadd.f32 %v4500, %v4514
      %v4549 = vadd.f32 %v4501, %v4516
      %v4550 = vadd.f32 %v4502, %v4518
      %v4551 = vadd.f32 %v4503, %v4520
      %v4552 = vadd.f32 %v4504, %v4522
      %v4553 = vadd.f32 %v4505, %v4524
      %v4554 = vadd.f32 %v4506, %v4526
      %v4555 = vadd.f32 %v4507, %v4528
      %v4556 = vadd.f32 %v4508, %v4530
      %v4557 = vadd.f32 %v4509, %v4532
      %v4558 = vadd.f32 %v4510, %v4534
      %4559 = vrot.lane.b32.xlu0 %v4295, 121
      %v4560 = vpop.permute.xlu0 %4559
      %4561 = vrot.lane.b32.xlu0 %v4296, 121
      %v4562 = vpop.permute.xlu0 %4561
      %4563 = vrot.lane.b32.xlu0 %v4297, 121
      %v4564 = vpop.permute.xlu0 %4563
      %4565 = vrot.lane.b32.xlu0 %v4298, 121
      %v4566 = vpop.permute.xlu0 %4565
      %4567 = vrot.lane.b32.xlu0 %v4299, 121
      %v4568 = vpop.permute.xlu0 %4567
      %4569 = vrot.lane.b32.xlu0 %v4300, 121
      %v4570 = vpop.permute.xlu0 %4569
      %4571 = vrot.lane.b32.xlu0 %v4301, 121
      %v4572 = vpop.permute.xlu0 %4571
      %4573 = vrot.lane.b32.xlu0 %v4302, 121
      %v4574 = vpop.permute.xlu0 %4573
      %4575 = vrot.lane.b32.xlu0 %v4303, 121
      %v4576 = vpop.permute.xlu0 %4575
      %4577 = vrot.lane.b32.xlu0 %v4304, 121
      %v4578 = vpop.permute.xlu0 %4577
      %4579 = vrot.lane.b32.xlu0 %v4305, 121
      %v4580 = vpop.permute.xlu0 %4579
      %4581 = vrot.lane.b32.xlu0 %v4306, 121
      %v4582 = vpop.permute.xlu0 %4581
      %v4595 = vadd.f32 %v4547, %v4560
      %v4596 = vadd.f32 %v4548, %v4562
      %v4597 = vadd.f32 %v4549, %v4564
      %v4598 = vadd.f32 %v4550, %v4566
      %v4599 = vadd.f32 %v4551, %v4568
      %v4600 = vadd.f32 %v4552, %v4570
      %v4601 = vadd.f32 %v4553, %v4572
      %v4602 = vadd.f32 %v4554, %v4574
      %v4603 = vadd.f32 %v4555, %v4576
      %v4604 = vadd.f32 %v4556, %v4578
      %v4605 = vadd.f32 %v4557, %v4580
      %v4606 = vadd.f32 %v4558, %v4582
      %4607 = vrot.lane.b32.xlu0 %v4223, 120
      %v4608 = vpop.permute.xlu0 %4607
      %4609 = vrot.lane.b32.xlu0 %v4224, 120
      %v4610 = vpop.permute.xlu0 %4609
      %4611 = vrot.lane.b32.xlu0 %v4225, 120
      %v4612 = vpop.permute.xlu0 %4611
      %4613 = vrot.lane.b32.xlu0 %v4226, 120
      %v4614 = vpop.permute.xlu0 %4613
      %4615 = vrot.lane.b32.xlu0 %v4227, 120
      %v4616 = vpop.permute.xlu0 %4615
      %4617 = vrot.lane.b32.xlu0 %v4228, 120
      %v4618 = vpop.permute.xlu0 %4617
      %4619 = vrot.lane.b32.xlu0 %v4229, 120
      %v4620 = vpop.permute.xlu0 %4619
      %4621 = vrot.lane.b32.xlu0 %v4230, 120
      %v4622 = vpop.permute.xlu0 %4621
      %4623 = vrot.lane.b32.xlu0 %v4231, 120
      %v4624 = vpop.permute.xlu0 %4623
      %4625 = vrot.lane.b32.xlu0 %v4232, 120
      %v4626 = vpop.permute.xlu0 %4625
      %4627 = vrot.lane.b32.xlu0 %v4233, 120
      %v4628 = vpop.permute.xlu0 %4627
      %4629 = vrot.lane.b32.xlu0 %v4234, 120
      %v4630 = vpop.permute.xlu0 %4629
      %v4643 = vadd.f32 %v4595, %v4608
      %v4644 = vadd.f32 %v4596, %v4610
      %v4645 = vadd.f32 %v4597, %v4612
      %v4646 = vadd.f32 %v4598, %v4614
      %v4647 = vadd.f32 %v4599, %v4616
      %v4648 = vadd.f32 %v4600, %v4618
      %v4649 = vadd.f32 %v4601, %v4620
      %v4650 = vadd.f32 %v4602, %v4622
      %v4651 = vadd.f32 %v4603, %v4624
      %v4652 = vadd.f32 %v4604, %v4626
      %v4653 = vadd.f32 %v4605, %v4628
      %v4654 = vadd.f32 %v4606, %v4630
      %4655 = vrot.lane.b32.xlu0 %v4151, 119
      %v4656 = vpop.permute.xlu0 %4655
      %4657 = vrot.lane.b32.xlu0 %v4152, 119
      %v4658 = vpop.permute.xlu0 %4657
      %4659 = vrot.lane.b32.xlu0 %v4153, 119
      %v4660 = vpop.permute.xlu0 %4659
      %4661 = vrot.lane.b32.xlu0 %v4154, 119
      %v4662 = vpop.permute.xlu0 %4661
      %4663 = vrot.lane.b32.xlu0 %v4155, 119
      %v4664 = vpop.permute.xlu0 %4663
      %4665 = vrot.lane.b32.xlu0 %v4156, 119
      %v4666 = vpop.permute.xlu0 %4665
      %4667 = vrot.lane.b32.xlu0 %v4157, 119
      %v4668 = vpop.permute.xlu0 %4667
      %4669 = vrot.lane.b32.xlu0 %v4158, 119
      %v4670 = vpop.permute.xlu0 %4669
      %4671 = vrot.lane.b32.xlu0 %v4159, 119
      %v4672 = vpop.permute.xlu0 %4671
      %4673 = vrot.lane.b32.xlu0 %v4160, 119
      %v4674 = vpop.permute.xlu0 %4673
      %4675 = vrot.lane.b32.xlu0 %v4161, 119
      %v4676 = vpop.permute.xlu0 %4675
      %4677 = vrot.lane.b32.xlu0 %v4162, 119
      %v4678 = vpop.permute.xlu0 %4677
      %v4691 = vadd.f32 %v4643, %v4656
      %v4692 = vadd.f32 %v4644, %v4658
      %v4693 = vadd.f32 %v4645, %v4660
      %v4694 = vadd.f32 %v4646, %v4662
      %v4695 = vadd.f32 %v4647, %v4664
      %v4696 = vadd.f32 %v4648, %v4666
      %v4697 = vadd.f32 %v4649, %v4668
      %v4698 = vadd.f32 %v4650, %v4670
      %v4699 = vadd.f32 %v4651, %v4672
      %v4700 = vadd.f32 %v4652, %v4674
      %v4701 = vadd.f32 %v4653, %v4676
      %v4702 = vadd.f32 %v4654, %v4678
      %4715 = vrot.lane.b32.xlu0 %v4139, 118
      %v4716 = vpop.permute.xlu0 %4715
      %4717 = vrot.lane.b32.xlu0 %v4140, 118
      %v4718 = vpop.permute.xlu0 %4717
      %4719 = vrot.lane.b32.xlu0 %v4141, 118
      %v4720 = vpop.permute.xlu0 %4719
      %4721 = vrot.lane.b32.xlu0 %v4142, 118
      %v4722 = vpop.permute.xlu0 %4721
      %4723 = vrot.lane.b32.xlu0 %v4143, 118
      %v4724 = vpop.permute.xlu0 %4723
      %4725 = vrot.lane.b32.xlu0 %v4144, 118
      %v4726 = vpop.permute.xlu0 %4725
      %4727 = vrot.lane.b32.xlu0 %v4145, 118
      %v4728 = vpop.permute.xlu0 %4727
      %4729 = vrot.lane.b32.xlu0 %v4146, 118
      %v4730 = vpop.permute.xlu0 %4729
      %4731 = vrot.lane.b32.xlu0 %v4147, 118
      %v4732 = vpop.permute.xlu0 %4731
      %4733 = vrot.lane.b32.xlu0 %v4148, 118
      %v4734 = vpop.permute.xlu0 %4733
      %4735 = vrot.lane.b32.xlu0 %v4149, 118
      %v4736 = vpop.permute.xlu0 %4735
      %4737 = vrot.lane.b32.xlu0 %v4150, 118
      %v4738 = vpop.permute.xlu0 %4737
      %v4751 = vadd.f32 %v4691, %v4716
      %v4752 = vadd.f32 %v4692, %v4718
      %v4753 = vadd.f32 %v4693, %v4720
      %v4754 = vadd.f32 %v4694, %v4722
      %v4755 = vadd.f32 %v4695, %v4724
      %v4756 = vadd.f32 %v4696, %v4726
      %v4757 = vadd.f32 %v4697, %v4728
      %v4758 = vadd.f32 %v4698, %v4730
      %v4759 = vadd.f32 %v4699, %v4732
      %v4760 = vadd.f32 %v4700, %v4734
      %v4761 = vadd.f32 %v4701, %v4736
      %v4762 = vadd.f32 %v4702, %v4738
      %v4763 = vmul.f32 %v4751, 0.0010283802
      %v4764 = vmul.f32 %v4752, 0.0010283802
      %v4765 = vmul.f32 %v4755, 0.0010283802
      %v4766 = vmul.f32 %v4756, 0.0010283802
      %v4767 = vmul.f32 %v4759, 0.0010283802
      %v4768 = vmul.f32 %v4760, 0.0010283802
      %v4769 = vmul.f32 %v4751, 0.0075987587
      %v4770 = vmul.f32 %v4752, 0.0075987587
      %v4771 = vmul.f32 %v4753, 0.0075987587
      %v4772 = vmul.f32 %v4755, 0.0075987587
      %v4773 = vmul.f32 %v4756, 0.0075987587
      %v4774 = vmul.f32 %v4757, 0.0075987587
      %v4775 = vmul.f32 %v4759, 0.0075987587
      %v4776 = vmul.f32 %v4760, 0.0075987587
      %v4777 = vmul.f32 %v4761, 0.0075987587
      %v4787 = vrot.slane %v4769, 1
      %v4788 = vrot.slane %v4770, 1
      %v4789 = vsel %vm868, %v4787, %v4788
      %v4790 = vrot.slane %v4771, 1
      %v4791 = vsel %vm868, %v4788, %v4790
      %v4792 = vrot.slane %v4772, 1
      %v4793 = vrot.slane %v4773, 1
      %v4794 = vsel %vm868, %v4792, %v4793
      %v4795 = vrot.slane %v4774, 1
      %v4796 = vsel %vm868, %v4793, %v4795
      %v4797 = vrot.slane %v4775, 1
      %v4798 = vrot.slane %v4776, 1
      %v4799 = vsel %vm868, %v4797, %v4798
      %v4800 = vrot.slane %v4777, 1
      %v4801 = vsel %vm868, %v4798, %v4800
      %v4808 = vadd.f32 %v4763, %v4789
      %v4809 = vadd.f32 %v4764, %v4791
      %v4810 = vadd.f32 %v4765, %v4794
      %v4811 = vadd.f32 %v4766, %v4796
      %v4812 = vadd.f32 %v4767, %v4799
      %v4813 = vadd.f32 %v4768, %v4801
      %v4814 = vmul.f32 %v4751, 0.036000773
      %v4815 = vmul.f32 %v4752, 0.036000773
      %v4816 = vmul.f32 %v4753, 0.036000773
      %v4817 = vmul.f32 %v4755, 0.036000773
      %v4818 = vmul.f32 %v4756, 0.036000773
      %v4819 = vmul.f32 %v4757, 0.036000773
      %v4820 = vmul.f32 %v4759, 0.036000773
      %v4821 = vmul.f32 %v4760, 0.036000773
      %v4822 = vmul.f32 %v4761, 0.036000773
      %v4832 = vrot.slane %v4814, 2
      %v4833 = vrot.slane %v4815, 2
      %v4834 = vsel %vm914, %v4832, %v4833
      %v4835 = vrot.slane %v4816, 2
      %v4836 = vsel %vm914, %v4833, %v4835
      %v4837 = vrot.slane %v4817, 2
      %v4838 = vrot.slane %v4818, 2
      %v4839 = vsel %vm914, %v4837, %v4838
      %v4840 = vrot.slane %v4819, 2
      %v4841 = vsel %vm914, %v4838, %v4840
      %v4842 = vrot.slane %v4820, 2
      %v4843 = vrot.slane %v4821, 2
      %v4844 = vsel %vm914, %v4842, %v4843
      %v4845 = vrot.slane %v4822, 2
      %v4846 = vsel %vm914, %v4843, %v4845
      %v4853 = vadd.f32 %v4808, %v4834
      %v4854 = vadd.f32 %v4809, %v4836
      %v4855 = vadd.f32 %v4810, %v4839
      %v4856 = vadd.f32 %v4811, %v4841
      %v4857 = vadd.f32 %v4812, %v4844
      %v4858 = vadd.f32 %v4813, %v4846
      %v4859 = vmul.f32 %v4751, 0.109360695
      %v4860 = vmul.f32 %v4752, 0.109360695
      %v4861 = vmul.f32 %v4753, 0.109360695
      %v4862 = vmul.f32 %v4755, 0.109360695
      %v4863 = vmul.f32 %v4756, 0.109360695
      %v4864 = vmul.f32 %v4757, 0.109360695
      %v4865 = vmul.f32 %v4759, 0.109360695
      %v4866 = vmul.f32 %v4760, 0.109360695
      %v4867 = vmul.f32 %v4761, 0.109360695
      %v4877 = vrot.slane %v4859, 3
      %v4878 = vrot.slane %v4860, 3
      %v4879 = vsel %vm960, %v4877, %v4878
      %v4880 = vrot.slane %v4861, 3
      %v4881 = vsel %vm960, %v4878, %v4880
      %v4882 = vrot.slane %v4862, 3
      %v4883 = vrot.slane %v4863, 3
      %v4884 = vsel %vm960, %v4882, %v4883
      %v4885 = vrot.slane %v4864, 3
      %v4886 = vsel %vm960, %v4883, %v4885
      %v4887 = vrot.slane %v4865, 3
      %v4888 = vrot.slane %v4866, 3
      %v4889 = vsel %vm960, %v4887, %v4888
      %v4890 = vrot.slane %v4867, 3
      %v4891 = vsel %vm960, %v4888, %v4890
      %v4898 = vadd.f32 %v4853, %v4879
      %v4899 = vadd.f32 %v4854, %v4881
      %v4900 = vadd.f32 %v4855, %v4884
      %v4901 = vadd.f32 %v4856, %v4886
      %v4902 = vadd.f32 %v4857, %v4889
      %v4903 = vadd.f32 %v4858, %v4891
      %v4904 = vmul.f32 %v4751, 0.21300554
      %v4905 = vmul.f32 %v4752, 0.21300554
      %v4906 = vmul.f32 %v4753, 0.21300554
      %v4907 = vmul.f32 %v4755, 0.21300554
      %v4908 = vmul.f32 %v4756, 0.21300554
      %v4909 = vmul.f32 %v4757, 0.21300554
      %v4910 = vmul.f32 %v4759, 0.21300554
      %v4911 = vmul.f32 %v4760, 0.21300554
      %v4912 = vmul.f32 %v4761, 0.21300554
      %v4922 = vrot.slane %v4904, 4
      %v4923 = vrot.slane %v4905, 4
      %v4924 = vsel %vm1006, %v4922, %v4923
      %v4925 = vrot.slane %v4906, 4
      %v4926 = vsel %vm1006, %v4923, %v4925
      %v4927 = vrot.slane %v4907, 4
      %v4928 = vrot.slane %v4908, 4
      %v4929 = vsel %vm1006, %v4927, %v4928
      %v4930 = vrot.slane %v4909, 4
      %v4931 = vsel %vm1006, %v4928, %v4930
      %v4932 = vrot.slane %v4910, 4
      %v4933 = vrot.slane %v4911, 4
      %v4934 = vsel %vm1006, %v4932, %v4933
      %v4935 = vrot.slane %v4912, 4
      %v4936 = vsel %vm1006, %v4933, %v4935
      %v4943 = vadd.f32 %v4898, %v4924
      %v4944 = vadd.f32 %v4899, %v4926
      %v4945 = vadd.f32 %v4900, %v4929
      %v4946 = vadd.f32 %v4901, %v4931
      %v4947 = vadd.f32 %v4902, %v4934
      %v4948 = vadd.f32 %v4903, %v4936
      %v4949 = vmul.f32 %v4751, 0.26601174
      %v4950 = vmul.f32 %v4752, 0.26601174
      %v4951 = vmul.f32 %v4753, 0.26601174
      %v4952 = vmul.f32 %v4755, 0.26601174
      %v4953 = vmul.f32 %v4756, 0.26601174
      %v4954 = vmul.f32 %v4757, 0.26601174
      %v4955 = vmul.f32 %v4759, 0.26601174
      %v4956 = vmul.f32 %v4760, 0.26601174
      %v4957 = vmul.f32 %v4761, 0.26601174
      %v4967 = vrot.slane %v4949, 5
      %v4968 = vrot.slane %v4950, 5
      %v4969 = vsel %vm1052, %v4967, %v4968
      %v4970 = vrot.slane %v4951, 5
      %v4971 = vsel %vm1052, %v4968, %v4970
      %v4972 = vrot.slane %v4952, 5
      %v4973 = vrot.slane %v4953, 5
      %v4974 = vsel %vm1052, %v4972, %v4973
      %v4975 = vrot.slane %v4954, 5
      %v4976 = vsel %vm1052, %v4973, %v4975
      %v4977 = vrot.slane %v4955, 5
      %v4978 = vrot.slane %v4956, 5
      %v4979 = vsel %vm1052, %v4977, %v4978
      %v4980 = vrot.slane %v4957, 5
      %v4981 = vsel %vm1052, %v4978, %v4980
      %v4988 = vadd.f32 %v4943, %v4969
      %v4989 = vadd.f32 %v4944, %v4971
      %v4990 = vadd.f32 %v4945, %v4974
      %v4991 = vadd.f32 %v4946, %v4976
      %v4992 = vadd.f32 %v4947, %v4979
      %v4993 = vadd.f32 %v4948, %v4981
      %v4994 = vrot.slane %v4904, 6
      %v4995 = vrot.slane %v4905, 6
      %v4996 = vsel %vm1080, %v4994, %v4995
      %v4997 = vrot.slane %v4906, 6
      %v4998 = vsel %vm1080, %v4995, %v4997
      %v4999 = vrot.slane %v4907, 6
      %v5000 = vrot.slane %v4908, 6
      %v5001 = vsel %vm1080, %v4999, %v5000
      %v5002 = vrot.slane %v4909, 6
      %v5003 = vsel %vm1080, %v5000, %v5002
      %v5004 = vrot.slane %v4910, 6
      %v5005 = vrot.slane %v4911, 6
      %v5006 = vsel %vm1080, %v5004, %v5005
      %v5007 = vrot.slane %v4912, 6
      %v5008 = vsel %vm1080, %v5005, %v5007
      %v5015 = vadd.f32 %v4988, %v4996
      %v5016 = vadd.f32 %v4989, %v4998
      %v5017 = vadd.f32 %v4990, %v5001
      %v5018 = vadd.f32 %v4991, %v5003
      %v5019 = vadd.f32 %v4992, %v5006
      %v5020 = vadd.f32 %v4993, %v5008
      %v5021 = vrot.slane %v4859, 7
      %v5022 = vrot.slane %v4860, 7
      %v5023 = vsel %vm1108, %v5021, %v5022
      %v5024 = vrot.slane %v4861, 7
      %v5025 = vsel %vm1108, %v5022, %v5024
      %v5026 = vrot.slane %v4862, 7
      %v5027 = vrot.slane %v4863, 7
      %v5028 = vsel %vm1108, %v5026, %v5027
      %v5029 = vrot.slane %v4864, 7
      %v5030 = vsel %vm1108, %v5027, %v5029
      %v5031 = vrot.slane %v4865, 7
      %v5032 = vrot.slane %v4866, 7
      %v5033 = vsel %vm1108, %v5031, %v5032
      %v5034 = vrot.slane %v4867, 7
      %v5035 = vsel %vm1108, %v5032, %v5034
      %v5042 = vadd.f32 %v5015, %v5023
      %v5043 = vadd.f32 %v5016, %v5025
      %v5044 = vadd.f32 %v5017, %v5028
      %v5045 = vadd.f32 %v5018, %v5030
      %v5046 = vadd.f32 %v5019, %v5033
      %v5047 = vadd.f32 %v5020, %v5035
      %v5048 = vadd.f32 %v5042, %v4815
      %v5049 = vadd.f32 %v5043, %v4816
      %v5050 = vadd.f32 %v5044, %v4818
      %v5051 = vadd.f32 %v5045, %v4819
      %v5052 = vadd.f32 %v5046, %v4821
      %v5053 = vadd.f32 %v5047, %v4822
      %v5054 = vmul.f32 %v4754, 0.0075987587
      %v5055 = vmul.f32 %v4758, 0.0075987587
      %v5056 = vmul.f32 %v4762, 0.0075987587
      %v5060 = vrot.slane %v5054, 1
      %v5061 = vsel %vm868, %v4790, %v5060
      %v5062 = vrot.slane %v5055, 1
      %v5063 = vsel %vm868, %v4795, %v5062
      %v5064 = vrot.slane %v5056, 1
      %v5065 = vsel %vm868, %v4800, %v5064
      %v5069 = vadd.f32 %v5048, %v4791
      %v5070 = vadd.f32 %v5049, %v5061
      %v5071 = vadd.f32 %v5050, %v4796
      %v5072 = vadd.f32 %v5051, %v5063
      %v5073 = vadd.f32 %v5052, %v4801
      %v5074 = vadd.f32 %v5053, %v5065
      %v5075 = vmul.f32 %v4753, 0.0010283802
      %v5076 = vmul.f32 %v4754, 0.0010283802
      %v5077 = vmul.f32 %v4757, 0.0010283802
      %v5078 = vmul.f32 %v4758, 0.0010283802
      %v5079 = vmul.f32 %v4761, 0.0010283802
      %v5080 = vmul.f32 %v4762, 0.0010283802
      %v5090 = vrot.slane %v4764, 2
      %v5091 = vrot.slane %v5075, 2
      %v5092 = vsel %vm914, %v5090, %v5091
      %v5093 = vrot.slane %v5076, 2
      %v5094 = vsel %vm914, %v5091, %v5093
      %v5095 = vrot.slane %v4766, 2
      %v5096 = vrot.slane %v5077, 2
      %v5097 = vsel %vm914, %v5095, %v5096
      %v5098 = vrot.slane %v5078, 2
      %v5099 = vsel %vm914, %v5096, %v5098
      %v5100 = vrot.slane %v4768, 2
      %v5101 = vrot.slane %v5079, 2
      %v5102 = vsel %vm914, %v5100, %v5101
      %v5103 = vrot.slane %v5080, 2
      %v5104 = vsel %vm914, %v5101, %v5103
      %v5111 = vadd.f32 %v5069, %v5092
      %v5112 = vadd.f32 %v5070, %v5094
      %v5113 = vadd.f32 %v5071, %v5097
      %v5114 = vadd.f32 %v5072, %v5099
      %v5115 = vadd.f32 %v5073, %v5102
      %v5116 = vadd.f32 %v5074, %v5104
      %v5117 = vmul.f32 %v1199, %v1199
      %v5118 = vmul.f32 %v1200, %v1200
      %v5119 = vmul.f32 %v1201, %v1201
      %v5120 = vmul.f32 %v1202, %v1202
      %v5121 = vmul.f32 %v1203, %v1203
      %v5122 = vmul.f32 %v1204, %v1204
      %v5123 = vmul.f32 %v2177, %v2177
      %v5124 = vmul.f32 %v2178, %v2178
      %v5125 = vmul.f32 %v2179, %v2179
      %v5126 = vmul.f32 %v2180, %v2180
      %v5127 = vmul.f32 %v2181, %v2181
      %v5128 = vmul.f32 %v2182, %v2182
      %v5129 = vmul.f32 %v1199, %v2177
      %v5130 = vmul.f32 %v1200, %v2178
      %v5131 = vmul.f32 %v1201, %v2179
      %v5132 = vmul.f32 %v1202, %v2180
      %v5133 = vmul.f32 %v1203, %v2181
      %v5134 = vmul.f32 %v1204, %v2182
      %v5135 = vsub.f32 %v3155, %v5117
      %v5136 = vsub.f32 %v3156, %v5118
      %v5137 = vsub.f32 %v3157, %v5119
      %v5138 = vsub.f32 %v3158, %v5120
      %v5139 = vsub.f32 %v3159, %v5121
      %v5140 = vsub.f32 %v3160, %v5122
      %v5141 = vsub.f32 %v4133, %v5123
      %v5142 = vsub.f32 %v4134, %v5124
      %v5143 = vsub.f32 %v4135, %v5125
      %v5144 = vsub.f32 %v4136, %v5126
      %v5145 = vsub.f32 %v4137, %v5127
      %v5146 = vsub.f32 %v4138, %v5128
      %v5147 = vsub.f32 %v5111, %v5129
      %v5148 = vsub.f32 %v5112, %v5130
      %v5149 = vsub.f32 %v5113, %v5131
      %v5150 = vsub.f32 %v5114, %v5132
      %v5151 = vsub.f32 %v5115, %v5133
      %v5152 = vsub.f32 %v5116, %v5134
      %v5153 = vmul.f32 %v5129, 2.0
      %v5154 = vmul.f32 %v5130, 2.0
      %v5155 = vmul.f32 %v5131, 2.0
      %v5156 = vmul.f32 %v5132, 2.0
      %v5157 = vmul.f32 %v5133, 2.0
      %v5158 = vmul.f32 %v5134, 2.0
      %v5159 = vadd.f32 %v5153, 0.0001
      %v5160 = vadd.f32 %v5154, 0.0001
      %v5161 = vadd.f32 %v5155, 0.0001
      %v5162 = vadd.f32 %v5156, 0.0001
      %v5163 = vadd.f32 %v5157, 0.0001
      %v5164 = vadd.f32 %v5158, 0.0001
      %v5165 = vmul.f32 %v5147, 2.0
      %v5166 = vmul.f32 %v5148, 2.0
      %v5167 = vmul.f32 %v5149, 2.0
      %v5168 = vmul.f32 %v5150, 2.0
      %v5169 = vmul.f32 %v5151, 2.0
      %v5170 = vmul.f32 %v5152, 2.0
      %v5171 = vadd.f32 %v5165, 0.0009
      %v5172 = vadd.f32 %v5166, 0.0009
      %v5173 = vadd.f32 %v5167, 0.0009
      %v5174 = vadd.f32 %v5168, 0.0009
      %v5175 = vadd.f32 %v5169, 0.0009
      %v5176 = vadd.f32 %v5170, 0.0009
      %v5177 = vmul.f32 %v5159, %v5171
      %v5178 = vmul.f32 %v5160, %v5172
      %v5179 = vmul.f32 %v5161, %v5173
      %v5180 = vmul.f32 %v5162, %v5174
      %v5181 = vmul.f32 %v5163, %v5175
      %v5182 = vmul.f32 %v5164, %v5176
      %v5183 = vadd.f32 %v5117, %v5123
      %v5184 = vadd.f32 %v5118, %v5124
      %v5185 = vadd.f32 %v5119, %v5125
      %v5186 = vadd.f32 %v5120, %v5126
      %v5187 = vadd.f32 %v5121, %v5127
      %v5188 = vadd.f32 %v5122, %v5128
      %v5189 = vadd.f32 %v5183, 0.0001
      %v5190 = vadd.f32 %v5184, 0.0001
      %v5191 = vadd.f32 %v5185, 0.0001
      %v5192 = vadd.f32 %v5186, 0.0001
      %v5193 = vadd.f32 %v5187, 0.0001
      %v5194 = vadd.f32 %v5188, 0.0001
      %v5195 = vadd.f32 %v5135, %v5141
      %v5196 = vadd.f32 %v5136, %v5142
      %v5197 = vadd.f32 %v5137, %v5143
      %v5198 = vadd.f32 %v5138, %v5144
      %v5199 = vadd.f32 %v5139, %v5145
      %v5200 = vadd.f32 %v5140, %v5146
      %v5201 = vadd.f32 %v5195, 0.0009
      %v5202 = vadd.f32 %v5196, 0.0009
      %v5203 = vadd.f32 %v5197, 0.0009
      %v5204 = vadd.f32 %v5198, 0.0009
      %v5205 = vadd.f32 %v5199, 0.0009
      %v5206 = vadd.f32 %v5200, 0.0009
      %v5207 = vmul.f32 %v5189, %v5201
      %v5208 = vmul.f32 %v5190, %v5202
      %v5209 = vmul.f32 %v5191, %v5203
      %v5210 = vmul.f32 %v5192, %v5204
      %v5211 = vmul.f32 %v5193, %v5205
      %v5212 = vmul.f32 %v5194, %v5206
      %v5213 = vrcp.pop %v5207
      %v5214 = vmul.f32 %v5177, %v5213
      %v5215 = vrcp.pop %v5208
      %v5216 = vmul.f32 %v5178, %v5215
      %v5217 = vrcp.pop %v5209
      %v5218 = vmul.f32 %v5179, %v5217
      %v5219 = vrcp.pop %v5210
      %v5220 = vmul.f32 %v5180, %v5219
      %v5221 = vrcp.pop %v5211
      %v5222 = vmul.f32 %v5181, %v5221
      %v5223 = vrcp.pop %v5212
      %v5224 = vmul.f32 %v5182, %v5223
      %vm5225 = vcmask 130048
      %v5226 = vsel %vm5225, %v5214, 0.0
      %v5227 = vsel %vm5225, %v5216, 0.0
      %v5228 = vadd.f32 %v5226, %v5227
      %v5229 = vsel %vm5225, %v5218, 0.0
      %v5230 = vadd.f32 %v5228, %v5229
      %v5231 = vsel %vm5225, %v5220, 0.0
      %v5232 = vadd.f32 %v5230, %v5231
      %v5233 = vsel %vm5225, %v5222, 0.0
      %v5234 = vadd.f32 %v5232, %v5233
      %v5235 = vsel %vm5225, %v5224, 0.0
      %v5236 = vadd.f32 %v5234, %v5235
      %5237 = vadd.xlane.f32.xlu0 %v5236
      %v5238 = vpop.xlane.xlu0 %5237
      %v5239 = vrot.slane %v5238, 4
      %v5240 = vadd.f32 %v5238, %v5239
      %v5241 = vrot.slane %v5240, 2
      %v5242 = vadd.f32 %v5240, %v5241
      %v5243 = vrot.slane %v5242, 1
      %v5244 = vadd.f32 %v5242, %v5243
      %s5245 = vtos %v5244
      %v5246 = vstv %s5245
      %vm5247 = vcmask 0
      %5248 = vst.msk [vmem:[%s159] sm:$0x1] %vm5247, %v5246
      %p5249 = scmp.lt.s32.totalorder %s13, 1
      %s5250 = scalar_select %p5249, %s13, 1
      %s5251 = scalar_lea.vmem %s2, %s5250
      // Predicated region
      $region29: #{tpu_custom_call.1} parent=27 // pred_check
        %p5252 = pneg %p83
      $region30: #{tpu_custom_call.1} parent=27 // pred_check_branch
        %5254 = sbr.rel (%p5252) target = $region32
      $region31: #{tpu_custom_call.1} parent=27 // pred_region
        _
      $region32: #{tpu_custom_call.1} parent=27 // pred_fallthru
        _
    $region28: #{tpu_custom_call.1} parent=5 // pred_fallthru
      _
    %p5255 = scmp.le.s32.totalorder 2, %s8
    // Predicated region
    $region33: #{tpu_custom_call.1} parent=5 // pred_check
      %p5256 = pneg %p5255
    $region34: #{tpu_custom_call.1} parent=5 // pred_check_branch
      %5258 = sbr.rel (%p5256) target = $region36
    $region35: #{tpu_custom_call.1} parent=5 // pred_region
      %s5259 = ssub.s32 %s8, 2
      // Predicated region
      $region37: #{tpu_custom_call.1} parent=35 // pred_check
        %p5260 = pneg %p89
      $region38: #{tpu_custom_call.1} parent=35 // pred_check_branch
        %5262 = sbr.rel (%p5260) target = $region40
      $region39: #{tpu_custom_call.1} parent=35 // pred_region
        %p5263 = scmp.lt.s32.totalorder %s14, 1
        %s5264 = scalar_select %p5263, %s14, 1
        %s5265 = scalar_lea.vmem %s2, %s5264
      $region40: #{tpu_custom_call.1} parent=35 // pred_fallthru
        _
    $region36: #{tpu_custom_call.1} parent=5 // pred_fallthru
      _
  $region6: #{tpu_custom_call.1} parent=0 // loop_footer
    %s12 = sadd.s32 1, %s8
  $region7: #{tpu_custom_call.1} parent=0 // loop_footer_branch
    %7 = sbr.rel target = $region3
  $region8: #{tpu_custom_call.1} parent=0 // loop_exit
    _

</llo_original>
